<compile_context>
chip_gen: v7x
topology: tpu7x:2x2x1
jax: 0.10.0
libtpu: 0.0.40
codegen_flags: <defaults>
</compile_context>

<pallas_src>
import math
import functools

import jax
import jax.numpy as jnp
from jax.experimental import pallas as pl
from jax.experimental.pallas import tpu as pltpu

D_MODEL = 32
N_HEADS = 4
HEAD_DIM = D_MODEL // N_HEADS
D_FF = 64
EPS = 1e-6
NEG_INF = -1e9


def _layer_norm(x, gamma, beta):
    mu = jnp.mean(x, axis=-1, keepdims=True)
    var = jnp.mean((x - mu) ** 2, axis=-1, keepdims=True)
    return (x - mu) * jax.lax.rsqrt(var + EPS) * gamma + beta


def decoder_kernel(num_layers,
                   trg_ref, mem_ref, tmask_ref, smask_ref,
                   attw_ref, attb_ref, w1_ref, b1_ref, w2_ref, b2_ref,
                   ln_ref, fin_ref, out_ref):
    """Full decoder stack (num_layers shared-weight layers + final LN) for one batch element."""
    x0 = trg_ref[0]            # (St, D)
    mem = mem_ref[0]           # (Sm, D)
    tmask = tmask_ref[...]     # (St, St) additive
    smask = smask_ref[...]     # (St, Sm) additive
    scale = 1.0 / math.sqrt(HEAD_DIM)

    def mha(q_in, kv_in, add_mask, base):
        # base: row offset into stacked attention params (0 = self-attn, 4 = cross-attn).
        wq = attw_ref[base + 0]
        wk = attw_ref[base + 1]
        wv = attw_ref[base + 2]
        wo = attw_ref[base + 3]
        bq = attb_ref[base + 0:base + 1, :]
        bk = attb_ref[base + 1:base + 2, :]
        bv = attb_ref[base + 2:base + 3, :]
        bo = attb_ref[base + 3:base + 4, :]

        # Fold 1/sqrt(head_dim) into q (St x D) instead of scaling each (St x S) score
        # matrix per head.
        q = (jnp.dot(q_in, wq, preferred_element_type=jnp.float32) + bq) * scale
        k = jnp.dot(kv_in, wk, preferred_element_type=jnp.float32) + bk
        v = jnp.dot(kv_in, wv, preferred_element_type=jnp.float32) + bv

        # Per-head accumulation of the output projection:
        #   concat(heads) @ Wo  ==  sum_h (ctx_h @ Wo[h*HD:(h+1)*HD, :])
        # avoids the lane-axis concatenate entirely.
        out = None
        for h in range(N_HEADS):                         # static unroll over heads
            lo = h * HEAD_DIM
            qs = q[:, lo:lo + HEAD_DIM]
            ks = k[:, lo:lo + HEAD_DIM]
            vs = v[:, lo:lo + HEAD_DIM]
            # scores = qs @ ks^T (contract head dims, no explicit transpose)
            s = jax.lax.dot_general(qs, ks, (((1,), (1,)), ((), ())),
                                    preferred_element_type=jnp.float32)
            s = s + add_mask
            s = s - jnp.max(s, axis=-1, keepdims=True)
            p = jnp.exp(s)
            p = p / jnp.sum(p, axis=-1, keepdims=True)
            ctx = jnp.dot(p, vs, preferred_element_type=jnp.float32)          # (St, HD)
            proj = jnp.dot(ctx, wo[lo:lo + HEAD_DIM, :],
                           preferred_element_type=jnp.float32)                # (St, D)
            out = proj if out is None else out + proj
        return out + bo

    def layer_body(_, x):
        # self-attention + residual + norm (dropout == identity in eval)
        sa = mha(x, x, tmask, 0)
        x = _layer_norm(x + sa, ln_ref[0:1, :], ln_ref[1:2, :])
        # cross-attention over encoder memory + residual + norm
        ca = mha(x, mem, smask, 4)
        x = _layer_norm(x + ca, ln_ref[2:3, :], ln_ref[3:4, :])
        # position-wise feed-forward (ReLU) + residual + norm
        h = jnp.dot(x, w1_ref[...], preferred_element_type=jnp.float32) + b1_ref[...]
        h = jnp.maximum(h, 0.0)
        ff = jnp.dot(h, w2_ref[...], preferred_element_type=jnp.float32) + b2_ref[...]
        return _layer_norm(x + ff, ln_ref[4:5, :], ln_ref[5:6, :])

    # All layers share the same weights (ModuleList repeats the same module object),
    # so a single in-kernel loop over one weight set is exact.
    x = jax.lax.fori_loop(0, num_layers, layer_body, x0)

    # fused final LayerNorm (no second pallas_call, no extra HBM round-trip)
    out_ref[0] = _layer_norm(x, fin_ref[0:1, :], fin_ref[1:2, :])


def decoder_call(trg, memory, tmask, smask, p, num_layers):
    B, St, D = trg.shape
    Sm = memory.shape[1]
    F = p["w1"].shape[1]
    kernel = functools.partial(decoder_kernel, num_layers)
    return pl.pallas_call(
        kernel,
        out_shape=jax.ShapeDtypeStruct((B, St, D), jnp.float32),
        grid=(B,),
        in_specs=[
            pl.BlockSpec((1, St, D), lambda b: (b, 0, 0)),   # trg (per batch element)
            pl.BlockSpec((1, Sm, D), lambda b: (b, 0, 0)),   # encoder memory
            pl.BlockSpec((St, St), lambda b: (0, 0)),        # trg_mask (additive)
            pl.BlockSpec((St, Sm), lambda b: (0, 0)),        # src_mask (additive)
            pl.BlockSpec((8, D, D), lambda b: (0, 0, 0)),    # attn weights (q,k,v,o x 2)
            pl.BlockSpec((8, D), lambda b: (0, 0)),          # attn biases
            pl.BlockSpec((D, F), lambda b: (0, 0)),          # ffn W1
            pl.BlockSpec((1, F), lambda b: (0, 0)),          # ffn b1
            pl.BlockSpec((F, D), lambda b: (0, 0)),          # ffn W2
            pl.BlockSpec((1, D), lambda b: (0, 0)),          # ffn b2
            pl.BlockSpec((6, D), lambda b: (0, 0)),          # 3x per-layer layernorm (g,b)
            pl.BlockSpec((2, D), lambda b: (0, 0)),          # final layernorm (g,b)
        ],
        out_specs=pl.BlockSpec((1, St, D), lambda b: (b, 0, 0)),
        compiler_params=pltpu.CompilerParams(dimension_semantics=("parallel",)),
    )(trg, memory, tmask, smask,
      p["attw"], p["attb"], p["w1"], p["b1"], p["w2"], p["b2"],
      p["ln"], p["final_ln"])


@functools.partial(jax.jit, static_argnames=("num_layers",))
def decoder_forward(trg, memory, tmask, smask, params, num_layers):
    # Single fused pallas_call: layer stack + final norm.
    return decoder_call(trg, memory, tmask, smask, params, num_layers)


def init_params(key):
    ks = jax.random.split(key, 4)
    inv = 1.0 / math.sqrt(D_MODEL)
    params = {
        # rows 0..3: self-attn (Wq,Wk,Wv,Wo), rows 4..7: cross-attn (Wq,Wk,Wv,Wo)
        "attw": jax.random.normal(ks[0], (8, D_MODEL, D_MODEL), jnp.float32) * inv,
        "attb": jax.random.normal(ks[1], (8, D_MODEL), jnp.float32) * 0.01,
        "w1": jax.random.normal(ks[2], (D_MODEL, D_FF), jnp.float32) * inv,
        "b1": jnp.zeros((1, D_FF), jnp.float32),
        "w2": jax.random.normal(ks[3], (D_FF, D_MODEL), jnp.float32) * (1.0 / math.sqrt(D_FF)),
        "b2": jnp.zeros((1, D_MODEL), jnp.float32),
        # rows: [g1, b1, g2, b2, g3, b3]
        "ln": jnp.stack([jnp.ones(D_MODEL), jnp.zeros(D_MODEL),
                         jnp.ones(D_MODEL), jnp.zeros(D_MODEL),
                         jnp.ones(D_MODEL), jnp.zeros(D_MODEL)]).astype(jnp.float32),
        # rows: [gamma, beta] for the final Decoder LayerNorm
        "final_ln": jnp.stack([jnp.ones(D_MODEL),
                               jnp.zeros(D_MODEL)]).astype(jnp.float32),
    }
    return params


if __name__ == "__main__":
    NUM_LAYERS = 2
    B, S_TRG, S_MEM = 2, 8, 16

    key = jax.random.PRNGKey(0)
    k_trg, k_mem, k_p = jax.random.split(key, 3)
    trg = jax.random.normal(k_trg, (B, S_TRG, D_MODEL), jnp.float32)
    memory = jax.random.normal(k_mem, (B, S_MEM, D_MODEL), jnp.float32)
    params = init_params(k_p)

    # causal (look-ahead) mask for self-attention, no masking on encoder memory
    trg_mask = jnp.where(jnp.tril(jnp.ones((S_TRG, S_TRG), dtype=bool)),
                         0.0, NEG_INF).astype(jnp.float32)
    src_mask = jnp.zeros((S_TRG, S_MEM), jnp.float32)

    out = decoder_forward(trg, memory, trg_mask, src_mask, params, NUM_LAYERS)
    out = jax.block_until_ready(out)

    assert out.shape == (B, S_TRG, D_MODEL), out.shape
    assert out.dtype == jnp.float32
    assert bool(jnp.all(jnp.isfinite(out)))
    print("KERNEL_OK")
</pallas_src>

<mosaic_0001>
module attributes {stable_mosaic.version = 11 : i64} {
  func.func @decoder_kernel(%arg0: i32, %arg1: memref<1x8x32xf32, #tpu.memory_space<vmem>>, %arg2: memref<1x16x32xf32, #tpu.memory_space<vmem>>, %arg3: memref<8x8xf32, #tpu.memory_space<vmem>>, %arg4: memref<8x16xf32, #tpu.memory_space<vmem>>, %arg5: memref<8x32x32xf32, #tpu.memory_space<vmem>>, %arg6: memref<8x32xf32, #tpu.memory_space<vmem>>, %arg7: memref<32x64xf32, #tpu.memory_space<vmem>>, %arg8: memref<1x64xf32, #tpu.memory_space<vmem>>, %arg9: memref<64x32xf32, #tpu.memory_space<vmem>>, %arg10: memref<1x32xf32, #tpu.memory_space<vmem>>, %arg11: memref<6x32xf32, #tpu.memory_space<vmem>>, %arg12: memref<2x32xf32, #tpu.memory_space<vmem>>, %arg13: memref<1x8x32xf32, #tpu.memory_space<vmem>>) attributes {dimension_semantics = [#tpu.dimension_semantics<parallel>], iteration_bounds = array<i64: 2>, scalar_prefetch = 0 : i64, scratch_operands = 0 : i64, tpu.core_type = #tpu.core_type<tc>, window_params = [{transform_indices = @transform_0, window_bounds = array<i64: 1, 8, 32>}, {transform_indices = @transform_1, window_bounds = array<i64: 1, 16, 32>}, {pipeline_mode = #tpu.pipeline_mode<synchronous>, transform_indices = @transform_2, window_bounds = array<i64: 8, 8>}, {pipeline_mode = #tpu.pipeline_mode<synchronous>, transform_indices = @transform_3, window_bounds = array<i64: 8, 16>}, {pipeline_mode = #tpu.pipeline_mode<synchronous>, transform_indices = @transform_4, window_bounds = array<i64: 8, 32, 32>}, {pipeline_mode = #tpu.pipeline_mode<synchronous>, transform_indices = @transform_5, window_bounds = array<i64: 8, 32>}, {pipeline_mode = #tpu.pipeline_mode<synchronous>, transform_indices = @transform_6, window_bounds = array<i64: 32, 64>}, {pipeline_mode = #tpu.pipeline_mode<synchronous>, transform_indices = @transform_7, window_bounds = array<i64: 1, 64>}, {pipeline_mode = #tpu.pipeline_mode<synchronous>, transform_indices = @transform_8, window_bounds = array<i64: 64, 32>}, {pipeline_mode = #tpu.pipeline_mode<synchronous>, transform_indices = @transform_9, window_bounds = array<i64: 1, 32>}, {pipeline_mode = #tpu.pipeline_mode<synchronous>, transform_indices = @transform_10, window_bounds = array<i64: 6, 32>}, {pipeline_mode = #tpu.pipeline_mode<synchronous>, transform_indices = @transform_11, window_bounds = array<i64: 2, 32>}, {transform_indices = @transform_12, window_bounds = array<i64: 1, 8, 32>}]} {
    %c0 = arith.constant 0 : index
    %c0_0 = arith.constant 0 : index
    %c0_1 = arith.constant 0 : index
    %0 = vector.load %arg1[%c0, %c0_0, %c0_1] : memref<1x8x32xf32, #tpu.memory_space<vmem>>, vector<1x8x32xf32>
    %1 = vector.shape_cast %0 : vector<1x8x32xf32> to vector<8x32xf32>
    %c0_2 = arith.constant 0 : index
    %c0_3 = arith.constant 0 : index
    %c0_4 = arith.constant 0 : index
    %2 = vector.load %arg2[%c0_2, %c0_3, %c0_4] : memref<1x16x32xf32, #tpu.memory_space<vmem>>, vector<1x16x32xf32>
    %3 = vector.shape_cast %2 : vector<1x16x32xf32> to vector<16x32xf32>
    %c0_5 = arith.constant 0 : index
    %c0_6 = arith.constant 0 : index
    %4 = vector.load %arg3[%c0_5, %c0_6] : memref<8x8xf32, #tpu.memory_space<vmem>>, vector<8x8xf32>
    %c0_7 = arith.constant 0 : index
    %c0_8 = arith.constant 0 : index
    %5 = vector.load %arg4[%c0_7, %c0_8] : memref<8x16xf32, #tpu.memory_space<vmem>>, vector<8x16xf32>
    %c0_i32 = arith.constant 0 : i32
    %c2_i32 = arith.constant 2 : i32
    %6 = arith.addi %c0_i32, %c2_i32 : i32
    %c1_i32 = arith.constant 1 : i32
    %7 = scf.for %arg14 = %c0_i32 to %6 step %c1_i32 iter_args(%arg15 = %1) -> (vector<8x32xf32>)  : i32 {
      %c0_19 = arith.constant 0 : index
      %c0_20 = arith.constant 0 : index
      %c0_21 = arith.constant 0 : index
      %35 = vector.load %arg5[%c0_19, %c0_20, %c0_21] : memref<8x32x32xf32, #tpu.memory_space<vmem>>, vector<1x32x32xf32>
      %36 = vector.shape_cast %35 : vector<1x32x32xf32> to vector<32x32xf32>
      %c1_22 = arith.constant 1 : index
      %c0_23 = arith.constant 0 : index
      %c0_24 = arith.constant 0 : index
      %37 = vector.load %arg5[%c1_22, %c0_23, %c0_24] : memref<8x32x32xf32, #tpu.memory_space<vmem>>, vector<1x32x32xf32>
      %38 = vector.shape_cast %37 : vector<1x32x32xf32> to vector<32x32xf32>
      %c2 = arith.constant 2 : index
      %c0_25 = arith.constant 0 : index
      %c0_26 = arith.constant 0 : index
      %39 = vector.load %arg5[%c2, %c0_25, %c0_26] : memref<8x32x32xf32, #tpu.memory_space<vmem>>, vector<1x32x32xf32>
      %40 = vector.shape_cast %39 : vector<1x32x32xf32> to vector<32x32xf32>
      %c3 = arith.constant 3 : index
      %c0_27 = arith.constant 0 : index
      %c0_28 = arith.constant 0 : index
      %41 = vector.load %arg5[%c3, %c0_27, %c0_28] : memref<8x32x32xf32, #tpu.memory_space<vmem>>, vector<1x32x32xf32>
      %42 = vector.shape_cast %41 : vector<1x32x32xf32> to vector<32x32xf32>
      %c0_29 = arith.constant 0 : index
      %c0_30 = arith.constant 0 : index
      %43 = vector.load %arg6[%c0_29, %c0_30] : memref<8x32xf32, #tpu.memory_space<vmem>>, vector<1x32xf32>
      %c1_31 = arith.constant 1 : index
      %c0_32 = arith.constant 0 : index
      %44 = vector.load %arg6[%c1_31, %c0_32] : memref<8x32xf32, #tpu.memory_space<vmem>>, vector<1x32xf32>
      %c2_33 = arith.constant 2 : index
      %c0_34 = arith.constant 0 : index
      %45 = vector.load %arg6[%c2_33, %c0_34] : memref<8x32xf32, #tpu.memory_space<vmem>>, vector<1x32xf32>
      %c3_35 = arith.constant 3 : index
      %c0_36 = arith.constant 0 : index
      %46 = vector.load %arg6[%c3_35, %c0_36] : memref<8x32xf32, #tpu.memory_space<vmem>>, vector<1x32xf32>
      %cst_37 = arith.constant dense<0.000000e+00> : vector<8x32xf32>
      %47 = tpu.matmul %arg15, %36, %cst_37 {dimension_numbers = #tpu.dot_dimension_numbers<[1], [0], [0], [1], [0, 0, 1, 1], [], []>} : vector<8x32xf32>, vector<32x32xf32>, vector<8x32xf32> -> vector<8x32xf32>
      %48 = vector.broadcast %43 : vector<1x32xf32> to vector<8x32xf32>
      %49 = arith.addf %47, %48 : vector<8x32xf32>
      %cst_38 = arith.constant 0.353553385 : f32
      %50 = vector.broadcast %cst_38 : f32 to vector<8x32xf32>
      %51 = arith.mulf %49, %50 : vector<8x32xf32>
      %cst_39 = arith.constant dense<0.000000e+00> : vector<8x32xf32>
      %52 = tpu.matmul %arg15, %38, %cst_39 {dimension_numbers = #tpu.dot_dimension_numbers<[1], [0], [0], [1], [0, 0, 1, 1], [], []>} : vector<8x32xf32>, vector<32x32xf32>, vector<8x32xf32> -> vector<8x32xf32>
      %53 = vector.broadcast %44 : vector<1x32xf32> to vector<8x32xf32>
      %54 = arith.addf %52, %53 : vector<8x32xf32>
      %cst_40 = arith.constant dense<0.000000e+00> : vector<8x32xf32>
      %55 = tpu.matmul %arg15, %40, %cst_40 {dimension_numbers = #tpu.dot_dimension_numbers<[1], [0], [0], [1], [0, 0, 1, 1], [], []>} : vector<8x32xf32>, vector<32x32xf32>, vector<8x32xf32> -> vector<8x32xf32>
      %56 = vector.broadcast %45 : vector<1x32xf32> to vector<8x32xf32>
      %57 = arith.addf %55, %56 : vector<8x32xf32>
      %58 = vector.extract_strided_slice %51 {offsets = [0, 0], sizes = [8, 8], strides = [1, 1]} : vector<8x32xf32> to vector<8x8xf32>
      %59 = vector.extract_strided_slice %54 {offsets = [0, 0], sizes = [8, 8], strides = [1, 1]} : vector<8x32xf32> to vector<8x8xf32>
      %60 = vector.extract_strided_slice %57 {offsets = [0, 0], sizes = [8, 8], strides = [1, 1]} : vector<8x32xf32> to vector<8x8xf32>
      %cst_41 = arith.constant dense<0.000000e+00> : vector<8x8xf32>
      %61 = tpu.matmul %58, %59, %cst_41 {dimension_numbers = #tpu.dot_dimension_numbers<[1], [1], [0], [0], [0, 0, 1, 0], [], []>} : vector<8x8xf32>, vector<8x8xf32>, vector<8x8xf32> -> vector<8x8xf32>
      %62 = arith.addf %61, %4 : vector<8x8xf32>
      %cst_42 = arith.constant dense<0xFF800000> : vector<8xf32>
      %63 = vector.multi_reduction <maximumf>, %62, %cst_42 [1] : vector<8x8xf32> to vector<8xf32>
      %64 = vector.shape_cast %63 : vector<8xf32> to vector<8x1xf32>
      %65 = vector.broadcast %64 : vector<8x1xf32> to vector<8x8xf32>
      %66 = arith.subf %62, %65 : vector<8x8xf32>
      %67 = math.exp %66 : vector<8x8xf32>
      %cst_43 = arith.constant dense<0.000000e+00> : vector<8xf32>
      %68 = vector.multi_reduction <add>, %67, %cst_43 [1] : vector<8x8xf32> to vector<8xf32>
      %69 = vector.shape_cast %68 : vector<8xf32> to vector<8x1xf32>
      %70 = vector.broadcast %69 : vector<8x1xf32> to vector<8x8xf32>
      %71 = arith.divf %67, %70 : vector<8x8xf32>
      %cst_44 = arith.constant dense<0.000000e+00> : vector<8x8xf32>
      %72 = tpu.matmul %71, %60, %cst_44 {dimension_numbers = #tpu.dot_dimension_numbers<[1], [0], [0], [1], [0, 0, 1, 1], [], []>} : vector<8x8xf32>, vector<8x8xf32>, vector<8x8xf32> -> vector<8x8xf32>
      %73 = vector.extract_strided_slice %42 {offsets = [0, 0], sizes = [8, 32], strides = [1, 1]} : vector<32x32xf32> to vector<8x32xf32>
      %cst_45 = arith.constant dense<0.000000e+00> : vector<8x32xf32>
      %74 = tpu.matmul %72, %73, %cst_45 {dimension_numbers = #tpu.dot_dimension_numbers<[1], [0], [0], [1], [0, 0, 1, 1], [], []>} : vector<8x8xf32>, vector<8x32xf32>, vector<8x32xf32> -> vector<8x32xf32>
      %75 = vector.extract_strided_slice %51 {offsets = [0, 8], sizes = [8, 8], strides = [1, 1]} : vector<8x32xf32> to vector<8x8xf32>
      %76 = vector.extract_strided_slice %54 {offsets = [0, 8], sizes = [8, 8], strides = [1, 1]} : vector<8x32xf32> to vector<8x8xf32>
      %77 = vector.extract_strided_slice %57 {offsets = [0, 8], sizes = [8, 8], strides = [1, 1]} : vector<8x32xf32> to vector<8x8xf32>
      %cst_46 = arith.constant dense<0.000000e+00> : vector<8x8xf32>
      %78 = tpu.matmul %75, %76, %cst_46 {dimension_numbers = #tpu.dot_dimension_numbers<[1], [1], [0], [0], [0, 0, 1, 0], [], []>} : vector<8x8xf32>, vector<8x8xf32>, vector<8x8xf32> -> vector<8x8xf32>
      %79 = arith.addf %78, %4 : vector<8x8xf32>
      %cst_47 = arith.constant dense<0xFF800000> : vector<8xf32>
      %80 = vector.multi_reduction <maximumf>, %79, %cst_47 [1] : vector<8x8xf32> to vector<8xf32>
      %81 = vector.shape_cast %80 : vector<8xf32> to vector<8x1xf32>
      %82 = vector.broadcast %81 : vector<8x1xf32> to vector<8x8xf32>
      %83 = arith.subf %79, %82 : vector<8x8xf32>
      %84 = math.exp %83 : vector<8x8xf32>
      %cst_48 = arith.constant dense<0.000000e+00> : vector<8xf32>
      %85 = vector.multi_reduction <add>, %84, %cst_48 [1] : vector<8x8xf32> to vector<8xf32>
      %86 = vector.shape_cast %85 : vector<8xf32> to vector<8x1xf32>
      %87 = vector.broadcast %86 : vector<8x1xf32> to vector<8x8xf32>
      %88 = arith.divf %84, %87 : vector<8x8xf32>
      %cst_49 = arith.constant dense<0.000000e+00> : vector<8x8xf32>
      %89 = tpu.matmul %88, %77, %cst_49 {dimension_numbers = #tpu.dot_dimension_numbers<[1], [0], [0], [1], [0, 0, 1, 1], [], []>} : vector<8x8xf32>, vector<8x8xf32>, vector<8x8xf32> -> vector<8x8xf32>
      %90 = vector.extract_strided_slice %42 {offsets = [8, 0], sizes = [8, 32], strides = [1, 1]} : vector<32x32xf32> to vector<8x32xf32>
      %cst_50 = arith.constant dense<0.000000e+00> : vector<8x32xf32>
      %91 = tpu.matmul %89, %90, %cst_50 {dimension_numbers = #tpu.dot_dimension_numbers<[1], [0], [0], [1], [0, 0, 1, 1], [], []>} : vector<8x8xf32>, vector<8x32xf32>, vector<8x32xf32> -> vector<8x32xf32>
      %92 = arith.addf %74, %91 : vector<8x32xf32>
      %93 = vector.extract_strided_slice %51 {offsets = [0, 16], sizes = [8, 8], strides = [1, 1]} : vector<8x32xf32> to vector<8x8xf32>
      %94 = vector.extract_strided_slice %54 {offsets = [0, 16], sizes = [8, 8], strides = [1, 1]} : vector<8x32xf32> to vector<8x8xf32>
      %95 = vector.extract_strided_slice %57 {offsets = [0, 16], sizes = [8, 8], strides = [1, 1]} : vector<8x32xf32> to vector<8x8xf32>
      %cst_51 = arith.constant dense<0.000000e+00> : vector<8x8xf32>
      %96 = tpu.matmul %93, %94, %cst_51 {dimension_numbers = #tpu.dot_dimension_numbers<[1], [1], [0], [0], [0, 0, 1, 0], [], []>} : vector<8x8xf32>, vector<8x8xf32>, vector<8x8xf32> -> vector<8x8xf32>
      %97 = arith.addf %96, %4 : vector<8x8xf32>
      %cst_52 = arith.constant dense<0xFF800000> : vector<8xf32>
      %98 = vector.multi_reduction <maximumf>, %97, %cst_52 [1] : vector<8x8xf32> to vector<8xf32>
      %99 = vector.shape_cast %98 : vector<8xf32> to vector<8x1xf32>
      %100 = vector.broadcast %99 : vector<8x1xf32> to vector<8x8xf32>
      %101 = arith.subf %97, %100 : vector<8x8xf32>
      %102 = math.exp %101 : vector<8x8xf32>
      %cst_53 = arith.constant dense<0.000000e+00> : vector<8xf32>
      %103 = vector.multi_reduction <add>, %102, %cst_53 [1] : vector<8x8xf32> to vector<8xf32>
      %104 = vector.shape_cast %103 : vector<8xf32> to vector<8x1xf32>
      %105 = vector.broadcast %104 : vector<8x1xf32> to vector<8x8xf32>
      %106 = arith.divf %102, %105 : vector<8x8xf32>
      %cst_54 = arith.constant dense<0.000000e+00> : vector<8x8xf32>
      %107 = tpu.matmul %106, %95, %cst_54 {dimension_numbers = #tpu.dot_dimension_numbers<[1], [0], [0], [1], [0, 0, 1, 1], [], []>} : vector<8x8xf32>, vector<8x8xf32>, vector<8x8xf32> -> vector<8x8xf32>
      %108 = vector.extract_strided_slice %42 {offsets = [16, 0], sizes = [8, 32], strides = [1, 1]} : vector<32x32xf32> to vector<8x32xf32>
      %cst_55 = arith.constant dense<0.000000e+00> : vector<8x32xf32>
      %109 = tpu.matmul %107, %108, %cst_55 {dimension_numbers = #tpu.dot_dimension_numbers<[1], [0], [0], [1], [0, 0, 1, 1], [], []>} : vector<8x8xf32>, vector<8x32xf32>, vector<8x32xf32> -> vector<8x32xf32>
      %110 = arith.addf %92, %109 : vector<8x32xf32>
      %111 = vector.extract_strided_slice %51 {offsets = [0, 24], sizes = [8, 8], strides = [1, 1]} : vector<8x32xf32> to vector<8x8xf32>
      %112 = vector.extract_strided_slice %54 {offsets = [0, 24], sizes = [8, 8], strides = [1, 1]} : vector<8x32xf32> to vector<8x8xf32>
      %113 = vector.extract_strided_slice %57 {offsets = [0, 24], sizes = [8, 8], strides = [1, 1]} : vector<8x32xf32> to vector<8x8xf32>
      %cst_56 = arith.constant dense<0.000000e+00> : vector<8x8xf32>
      %114 = tpu.matmul %111, %112, %cst_56 {dimension_numbers = #tpu.dot_dimension_numbers<[1], [1], [0], [0], [0, 0, 1, 0], [], []>} : vector<8x8xf32>, vector<8x8xf32>, vector<8x8xf32> -> vector<8x8xf32>
      %115 = arith.addf %114, %4 : vector<8x8xf32>
      %cst_57 = arith.constant dense<0xFF800000> : vector<8xf32>
      %116 = vector.multi_reduction <maximumf>, %115, %cst_57 [1] : vector<8x8xf32> to vector<8xf32>
      %117 = vector.shape_cast %116 : vector<8xf32> to vector<8x1xf32>
      %118 = vector.broadcast %117 : vector<8x1xf32> to vector<8x8xf32>
      %119 = arith.subf %115, %118 : vector<8x8xf32>
      %120 = math.exp %119 : vector<8x8xf32>
      %cst_58 = arith.constant dense<0.000000e+00> : vector<8xf32>
      %121 = vector.multi_reduction <add>, %120, %cst_58 [1] : vector<8x8xf32> to vector<8xf32>
      %122 = vector.shape_cast %121 : vector<8xf32> to vector<8x1xf32>
      %123 = vector.broadcast %122 : vector<8x1xf32> to vector<8x8xf32>
      %124 = arith.divf %120, %123 : vector<8x8xf32>
      %cst_59 = arith.constant dense<0.000000e+00> : vector<8x8xf32>
      %125 = tpu.matmul %124, %113, %cst_59 {dimension_numbers = #tpu.dot_dimension_numbers<[1], [0], [0], [1], [0, 0, 1, 1], [], []>} : vector<8x8xf32>, vector<8x8xf32>, vector<8x8xf32> -> vector<8x8xf32>
      %126 = vector.extract_strided_slice %42 {offsets = [24, 0], sizes = [8, 32], strides = [1, 1]} : vector<32x32xf32> to vector<8x32xf32>
      %cst_60 = arith.constant dense<0.000000e+00> : vector<8x32xf32>
      %127 = tpu.matmul %125, %126, %cst_60 {dimension_numbers = #tpu.dot_dimension_numbers<[1], [0], [0], [1], [0, 0, 1, 1], [], []>} : vector<8x8xf32>, vector<8x32xf32>, vector<8x32xf32> -> vector<8x32xf32>
      %128 = arith.addf %110, %127 : vector<8x32xf32>
      %129 = vector.broadcast %46 : vector<1x32xf32> to vector<8x32xf32>
      %130 = arith.addf %128, %129 : vector<8x32xf32>
      %131 = arith.addf %arg15, %130 : vector<8x32xf32>
      %c0_61 = arith.constant 0 : index
      %c0_62 = arith.constant 0 : index
      %132 = vector.load %arg11[%c0_61, %c0_62] : memref<6x32xf32, #tpu.memory_space<vmem>>, vector<1x32xf32>
      %c1_63 = arith.constant 1 : index
      %c0_64 = arith.constant 0 : index
      %133 = vector.load %arg11[%c1_63, %c0_64] : memref<6x32xf32, #tpu.memory_space<vmem>>, vector<1x32xf32>
      %cst_65 = arith.constant dense<0.000000e+00> : vector<8xf32>
      %134 = vector.multi_reduction <add>, %131, %cst_65 [1] : vector<8x32xf32> to vector<8xf32>
      %135 = vector.shape_cast %134 : vector<8xf32> to vector<8x1xf32>
      %cst_66 = arith.constant 3.200000e+01 : f32
      %136 = vector.broadcast %cst_66 : f32 to vector<8x1xf32>
      %137 = arith.divf %135, %136 : vector<8x1xf32>
      %138 = vector.broadcast %137 : vector<8x1xf32> to vector<8x32xf32>
      %139 = arith.subf %131, %138 : vector<8x32xf32>
      %140 = arith.mulf %139, %139 : vector<8x32xf32>
      %cst_67 = arith.constant dense<0.000000e+00> : vector<8xf32>
      %141 = vector.multi_reduction <add>, %140, %cst_67 [1] : vector<8x32xf32> to vector<8xf32>
      %142 = vector.shape_cast %141 : vector<8xf32> to vector<8x1xf32>
      %cst_68 = arith.constant 3.200000e+01 : f32
      %143 = vector.broadcast %cst_68 : f32 to vector<8x1xf32>
      %144 = arith.divf %142, %143 : vector<8x1xf32>
      %145 = vector.broadcast %137 : vector<8x1xf32> to vector<8x32xf32>
      %146 = arith.subf %131, %145 : vector<8x32xf32>
      %cst_69 = arith.constant 9.99999997E-7 : f32
      %147 = vector.broadcast %cst_69 : f32 to vector<8x1xf32>
      %148 = arith.addf %144, %147 : vector<8x1xf32>
      %149 = math.rsqrt %148 : vector<8x1xf32>
      %150 = vector.broadcast %149 : vector<8x1xf32> to vector<8x32xf32>
      %151 = arith.mulf %146, %150 : vector<8x32xf32>
      %152 = vector.broadcast %132 : vector<1x32xf32> to vector<8x32xf32>
      %153 = arith.mulf %151, %152 : vector<8x32xf32>
      %154 = vector.broadcast %133 : vector<1x32xf32> to vector<8x32xf32>
      %155 = arith.addf %153, %154 : vector<8x32xf32>
      %c4 = arith.constant 4 : index
      %c0_70 = arith.constant 0 : index
      %c0_71 = arith.constant 0 : index
      %156 = vector.load %arg5[%c4, %c0_70, %c0_71] : memref<8x32x32xf32, #tpu.memory_space<vmem>>, vector<1x32x32xf32>
      %157 = vector.shape_cast %156 : vector<1x32x32xf32> to vector<32x32xf32>
      %c5 = arith.constant 5 : index
      %c0_72 = arith.constant 0 : index
      %c0_73 = arith.constant 0 : index
      %158 = vector.load %arg5[%c5, %c0_72, %c0_73] : memref<8x32x32xf32, #tpu.memory_space<vmem>>, vector<1x32x32xf32>
      %159 = vector.shape_cast %158 : vector<1x32x32xf32> to vector<32x32xf32>
      %c6 = arith.constant 6 : index
      %c0_74 = arith.constant 0 : index
      %c0_75 = arith.constant 0 : index
      %160 = vector.load %arg5[%c6, %c0_74, %c0_75] : memref<8x32x32xf32, #tpu.memory_space<vmem>>, vector<1x32x32xf32>
      %161 = vector.shape_cast %160 : vector<1x32x32xf32> to vector<32x32xf32>
      %c7 = arith.constant 7 : index
      %c0_76 = arith.constant 0 : index
      %c0_77 = arith.constant 0 : index
      %162 = vector.load %arg5[%c7, %c0_76, %c0_77] : memref<8x32x32xf32, #tpu.memory_space<vmem>>, vector<1x32x32xf32>
      %163 = vector.shape_cast %162 : vector<1x32x32xf32> to vector<32x32xf32>
      %c4_78 = arith.constant 4 : index
      %c0_79 = arith.constant 0 : index
      %164 = vector.load %arg6[%c4_78, %c0_79] : memref<8x32xf32, #tpu.memory_space<vmem>>, vector<1x32xf32>
      %c5_80 = arith.constant 5 : index
      %c0_81 = arith.constant 0 : index
      %165 = vector.load %arg6[%c5_80, %c0_81] : memref<8x32xf32, #tpu.memory_space<vmem>>, vector<1x32xf32>
      %c6_82 = arith.constant 6 : index
      %c0_83 = arith.constant 0 : index
      %166 = vector.load %arg6[%c6_82, %c0_83] : memref<8x32xf32, #tpu.memory_space<vmem>>, vector<1x32xf32>
      %c7_84 = arith.constant 7 : index
      %c0_85 = arith.constant 0 : index
      %167 = vector.load %arg6[%c7_84, %c0_85] : memref<8x32xf32, #tpu.memory_space<vmem>>, vector<1x32xf32>
      %cst_86 = arith.constant dense<0.000000e+00> : vector<8x32xf32>
      %168 = tpu.matmul %155, %157, %cst_86 {dimension_numbers = #tpu.dot_dimension_numbers<[1], [0], [0], [1], [0, 0, 1, 1], [], []>} : vector<8x32xf32>, vector<32x32xf32>, vector<8x32xf32> -> vector<8x32xf32>
      %169 = vector.broadcast %164 : vector<1x32xf32> to vector<8x32xf32>
      %170 = arith.addf %168, %169 : vector<8x32xf32>
      %cst_87 = arith.constant 0.353553385 : f32
      %171 = vector.broadcast %cst_87 : f32 to vector<8x32xf32>
      %172 = arith.mulf %170, %171 : vector<8x32xf32>
      %cst_88 = arith.constant dense<0.000000e+00> : vector<16x32xf32>
      %173 = tpu.matmul %3, %159, %cst_88 {dimension_numbers = #tpu.dot_dimension_numbers<[1], [0], [0], [1], [0, 0, 1, 1], [], []>} : vector<16x32xf32>, vector<32x32xf32>, vector<16x32xf32> -> vector<16x32xf32>
      %174 = vector.broadcast %165 : vector<1x32xf32> to vector<16x32xf32>
      %175 = arith.addf %173, %174 : vector<16x32xf32>
      %cst_89 = arith.constant dense<0.000000e+00> : vector<16x32xf32>
      %176 = tpu.matmul %3, %161, %cst_89 {dimension_numbers = #tpu.dot_dimension_numbers<[1], [0], [0], [1], [0, 0, 1, 1], [], []>} : vector<16x32xf32>, vector<32x32xf32>, vector<16x32xf32> -> vector<16x32xf32>
      %177 = vector.broadcast %166 : vector<1x32xf32> to vector<16x32xf32>
      %178 = arith.addf %176, %177 : vector<16x32xf32>
      %179 = vector.extract_strided_slice %172 {offsets = [0, 0], sizes = [8, 8], strides = [1, 1]} : vector<8x32xf32> to vector<8x8xf32>
      %180 = vector.extract_strided_slice %175 {offsets = [0, 0], sizes = [16, 8], strides = [1, 1]} : vector<16x32xf32> to vector<16x8xf32>
      %181 = vector.extract_strided_slice %178 {offsets = [0, 0], sizes = [16, 8], strides = [1, 1]} : vector<16x32xf32> to vector<16x8xf32>
      %cst_90 = arith.constant dense<0.000000e+00> : vector<8x16xf32>
      %182 = tpu.matmul %179, %180, %cst_90 {dimension_numbers = #tpu.dot_dimension_numbers<[1], [1], [0], [0], [0, 0, 1, 0], [], []>} : vector<8x8xf32>, vector<16x8xf32>, vector<8x16xf32> -> vector<8x16xf32>
      %183 = arith.addf %182, %5 : vector<8x16xf32>
      %cst_91 = arith.constant dense<0xFF800000> : vector<8xf32>
      %184 = vector.multi_reduction <maximumf>, %183, %cst_91 [1] : vector<8x16xf32> to vector<8xf32>
      %185 = vector.shape_cast %184 : vector<8xf32> to vector<8x1xf32>
      %186 = vector.broadcast %185 : vector<8x1xf32> to vector<8x16xf32>
      %187 = arith.subf %183, %186 : vector<8x16xf32>
      %188 = math.exp %187 : vector<8x16xf32>
      %cst_92 = arith.constant dense<0.000000e+00> : vector<8xf32>
      %189 = vector.multi_reduction <add>, %188, %cst_92 [1] : vector<8x16xf32> to vector<8xf32>
      %190 = vector.shape_cast %189 : vector<8xf32> to vector<8x1xf32>
      %191 = vector.broadcast %190 : vector<8x1xf32> to vector<8x16xf32>
      %192 = arith.divf %188, %191 : vector<8x16xf32>
      %cst_93 = arith.constant dense<0.000000e+00> : vector<8x8xf32>
      %193 = tpu.matmul %192, %181, %cst_93 {dimension_numbers = #tpu.dot_dimension_numbers<[1], [0], [0], [1], [0, 0, 1, 1], [], []>} : vector<8x16xf32>, vector<16x8xf32>, vector<8x8xf32> -> vector<8x8xf32>
      %194 = vector.extract_strided_slice %163 {offsets = [0, 0], sizes = [8, 32], strides = [1, 1]} : vector<32x32xf32> to vector<8x32xf32>
      %cst_94 = arith.constant dense<0.000000e+00> : vector<8x32xf32>
      %195 = tpu.matmul %193, %194, %cst_94 {dimension_numbers = #tpu.dot_dimension_numbers<[1], [0], [0], [1], [0, 0, 1, 1], [], []>} : vector<8x8xf32>, vector<8x32xf32>, vector<8x32xf32> -> vector<8x32xf32>
      %196 = vector.extract_strided_slice %172 {offsets = [0, 8], sizes = [8, 8], strides = [1, 1]} : vector<8x32xf32> to vector<8x8xf32>
      %197 = vector.extract_strided_slice %175 {offsets = [0, 8], sizes = [16, 8], strides = [1, 1]} : vector<16x32xf32> to vector<16x8xf32>
      %198 = vector.extract_strided_slice %178 {offsets = [0, 8], sizes = [16, 8], strides = [1, 1]} : vector<16x32xf32> to vector<16x8xf32>
      %cst_95 = arith.constant dense<0.000000e+00> : vector<8x16xf32>
      %199 = tpu.matmul %196, %197, %cst_95 {dimension_numbers = #tpu.dot_dimension_numbers<[1], [1], [0], [0], [0, 0, 1, 0], [], []>} : vector<8x8xf32>, vector<16x8xf32>, vector<8x16xf32> -> vector<8x16xf32>
      %200 = arith.addf %199, %5 : vector<8x16xf32>
      %cst_96 = arith.constant dense<0xFF800000> : vector<8xf32>
      %201 = vector.multi_reduction <maximumf>, %200, %cst_96 [1] : vector<8x16xf32> to vector<8xf32>
      %202 = vector.shape_cast %201 : vector<8xf32> to vector<8x1xf32>
      %203 = vector.broadcast %202 : vector<8x1xf32> to vector<8x16xf32>
      %204 = arith.subf %200, %203 : vector<8x16xf32>
      %205 = math.exp %204 : vector<8x16xf32>
      %cst_97 = arith.constant dense<0.000000e+00> : vector<8xf32>
      %206 = vector.multi_reduction <add>, %205, %cst_97 [1] : vector<8x16xf32> to vector<8xf32>
      %207 = vector.shape_cast %206 : vector<8xf32> to vector<8x1xf32>
      %208 = vector.broadcast %207 : vector<8x1xf32> to vector<8x16xf32>
      %209 = arith.divf %205, %208 : vector<8x16xf32>
      %cst_98 = arith.constant dense<0.000000e+00> : vector<8x8xf32>
      %210 = tpu.matmul %209, %198, %cst_98 {dimension_numbers = #tpu.dot_dimension_numbers<[1], [0], [0], [1], [0, 0, 1, 1], [], []>} : vector<8x16xf32>, vector<16x8xf32>, vector<8x8xf32> -> vector<8x8xf32>
      %211 = vector.extract_strided_slice %163 {offsets = [8, 0], sizes = [8, 32], strides = [1, 1]} : vector<32x32xf32> to vector<8x32xf32>
      %cst_99 = arith.constant dense<0.000000e+00> : vector<8x32xf32>
      %212 = tpu.matmul %210, %211, %cst_99 {dimension_numbers = #tpu.dot_dimension_numbers<[1], [0], [0], [1], [0, 0, 1, 1], [], []>} : vector<8x8xf32>, vector<8x32xf32>, vector<8x32xf32> -> vector<8x32xf32>
      %213 = arith.addf %195, %212 : vector<8x32xf32>
      %214 = vector.extract_strided_slice %172 {offsets = [0, 16], sizes = [8, 8], strides = [1, 1]} : vector<8x32xf32> to vector<8x8xf32>
      %215 = vector.extract_strided_slice %175 {offsets = [0, 16], sizes = [16, 8], strides = [1, 1]} : vector<16x32xf32> to vector<16x8xf32>
      %216 = vector.extract_strided_slice %178 {offsets = [0, 16], sizes = [16, 8], strides = [1, 1]} : vector<16x32xf32> to vector<16x8xf32>
      %cst_100 = arith.constant dense<0.000000e+00> : vector<8x16xf32>
      %217 = tpu.matmul %214, %215, %cst_100 {dimension_numbers = #tpu.dot_dimension_numbers<[1], [1], [0], [0], [0, 0, 1, 0], [], []>} : vector<8x8xf32>, vector<16x8xf32>, vector<8x16xf32> -> vector<8x16xf32>
      %218 = arith.addf %217, %5 : vector<8x16xf32>
      %cst_101 = arith.constant dense<0xFF800000> : vector<8xf32>
      %219 = vector.multi_reduction <maximumf>, %218, %cst_101 [1] : vector<8x16xf32> to vector<8xf32>
      %220 = vector.shape_cast %219 : vector<8xf32> to vector<8x1xf32>
      %221 = vector.broadcast %220 : vector<8x1xf32> to vector<8x16xf32>
      %222 = arith.subf %218, %221 : vector<8x16xf32>
      %223 = math.exp %222 : vector<8x16xf32>
      %cst_102 = arith.constant dense<0.000000e+00> : vector<8xf32>
      %224 = vector.multi_reduction <add>, %223, %cst_102 [1] : vector<8x16xf32> to vector<8xf32>
      %225 = vector.shape_cast %224 : vector<8xf32> to vector<8x1xf32>
      %226 = vector.broadcast %225 : vector<8x1xf32> to vector<8x16xf32>
      %227 = arith.divf %223, %226 : vector<8x16xf32>
      %cst_103 = arith.constant dense<0.000000e+00> : vector<8x8xf32>
      %228 = tpu.matmul %227, %216, %cst_103 {dimension_numbers = #tpu.dot_dimension_numbers<[1], [0], [0], [1], [0, 0, 1, 1], [], []>} : vector<8x16xf32>, vector<16x8xf32>, vector<8x8xf32> -> vector<8x8xf32>
      %229 = vector.extract_strided_slice %163 {offsets = [16, 0], sizes = [8, 32], strides = [1, 1]} : vector<32x32xf32> to vector<8x32xf32>
      %cst_104 = arith.constant dense<0.000000e+00> : vector<8x32xf32>
      %230 = tpu.matmul %228, %229, %cst_104 {dimension_numbers = #tpu.dot_dimension_numbers<[1], [0], [0], [1], [0, 0, 1, 1], [], []>} : vector<8x8xf32>, vector<8x32xf32>, vector<8x32xf32> -> vector<8x32xf32>
      %231 = arith.addf %213, %230 : vector<8x32xf32>
      %232 = vector.extract_strided_slice %172 {offsets = [0, 24], sizes = [8, 8], strides = [1, 1]} : vector<8x32xf32> to vector<8x8xf32>
      %233 = vector.extract_strided_slice %175 {offsets = [0, 24], sizes = [16, 8], strides = [1, 1]} : vector<16x32xf32> to vector<16x8xf32>
      %234 = vector.extract_strided_slice %178 {offsets = [0, 24], sizes = [16, 8], strides = [1, 1]} : vector<16x32xf32> to vector<16x8xf32>
      %cst_105 = arith.constant dense<0.000000e+00> : vector<8x16xf32>
      %235 = tpu.matmul %232, %233, %cst_105 {dimension_numbers = #tpu.dot_dimension_numbers<[1], [1], [0], [0], [0, 0, 1, 0], [], []>} : vector<8x8xf32>, vector<16x8xf32>, vector<8x16xf32> -> vector<8x16xf32>
      %236 = arith.addf %235, %5 : vector<8x16xf32>
      %cst_106 = arith.constant dense<0xFF800000> : vector<8xf32>
      %237 = vector.multi_reduction <maximumf>, %236, %cst_106 [1] : vector<8x16xf32> to vector<8xf32>
      %238 = vector.shape_cast %237 : vector<8xf32> to vector<8x1xf32>
      %239 = vector.broadcast %238 : vector<8x1xf32> to vector<8x16xf32>
      %240 = arith.subf %236, %239 : vector<8x16xf32>
      %241 = math.exp %240 : vector<8x16xf32>
      %cst_107 = arith.constant dense<0.000000e+00> : vector<8xf32>
      %242 = vector.multi_reduction <add>, %241, %cst_107 [1] : vector<8x16xf32> to vector<8xf32>
      %243 = vector.shape_cast %242 : vector<8xf32> to vector<8x1xf32>
      %244 = vector.broadcast %243 : vector<8x1xf32> to vector<8x16xf32>
      %245 = arith.divf %241, %244 : vector<8x16xf32>
      %cst_108 = arith.constant dense<0.000000e+00> : vector<8x8xf32>
      %246 = tpu.matmul %245, %234, %cst_108 {dimension_numbers = #tpu.dot_dimension_numbers<[1], [0], [0], [1], [0, 0, 1, 1], [], []>} : vector<8x16xf32>, vector<16x8xf32>, vector<8x8xf32> -> vector<8x8xf32>
      %247 = vector.extract_strided_slice %163 {offsets = [24, 0], sizes = [8, 32], strides = [1, 1]} : vector<32x32xf32> to vector<8x32xf32>
      %cst_109 = arith.constant dense<0.000000e+00> : vector<8x32xf32>
      %248 = tpu.matmul %246, %247, %cst_109 {dimension_numbers = #tpu.dot_dimension_numbers<[1], [0], [0], [1], [0, 0, 1, 1], [], []>} : vector<8x8xf32>, vector<8x32xf32>, vector<8x32xf32> -> vector<8x32xf32>
      %249 = arith.addf %231, %248 : vector<8x32xf32>
      %250 = vector.broadcast %167 : vector<1x32xf32> to vector<8x32xf32>
      %251 = arith.addf %249, %250 : vector<8x32xf32>
      %252 = arith.addf %155, %251 : vector<8x32xf32>
      %c2_110 = arith.constant 2 : index
      %c0_111 = arith.constant 0 : index
      %253 = vector.load %arg11[%c2_110, %c0_111] : memref<6x32xf32, #tpu.memory_space<vmem>>, vector<1x32xf32>
      %c3_112 = arith.constant 3 : index
      %c0_113 = arith.constant 0 : index
      %254 = vector.load %arg11[%c3_112, %c0_113] : memref<6x32xf32, #tpu.memory_space<vmem>>, vector<1x32xf32>
      %cst_114 = arith.constant dense<0.000000e+00> : vector<8xf32>
      %255 = vector.multi_reduction <add>, %252, %cst_114 [1] : vector<8x32xf32> to vector<8xf32>
      %256 = vector.shape_cast %255 : vector<8xf32> to vector<8x1xf32>
      %cst_115 = arith.constant 3.200000e+01 : f32
      %257 = vector.broadcast %cst_115 : f32 to vector<8x1xf32>
      %258 = arith.divf %256, %257 : vector<8x1xf32>
      %259 = vector.broadcast %258 : vector<8x1xf32> to vector<8x32xf32>
      %260 = arith.subf %252, %259 : vector<8x32xf32>
      %261 = arith.mulf %260, %260 : vector<8x32xf32>
      %cst_116 = arith.constant dense<0.000000e+00> : vector<8xf32>
      %262 = vector.multi_reduction <add>, %261, %cst_116 [1] : vector<8x32xf32> to vector<8xf32>
      %263 = vector.shape_cast %262 : vector<8xf32> to vector<8x1xf32>
      %cst_117 = arith.constant 3.200000e+01 : f32
      %264 = vector.broadcast %cst_117 : f32 to vector<8x1xf32>
      %265 = arith.divf %263, %264 : vector<8x1xf32>
      %266 = vector.broadcast %258 : vector<8x1xf32> to vector<8x32xf32>
      %267 = arith.subf %252, %266 : vector<8x32xf32>
      %cst_118 = arith.constant 9.99999997E-7 : f32
      %268 = vector.broadcast %cst_118 : f32 to vector<8x1xf32>
      %269 = arith.addf %265, %268 : vector<8x1xf32>
      %270 = math.rsqrt %269 : vector<8x1xf32>
      %271 = vector.broadcast %270 : vector<8x1xf32> to vector<8x32xf32>
      %272 = arith.mulf %267, %271 : vector<8x32xf32>
      %273 = vector.broadcast %253 : vector<1x32xf32> to vector<8x32xf32>
      %274 = arith.mulf %272, %273 : vector<8x32xf32>
      %275 = vector.broadcast %254 : vector<1x32xf32> to vector<8x32xf32>
      %276 = arith.addf %274, %275 : vector<8x32xf32>
      %c0_119 = arith.constant 0 : index
      %c0_120 = arith.constant 0 : index
      %277 = vector.load %arg7[%c0_119, %c0_120] : memref<32x64xf32, #tpu.memory_space<vmem>>, vector<32x64xf32>
      %cst_121 = arith.constant dense<0.000000e+00> : vector<8x64xf32>
      %278 = tpu.matmul %276, %277, %cst_121 {dimension_numbers = #tpu.dot_dimension_numbers<[1], [0], [0], [1], [0, 0, 1, 1], [], []>} : vector<8x32xf32>, vector<32x64xf32>, vector<8x64xf32> -> vector<8x64xf32>
      %c0_122 = arith.constant 0 : index
      %c0_123 = arith.constant 0 : index
      %279 = vector.load %arg8[%c0_122, %c0_123] : memref<1x64xf32, #tpu.memory_space<vmem>>, vector<1x64xf32>
      %280 = vector.broadcast %279 : vector<1x64xf32> to vector<8x64xf32>
      %281 = arith.addf %278, %280 : vector<8x64xf32>
      %cst_124 = arith.constant 0.000000e+00 : f32
      %282 = vector.broadcast %cst_124 : f32 to vector<8x64xf32>
      %283 = arith.maximumf %281, %282 : vector<8x64xf32>
      %c0_125 = arith.constant 0 : index
      %c0_126 = arith.constant 0 : index
      %284 = vector.load %arg9[%c0_125, %c0_126] : memref<64x32xf32, #tpu.memory_space<vmem>>, vector<64x32xf32>
      %cst_127 = arith.constant dense<0.000000e+00> : vector<8x32xf32>
      %285 = tpu.matmul %283, %284, %cst_127 {dimension_numbers = #tpu.dot_dimension_numbers<[1], [0], [0], [1], [0, 0, 1, 1], [], []>} : vector<8x64xf32>, vector<64x32xf32>, vector<8x32xf32> -> vector<8x32xf32>
      %c0_128 = arith.constant 0 : index
      %c0_129 = arith.constant 0 : index
      %286 = vector.load %arg10[%c0_128, %c0_129] : memref<1x32xf32, #tpu.memory_space<vmem>>, vector<1x32xf32>
      %287 = vector.broadcast %286 : vector<1x32xf32> to vector<8x32xf32>
      %288 = arith.addf %285, %287 : vector<8x32xf32>
      %289 = arith.addf %276, %288 : vector<8x32xf32>
      %c4_130 = arith.constant 4 : index
      %c0_131 = arith.constant 0 : index
      %290 = vector.load %arg11[%c4_130, %c0_131] : memref<6x32xf32, #tpu.memory_space<vmem>>, vector<1x32xf32>
      %c5_132 = arith.constant 5 : index
      %c0_133 = arith.constant 0 : index
      %291 = vector.load %arg11[%c5_132, %c0_133] : memref<6x32xf32, #tpu.memory_space<vmem>>, vector<1x32xf32>
      %cst_134 = arith.constant dense<0.000000e+00> : vector<8xf32>
      %292 = vector.multi_reduction <add>, %289, %cst_134 [1] : vector<8x32xf32> to vector<8xf32>
      %293 = vector.shape_cast %292 : vector<8xf32> to vector<8x1xf32>
      %cst_135 = arith.constant 3.200000e+01 : f32
      %294 = vector.broadcast %cst_135 : f32 to vector<8x1xf32>
      %295 = arith.divf %293, %294 : vector<8x1xf32>
      %296 = vector.broadcast %295 : vector<8x1xf32> to vector<8x32xf32>
      %297 = arith.subf %289, %296 : vector<8x32xf32>
      %298 = arith.mulf %297, %297 : vector<8x32xf32>
      %cst_136 = arith.constant dense<0.000000e+00> : vector<8xf32>
      %299 = vector.multi_reduction <add>, %298, %cst_136 [1] : vector<8x32xf32> to vector<8xf32>
      %300 = vector.shape_cast %299 : vector<8xf32> to vector<8x1xf32>
      %cst_137 = arith.constant 3.200000e+01 : f32
      %301 = vector.broadcast %cst_137 : f32 to vector<8x1xf32>
      %302 = arith.divf %300, %301 : vector<8x1xf32>
      %303 = vector.broadcast %295 : vector<8x1xf32> to vector<8x32xf32>
      %304 = arith.subf %289, %303 : vector<8x32xf32>
      %cst_138 = arith.constant 9.99999997E-7 : f32
      %305 = vector.broadcast %cst_138 : f32 to vector<8x1xf32>
      %306 = arith.addf %302, %305 : vector<8x1xf32>
      %307 = math.rsqrt %306 : vector<8x1xf32>
      %308 = vector.broadcast %307 : vector<8x1xf32> to vector<8x32xf32>
      %309 = arith.mulf %304, %308 : vector<8x32xf32>
      %310 = vector.broadcast %290 : vector<1x32xf32> to vector<8x32xf32>
      %311 = arith.mulf %309, %310 : vector<8x32xf32>
      %312 = vector.broadcast %291 : vector<1x32xf32> to vector<8x32xf32>
      %313 = arith.addf %311, %312 : vector<8x32xf32>
      scf.yield %313 : vector<8x32xf32>
    }
    %c0_9 = arith.constant 0 : index
    %c0_10 = arith.constant 0 : index
    %8 = vector.load %arg12[%c0_9, %c0_10] : memref<2x32xf32, #tpu.memory_space<vmem>>, vector<1x32xf32>
    %c1 = arith.constant 1 : index
    %c0_11 = arith.constant 0 : index
    %9 = vector.load %arg12[%c1, %c0_11] : memref<2x32xf32, #tpu.memory_space<vmem>>, vector<1x32xf32>
    %cst = arith.constant dense<0.000000e+00> : vector<8xf32>
    %10 = vector.multi_reduction <add>, %7, %cst [1] : vector<8x32xf32> to vector<8xf32>
    %11 = vector.shape_cast %10 : vector<8xf32> to vector<8x1xf32>
    %cst_12 = arith.constant 3.200000e+01 : f32
    %12 = vector.broadcast %cst_12 : f32 to vector<8x1xf32>
    %13 = arith.divf %11, %12 : vector<8x1xf32>
    %14 = vector.broadcast %13 : vector<8x1xf32> to vector<8x32xf32>
    %15 = arith.subf %7, %14 : vector<8x32xf32>
    %16 = arith.mulf %15, %15 : vector<8x32xf32>
    %cst_13 = arith.constant dense<0.000000e+00> : vector<8xf32>
    %17 = vector.multi_reduction <add>, %16, %cst_13 [1] : vector<8x32xf32> to vector<8xf32>
    %18 = vector.shape_cast %17 : vector<8xf32> to vector<8x1xf32>
    %cst_14 = arith.constant 3.200000e+01 : f32
    %19 = vector.broadcast %cst_14 : f32 to vector<8x1xf32>
    %20 = arith.divf %18, %19 : vector<8x1xf32>
    %21 = vector.broadcast %13 : vector<8x1xf32> to vector<8x32xf32>
    %22 = arith.subf %7, %21 : vector<8x32xf32>
    %cst_15 = arith.constant 9.99999997E-7 : f32
    %23 = vector.broadcast %cst_15 : f32 to vector<8x1xf32>
    %24 = arith.addf %20, %23 : vector<8x1xf32>
    %25 = math.rsqrt %24 : vector<8x1xf32>
    %26 = vector.broadcast %25 : vector<8x1xf32> to vector<8x32xf32>
    %27 = arith.mulf %22, %26 : vector<8x32xf32>
    %28 = vector.broadcast %8 : vector<1x32xf32> to vector<8x32xf32>
    %29 = arith.mulf %27, %28 : vector<8x32xf32>
    %30 = vector.broadcast %9 : vector<1x32xf32> to vector<8x32xf32>
    %31 = arith.addf %29, %30 : vector<8x32xf32>
    %c0_16 = arith.constant 0 : index
    %c0_17 = arith.constant 0 : index
    %c0_18 = arith.constant 0 : index
    %32 = vector.load %arg13[%c0_16, %c0_17, %c0_18] : memref<1x8x32xf32, #tpu.memory_space<vmem>>, vector<1x8x32xf32>
    %33 = vector.shape_cast %32 : vector<1x8x32xf32> to vector<8x32xf32>
    %34 = vector.shape_cast %31 : vector<8x32xf32> to vector<1x8x32xf32>
    tpu.vector_store %arg13[%c0_16, %c0_17, %c0_18], %34 {strides = array<i32>} : memref<1x8x32xf32, #tpu.memory_space<vmem>>, vector<1x8x32xf32>,
    return
  }
  func.func @transform_0(%arg0: i32) -> (i32, i32, i32) {
    %c0_i32 = arith.constant 0 : i32
    %c0_i32_0 = arith.constant 0 : i32
    %c0_i32_1 = arith.constant 0 : i32
    return %arg0, %c0_i32, %c0_i32_0 : i32, i32, i32
  }
  func.func @transform_1(%arg0: i32) -> (i32, i32, i32) {
    %c0_i32 = arith.constant 0 : i32
    %c0_i32_0 = arith.constant 0 : i32
    %c0_i32_1 = arith.constant 0 : i32
    return %arg0, %c0_i32, %c0_i32_0 : i32, i32, i32
  }
  func.func @transform_2(%arg0: i32) -> (i32, i32) {
    %c0_i32 = arith.constant 0 : i32
    %c0_i32_0 = arith.constant 0 : i32
    %c0_i32_1 = arith.constant 0 : i32
    return %c0_i32, %c0_i32_0 : i32, i32
  }
  func.func @transform_3(%arg0: i32) -> (i32, i32) {
    %c0_i32 = arith.constant 0 : i32
    %c0_i32_0 = arith.constant 0 : i32
    %c0_i32_1 = arith.constant 0 : i32
    return %c0_i32, %c0_i32_0 : i32, i32
  }
  func.func @transform_4(%arg0: i32) -> (i32, i32, i32) {
    %c0_i32 = arith.constant 0 : i32
    %c0_i32_0 = arith.constant 0 : i32
    %c0_i32_1 = arith.constant 0 : i32
    %c0_i32_2 = arith.constant 0 : i32
    return %c0_i32, %c0_i32_0, %c0_i32_1 : i32, i32, i32
  }
  func.func @transform_5(%arg0: i32) -> (i32, i32) {
    %c0_i32 = arith.constant 0 : i32
    %c0_i32_0 = arith.constant 0 : i32
    %c0_i32_1 = arith.constant 0 : i32
    return %c0_i32, %c0_i32_0 : i32, i32
  }
  func.func @transform_6(%arg0: i32) -> (i32, i32) {
    %c0_i32 = arith.constant 0 : i32
    %c0_i32_0 = arith.constant 0 : i32
    %c0_i32_1 = arith.constant 0 : i32
    return %c0_i32, %c0_i32_0 : i32, i32
  }
  func.func @transform_7(%arg0: i32) -> (i32, i32) {
    %c0_i32 = arith.constant 0 : i32
    %c0_i32_0 = arith.constant 0 : i32
    %c0_i32_1 = arith.constant 0 : i32
    return %c0_i32, %c0_i32_0 : i32, i32
  }
  func.func @transform_8(%arg0: i32) -> (i32, i32) {
    %c0_i32 = arith.constant 0 : i32
    %c0_i32_0 = arith.constant 0 : i32
    %c0_i32_1 = arith.constant 0 : i32
    return %c0_i32, %c0_i32_0 : i32, i32
  }
  func.func @transform_9(%arg0: i32) -> (i32, i32) {
    %c0_i32 = arith.constant 0 : i32
    %c0_i32_0 = arith.constant 0 : i32
    %c0_i32_1 = arith.constant 0 : i32
    return %c0_i32, %c0_i32_0 : i32, i32
  }
  func.func @transform_10(%arg0: i32) -> (i32, i32) {
    %c0_i32 = arith.constant 0 : i32
    %c0_i32_0 = arith.constant 0 : i32
    %c0_i32_1 = arith.constant 0 : i32
    return %c0_i32, %c0_i32_0 : i32, i32
  }
  func.func @transform_11(%arg0: i32) -> (i32, i32) {
    %c0_i32 = arith.constant 0 : i32
    %c0_i32_0 = arith.constant 0 : i32
    %c0_i32_1 = arith.constant 0 : i32
    return %c0_i32, %c0_i32_0 : i32, i32
  }
  func.func @transform_12(%arg0: i32) -> (i32, i32, i32) {
    %c0_i32 = arith.constant 0 : i32
    %c0_i32_0 = arith.constant 0 : i32
    %c0_i32_1 = arith.constant 0 : i32
    return %arg0, %c0_i32, %c0_i32_0 : i32, i32, i32
  }
}

</mosaic_0001>

<llo_original>
// kernel: decoder_forward.1
$region0: #{decoder_forward.1}
  #allocation0 [shape = 'u32[]', space=smem, size = 0x4, offset = 0x4, fixed_abs, tag = 'smem constant byte address 0x4 - core index']
  #allocation1 [shape = 'u32[144,128]{1,0:T(1,128)}', space=vmem, size = 0x12000, scoped, tag = 'internal scratch']
  %s0 = inlined_call_operand.vmem [shape: f32[2,8,32], index: 0, kind: input, shape index: {}]
  %s1 = inlined_call_operand.vmem [shape: f32[2,16,32], index: 1, kind: input, shape index: {}]
  %s2 = inlined_call_operand.vmem [shape: f32[8,8], index: 2, kind: input, shape index: {}]
  %s3 = inlined_call_operand.vmem [shape: f32[8,16], index: 3, kind: input, shape index: {}]
  %s4 = inlined_call_operand.hbm [shape: f32[8,32,32], index: 4, kind: input, shape index: {}]
  %s5 = inlined_call_operand.vmem [shape: f32[8,32], index: 5, kind: input, shape index: {}]
  %s6 = inlined_call_operand.vmem [shape: f32[32,64], index: 6, kind: input, shape index: {}]
  %s7 = inlined_call_operand.vmem [shape: f32[1,64], index: 7, kind: input, shape index: {}]
  %s8 = inlined_call_operand.vmem [shape: f32[64,32], index: 8, kind: input, shape index: {}]
  %s9 = inlined_call_operand.hbm [shape: f32[1,32], index: 9, kind: input, shape index: {}]
  %s10 = inlined_call_operand.hbm [shape: f32[6,32], index: 10, kind: input, shape index: {}]
  %s11 = inlined_call_operand.hbm [shape: f32[2,32], index: 11, kind: input, shape index: {}]
  %s12 = inlined_call_operand.hbm [shape: f32[2,8,32], index: 12, kind: output, shape index: {}]
  %s13 = sld [smem:[#allocation0]]
  $region104: #{decoder_forward.1} parent=0
    _
  %s15 = ssub.s32 1, %s13
  %s16 = scalar_select 0, %s15, %s13
  $region1: #{decoder_forward.1} parent=0
    #allocation2 [shape = 'u8[131072]{0}', space=vmem, size = 0x20000, scoped, tag = 'input window, operand 4, single buffered']
    #allocation3 [shape = 's32[2]{0}', space=sflag, size = 0x8, scoped, tag = 'scoped memory for decoder_forward.1']
    #allocation4 [shape = 's32[2]{0}', space=sflag, size = 0x8, scoped, tag = 'scoped memory for decoder_forward.1']
    #allocation5 [shape = 'u8[512]{0}', space=vmem, size = 0x400, scoped, tag = 'input window, operand 9, single buffered']
    #allocation6 [shape = 's32[1]{0}', space=sflag, size = 0x4, scoped, tag = 'scoped memory for decoder_forward.1']
    #allocation7 [shape = 'u8[4096]{0}', space=vmem, size = 0x1000, scoped, tag = 'input window, operand 10, single buffered']
    #allocation8 [shape = 'u8[1024]{0}', space=vmem, size = 0x400, scoped, tag = 'input window, operand 11, single buffered']
    #allocation9 [shape = 's32[1]{0}', space=sflag, size = 0x4, scoped, tag = 'scoped memory for decoder_forward.1']
    #allocation10 [shape = 'u8[8192]{0}', space=vmem, size = 0x2000, scoped, tag = 'output window, operand 0']
    %17 = vsyncpa [#allocation3], 0
    %18 = vsyncpa [#allocation6], 0
    %19 = vsyncpa [#allocation9], 0
    %20 = vsyncpa [#allocation4], 0
    %s21 = scalar_lea.sflag [#allocation4], 1
    %22 = vsyncpa %s21, 0
    loop: start=0, step=1, limit=4
    $region2: #{decoder_forward.1} parent=1 // loop_pre_header
      _
    $region3: #{decoder_forward.1} parent=1 // loop_header
      %s24 = sphi 0, %s28
      %p25 = scmp.ge.s32.totalorder %s24, 4
      %s34 = sphi 0, %s36
      %s37 = sphi 0, %s34
      %s38 = sphi 0, %s37
      %s54 = sphi 0, %s38
      %s60 = sphi 0, %s62
      %s63 = sphi 0, %s60
      %s64 = sphi 0, %s63
      %s80 = sphi 0, %s64
      %s84 = sphi 0, %s84
      %s86 = sphi 0, %s84
      %s87 = sphi 0, %s86
      %s101 = sphi 0, %s87
      %s105 = sphi 0, %s105
      %s107 = sphi 0, %s105
      %s108 = sphi 0, %s107
      %s122 = sphi 0, %s108
      %s126 = sphi 0, %s126
      %s128 = sphi 0, %s126
      %s129 = sphi 0, %s128
      %s143 = sphi 0, %s129
      %s147 = sphi 0, %s147
      %s149 = sphi 0, %s147
      %s150 = sphi 0, %s149
      %s164 = sphi 0, %s150
      %s168 = sphi 0, %s168
      %s170 = sphi 0, %s168
      %s171 = sphi 0, %s170
      %s185 = sphi 0, %s171
      %s189 = sphi 0, %s189
      %s191 = sphi 0, %s189
      %s192 = sphi 0, %s191
      %s206 = sphi 0, %s192
      %s210 = sphi 0, %s210
      %s212 = sphi 0, %s210
      %s213 = sphi 0, %s212
      %s227 = sphi 0, %s213
      %s231 = sphi 0, %s231
      %s233 = sphi 0, %s231
      %s234 = sphi 0, %s233
      %s248 = sphi 0, %s234
      %s252 = sphi 0, %s252
      %s254 = sphi 0, %s252
      %s255 = sphi 0, %s254
      %s269 = sphi 0, %s255
      %s273 = sphi 0, %s273
      %s275 = sphi 0, %s273
      %s276 = sphi 0, %s275
      %s290 = sphi 0, %s276
      %s296 = sphi 0, %s298
      %s299 = sphi 0, %s296
      %s300 = sphi 0, %s299
      %s316 = sphi 0, %s300
    $region4: #{decoder_forward.1} parent=1 // loop_header_branch
      %27 = sbr.rel (%p25) target = $region8
    $region5: #{decoder_forward.1} parent=1 // loop_body
      %s29 = ssub.s32 %s24, 1
      %s30 = ssub.s32 %s24, 2
      %s31 = sadd.s32 %s24, 1
      %s32 = ssub.s32 %s24, %s31
      %p33 = scmp.eq.s32.totalorder %s32, 0
      %s35 = sadd.s32 %s34, 1
      %s36 = scalar_select %p33, %s34, %s35
      %p39 = pneg %p33
      %p40 = scmp.eq.s32.totalorder %s24, 1
      %p41 = por %p39, %p40
      %p42 = scmp.ne.s32.totalorder %s34, %s37
      %p43 = scmp.eq.s32.totalorder %s24, 0
      %p44 = por %p42, %p43
      %p45 = scmp.ne.s32.totalorder %s34, %s37
      %p46 = scmp.eq.s32.totalorder %s29, 1
      %p47 = por %p45, %p46
      %p48 = scmp.ne.s32.totalorder %s37, %s38
      %p49 = scmp.eq.s32.totalorder %s29, 0
      %p50 = por %p48, %p49
      %p51 = scmp.ne.s32.totalorder %s37, %s38
      %p52 = scmp.eq.s32.totalorder %s30, 1
      %p53 = por %p51, %p52
      %p55 = scmp.ne.s32.totalorder %s38, %s54
      %p56 = scmp.eq.s32.totalorder %s30, 0
      %p57 = por %p55, %p56
      %s58 = ssub.s32 %s24, %s31
      %p59 = scmp.eq.s32.totalorder %s58, 0
      %s61 = sadd.s32 %s60, 1
      %s62 = scalar_select %p59, %s60, %s61
      %p65 = pneg %p59
      %p66 = scmp.eq.s32.totalorder %s24, 1
      %p67 = por %p65, %p66
      %p68 = scmp.ne.s32.totalorder %s60, %s63
      %p69 = scmp.eq.s32.totalorder %s24, 0
      %p70 = por %p68, %p69
      %p71 = scmp.ne.s32.totalorder %s60, %s63
      %p72 = scmp.eq.s32.totalorder %s29, 1
      %p73 = por %p71, %p72
      %p74 = scmp.ne.s32.totalorder %s63, %s64
      %p75 = scmp.eq.s32.totalorder %s29, 0
      %p76 = por %p74, %p75
      %p77 = scmp.ne.s32.totalorder %s63, %s64
      %p78 = scmp.eq.s32.totalorder %s30, 1
      %p79 = por %p77, %p78
      %p81 = scmp.ne.s32.totalorder %s64, %s80
      %p82 = scmp.eq.s32.totalorder %s30, 0
      %p83 = por %p81, %p82
      %s85 = sadd.s32 %s84, 1
      %p88 = scmp.eq.s32.totalorder %s24, 1
      %p89 = scmp.ne.s32.totalorder %s84, %s86
      %p90 = scmp.eq.s32.totalorder %s24, 0
      %p91 = por %p89, %p90
      %p92 = scmp.ne.s32.totalorder %s84, %s86
      %p93 = scmp.eq.s32.totalorder %s29, 1
      %p94 = por %p92, %p93
      %p95 = scmp.ne.s32.totalorder %s86, %s87
      %p96 = scmp.eq.s32.totalorder %s29, 0
      %p97 = por %p95, %p96
      %p98 = scmp.ne.s32.totalorder %s86, %s87
      %p99 = scmp.eq.s32.totalorder %s30, 1
      %p100 = por %p98, %p99
      %p102 = scmp.ne.s32.totalorder %s87, %s101
      %p103 = scmp.eq.s32.totalorder %s30, 0
      %p104 = por %p102, %p103
      %s106 = sadd.s32 %s105, 1
      %p109 = scmp.eq.s32.totalorder %s24, 1
      %p110 = scmp.ne.s32.totalorder %s105, %s107
      %p111 = scmp.eq.s32.totalorder %s24, 0
      %p112 = por %p110, %p111
      %p113 = scmp.ne.s32.totalorder %s105, %s107
      %p114 = scmp.eq.s32.totalorder %s29, 1
      %p115 = por %p113, %p114
      %p116 = scmp.ne.s32.totalorder %s107, %s108
      %p117 = scmp.eq.s32.totalorder %s29, 0
      %p118 = por %p116, %p117
      %p119 = scmp.ne.s32.totalorder %s107, %s108
      %p120 = scmp.eq.s32.totalorder %s30, 1
      %p121 = por %p119, %p120
      %p123 = scmp.ne.s32.totalorder %s108, %s122
      %p124 = scmp.eq.s32.totalorder %s30, 0
      %p125 = por %p123, %p124
      %s127 = sadd.s32 %s126, 1
      %p130 = scmp.eq.s32.totalorder %s24, 1
      %p131 = scmp.ne.s32.totalorder %s126, %s128
      %p132 = scmp.eq.s32.totalorder %s24, 0
      %p133 = por %p131, %p132
      %p134 = scmp.ne.s32.totalorder %s126, %s128
      %p135 = scmp.eq.s32.totalorder %s29, 1
      %p136 = por %p134, %p135
      %p137 = scmp.ne.s32.totalorder %s128, %s129
      %p138 = scmp.eq.s32.totalorder %s29, 0
      %p139 = por %p137, %p138
      %p140 = scmp.ne.s32.totalorder %s128, %s129
      %p141 = scmp.eq.s32.totalorder %s30, 1
      %p142 = por %p140, %p141
      %p144 = scmp.ne.s32.totalorder %s129, %s143
      %p145 = scmp.eq.s32.totalorder %s30, 0
      %p146 = por %p144, %p145
      %s148 = sadd.s32 %s147, 1
      %p151 = scmp.eq.s32.totalorder %s24, 1
      %p152 = scmp.ne.s32.totalorder %s147, %s149
      %p153 = scmp.eq.s32.totalorder %s24, 0
      %p154 = por %p152, %p153
      %p155 = scmp.ne.s32.totalorder %s147, %s149
      %p156 = scmp.eq.s32.totalorder %s29, 1
      %p157 = por %p155, %p156
      %p158 = scmp.ne.s32.totalorder %s149, %s150
      %p159 = scmp.eq.s32.totalorder %s29, 0
      %p160 = por %p158, %p159
      %p161 = scmp.ne.s32.totalorder %s149, %s150
      %p162 = scmp.eq.s32.totalorder %s30, 1
      %p163 = por %p161, %p162
      %p165 = scmp.ne.s32.totalorder %s150, %s164
      %p166 = scmp.eq.s32.totalorder %s30, 0
      %p167 = por %p165, %p166
      %s169 = sadd.s32 %s168, 1
      %p172 = scmp.eq.s32.totalorder %s24, 1
      %p173 = scmp.ne.s32.totalorder %s168, %s170
      %p174 = scmp.eq.s32.totalorder %s24, 0
      %p175 = por %p173, %p174
      %p176 = scmp.ne.s32.totalorder %s168, %s170
      %p177 = scmp.eq.s32.totalorder %s29, 1
      %p178 = por %p176, %p177
      %p179 = scmp.ne.s32.totalorder %s170, %s171
      %p180 = scmp.eq.s32.totalorder %s29, 0
      %p181 = por %p179, %p180
      %p182 = scmp.ne.s32.totalorder %s170, %s171
      %p183 = scmp.eq.s32.totalorder %s30, 1
      %p184 = por %p182, %p183
      %p186 = scmp.ne.s32.totalorder %s171, %s185
      %p187 = scmp.eq.s32.totalorder %s30, 0
      %p188 = por %p186, %p187
      %s190 = sadd.s32 %s189, 1
      %p193 = scmp.eq.s32.totalorder %s24, 1
      %p194 = scmp.ne.s32.totalorder %s189, %s191
      %p195 = scmp.eq.s32.totalorder %s24, 0
      %p196 = por %p194, %p195
      %p197 = scmp.ne.s32.totalorder %s189, %s191
      %p198 = scmp.eq.s32.totalorder %s29, 1
      %p199 = por %p197, %p198
      %p200 = scmp.ne.s32.totalorder %s191, %s192
      %p201 = scmp.eq.s32.totalorder %s29, 0
      %p202 = por %p200, %p201
      %p203 = scmp.ne.s32.totalorder %s191, %s192
      %p204 = scmp.eq.s32.totalorder %s30, 1
      %p205 = por %p203, %p204
      %p207 = scmp.ne.s32.totalorder %s192, %s206
      %p208 = scmp.eq.s32.totalorder %s30, 0
      %p209 = por %p207, %p208
      %s211 = sadd.s32 %s210, 1
      %p214 = scmp.eq.s32.totalorder %s24, 1
      %p215 = scmp.ne.s32.totalorder %s210, %s212
      %p216 = scmp.eq.s32.totalorder %s24, 0
      %p217 = por %p215, %p216
      %p218 = scmp.ne.s32.totalorder %s210, %s212
      %p219 = scmp.eq.s32.totalorder %s29, 1
      %p220 = por %p218, %p219
      %p221 = scmp.ne.s32.totalorder %s212, %s213
      %p222 = scmp.eq.s32.totalorder %s29, 0
      %p223 = por %p221, %p222
      %p224 = scmp.ne.s32.totalorder %s212, %s213
      %p225 = scmp.eq.s32.totalorder %s30, 1
      %p226 = por %p224, %p225
      %p228 = scmp.ne.s32.totalorder %s213, %s227
      %p229 = scmp.eq.s32.totalorder %s30, 0
      %p230 = por %p228, %p229
      %s232 = sadd.s32 %s231, 1
      %p235 = scmp.eq.s32.totalorder %s24, 1
      %p236 = scmp.ne.s32.totalorder %s231, %s233
      %p237 = scmp.eq.s32.totalorder %s24, 0
      %p238 = por %p236, %p237
      %p239 = scmp.ne.s32.totalorder %s231, %s233
      %p240 = scmp.eq.s32.totalorder %s29, 1
      %p241 = por %p239, %p240
      %p242 = scmp.ne.s32.totalorder %s233, %s234
      %p243 = scmp.eq.s32.totalorder %s29, 0
      %p244 = por %p242, %p243
      %p245 = scmp.ne.s32.totalorder %s233, %s234
      %p246 = scmp.eq.s32.totalorder %s30, 1
      %p247 = por %p245, %p246
      %p249 = scmp.ne.s32.totalorder %s234, %s248
      %p250 = scmp.eq.s32.totalorder %s30, 0
      %p251 = por %p249, %p250
      %s253 = sadd.s32 %s252, 1
      %p256 = scmp.eq.s32.totalorder %s24, 1
      %p257 = scmp.ne.s32.totalorder %s252, %s254
      %p258 = scmp.eq.s32.totalorder %s24, 0
      %p259 = por %p257, %p258
      %p260 = scmp.ne.s32.totalorder %s252, %s254
      %p261 = scmp.eq.s32.totalorder %s29, 1
      %p262 = por %p260, %p261
      %p263 = scmp.ne.s32.totalorder %s254, %s255
      %p264 = scmp.eq.s32.totalorder %s29, 0
      %p265 = por %p263, %p264
      %p266 = scmp.ne.s32.totalorder %s254, %s255
      %p267 = scmp.eq.s32.totalorder %s30, 1
      %p268 = por %p266, %p267
      %p270 = scmp.ne.s32.totalorder %s255, %s269
      %p271 = scmp.eq.s32.totalorder %s30, 0
      %p272 = por %p270, %p271
      %s274 = sadd.s32 %s273, 1
      %p277 = scmp.eq.s32.totalorder %s24, 1
      %p278 = scmp.ne.s32.totalorder %s273, %s275
      %p279 = scmp.eq.s32.totalorder %s24, 0
      %p280 = por %p278, %p279
      %p281 = scmp.ne.s32.totalorder %s273, %s275
      %p282 = scmp.eq.s32.totalorder %s29, 1
      %p283 = por %p281, %p282
      %p284 = scmp.ne.s32.totalorder %s275, %s276
      %p285 = scmp.eq.s32.totalorder %s29, 0
      %p286 = por %p284, %p285
      %p287 = scmp.ne.s32.totalorder %s275, %s276
      %p288 = scmp.eq.s32.totalorder %s30, 1
      %p289 = por %p287, %p288
      %p291 = scmp.ne.s32.totalorder %s276, %s290
      %p292 = scmp.eq.s32.totalorder %s30, 0
      %p293 = por %p291, %p292
      %s294 = ssub.s32 %s24, %s31
      %p295 = scmp.eq.s32.totalorder %s294, 0
      %s297 = sadd.s32 %s296, 1
      %s298 = scalar_select %p295, %s296, %s297
      %p301 = pneg %p295
      %p302 = scmp.eq.s32.totalorder %s24, 1
      %p303 = por %p301, %p302
      %p304 = scmp.ne.s32.totalorder %s296, %s299
      %p305 = scmp.eq.s32.totalorder %s24, 0
      %p306 = por %p304, %p305
      %p307 = scmp.ne.s32.totalorder %s296, %s299
      %p308 = scmp.eq.s32.totalorder %s29, 1
      %p309 = por %p307, %p308
      %p310 = scmp.ne.s32.totalorder %s299, %s300
      %p311 = scmp.eq.s32.totalorder %s29, 0
      %p312 = por %p310, %p311
      %p313 = scmp.ne.s32.totalorder %s299, %s300
      %p314 = scmp.eq.s32.totalorder %s30, 1
      %p315 = por %p313, %p314
      %p317 = scmp.ne.s32.totalorder %s300, %s316
      %p318 = scmp.eq.s32.totalorder %s30, 0
      %p319 = por %p317, %p318
      %p320 = scmp.le.s32.totalorder 1, %s24
      %p321 = scmp.lt.s32.totalorder %s24, 3
      %p322 = pnand %p320, %p321
      %p323 = pneg %p322
      // Predicated region
      $region9: #{decoder_forward.1} parent=5 // pred_check
        _
      $region10: #{decoder_forward.1} parent=5 // pred_check_branch
        %325 = sbr.rel (%p322) target = $region12
      $region11: #{decoder_forward.1} parent=5 // pred_region
        %s326 = ssub.s32 %s24, 1
        // Predicated region
        $region13: #{decoder_forward.1} parent=11 // pred_check
          %p327 = pneg %p97
        $region14: #{decoder_forward.1} parent=11 // pred_check_branch
          %329 = sbr.rel (%p327) target = $region16
        $region15: #{decoder_forward.1} parent=11 // pred_region
          _
        $region16: #{decoder_forward.1} parent=11 // pred_fallthru
          _
        // Predicated region
        $region17: #{decoder_forward.1} parent=11 // pred_check
          %p330 = pneg %p118
        $region18: #{decoder_forward.1} parent=11 // pred_check_branch
          %332 = sbr.rel (%p330) target = $region20
        $region19: #{decoder_forward.1} parent=11 // pred_region
          _
        $region20: #{decoder_forward.1} parent=11 // pred_fallthru
          _
        // Predicated region
        $region21: #{decoder_forward.1} parent=11 // pred_check
          %p333 = pneg %p139
        $region22: #{decoder_forward.1} parent=11 // pred_check_branch
          %335 = sbr.rel (%p333) target = $region24
        $region23: #{decoder_forward.1} parent=11 // pred_region
          %s337 = ssub.s32 4096, 4096
          %338 = vsyncadd [#allocation3], %s337
          %s339 = sshll.u32 [#allocation2], 4
          %s340 = int_to_ptr.vmem [resolvable:$true] %s339
          %345 = dma.hbm_to_vmem [thread:$0]  %s4, 4096, %s340, [#allocation3], 128, 128, 8
        $region24: #{decoder_forward.1} parent=11 // pred_fallthru
          _
        // Predicated region
        $region25: #{decoder_forward.1} parent=11 // pred_check
          %p346 = pneg %p160
        $region26: #{decoder_forward.1} parent=11 // pred_check_branch
          %348 = sbr.rel (%p346) target = $region28
        $region27: #{decoder_forward.1} parent=11 // pred_region
          _
        $region28: #{decoder_forward.1} parent=11 // pred_fallthru
          _
        // Predicated region
        $region29: #{decoder_forward.1} parent=11 // pred_check
          %p349 = pneg %p181
        $region30: #{decoder_forward.1} parent=11 // pred_check_branch
          %351 = sbr.rel (%p349) target = $region32
        $region31: #{decoder_forward.1} parent=11 // pred_region
          _
        $region32: #{decoder_forward.1} parent=11 // pred_fallthru
          _
        // Predicated region
        $region33: #{decoder_forward.1} parent=11 // pred_check
          %p352 = pneg %p202
        $region34: #{decoder_forward.1} parent=11 // pred_check_branch
          %354 = sbr.rel (%p352) target = $region36
        $region35: #{decoder_forward.1} parent=11 // pred_region
          _
        $region36: #{decoder_forward.1} parent=11 // pred_fallthru
          _
        // Predicated region
        $region37: #{decoder_forward.1} parent=11 // pred_check
          %p355 = pneg %p223
        $region38: #{decoder_forward.1} parent=11 // pred_check_branch
          %357 = sbr.rel (%p355) target = $region40
        $region39: #{decoder_forward.1} parent=11 // pred_region
          _
        $region40: #{decoder_forward.1} parent=11 // pred_fallthru
          _
        // Predicated region
        $region41: #{decoder_forward.1} parent=11 // pred_check
          %p358 = pneg %p244
        $region42: #{decoder_forward.1} parent=11 // pred_check_branch
          %360 = sbr.rel (%p358) target = $region44
        $region43: #{decoder_forward.1} parent=11 // pred_region
          %s362 = ssub.s32 16, 16
          %363 = vsyncadd [#allocation6], %s362
          %s365 = sshll.u32 [#allocation5], 4
          %s366 = int_to_ptr.vmem [resolvable:$true] %s365
          %368 = dma.hbm_to_vmem [thread:$0]  %s9, 16, %s366, [#allocation6]
        $region44: #{decoder_forward.1} parent=11 // pred_fallthru
          _
        // Predicated region
        $region45: #{decoder_forward.1} parent=11 // pred_check
          %p369 = pneg %p265
        $region46: #{decoder_forward.1} parent=11 // pred_check_branch
          %371 = sbr.rel (%p369) target = $region48
        $region47: #{decoder_forward.1} parent=11 // pred_region
          %s373 = ssub.s32 128, 128
          %374 = vsyncadd [#allocation6], %s373
          %s376 = sshll.u32 [#allocation7], 4
          %s377 = int_to_ptr.vmem [resolvable:$true] %s376
          %379 = dma.hbm_to_vmem [thread:$0]  %s10, 128, %s377, [#allocation6]
        $region48: #{decoder_forward.1} parent=11 // pred_fallthru
          _
        // Predicated region
        $region49: #{decoder_forward.1} parent=11 // pred_check
          %p380 = pneg %p286
        $region50: #{decoder_forward.1} parent=11 // pred_check_branch
          %382 = sbr.rel (%p380) target = $region52
        $region51: #{decoder_forward.1} parent=11 // pred_region
          %s384 = ssub.s32 32, 32
          %385 = vsyncadd [#allocation9], %s384
          %s387 = sshll.u32 [#allocation8], 4
          %s388 = int_to_ptr.vmem [resolvable:$true] %s387
          %390 = dma.hbm_to_vmem [thread:$0]  %s11, 32, %s388, [#allocation9]
        $region52: #{decoder_forward.1} parent=11 // pred_fallthru
          _
      $region12: #{decoder_forward.1} parent=5 // pred_fallthru
        _
      %p391 = scmp.lt.s32.totalorder %s24, 2
      // Predicated region
      $region53: #{decoder_forward.1} parent=5 // pred_check
        %p392 = pneg %p391
      $region54: #{decoder_forward.1} parent=5 // pred_check_branch
        %394 = sbr.rel (%p392) target = $region56
      $region55: #{decoder_forward.1} parent=5 // pred_region
        // Predicated region
        $region57: #{decoder_forward.1} parent=55 // pred_check
          %p395 = pneg %p44
        $region58: #{decoder_forward.1} parent=55 // pred_check_branch
          %397 = sbr.rel (%p395) target = $region60
        $region59: #{decoder_forward.1} parent=55 // pred_region
          %p398 = scmp.lt.s32.totalorder %s24, 1
          %s399 = scalar_select %p398, %s24, 1
          %s400 = smul.addr %s399, 8
          %s401 = scalar_lea.vmem %s0, %s400
        $region60: #{decoder_forward.1} parent=55 // pred_fallthru
          _
        // Predicated region
        $region61: #{decoder_forward.1} parent=55 // pred_check
          %p402 = pneg %p70
        $region62: #{decoder_forward.1} parent=55 // pred_check_branch
          %404 = sbr.rel (%p402) target = $region64
        $region63: #{decoder_forward.1} parent=55 // pred_region
          %p405 = scmp.lt.s32.totalorder %s24, 1
          %s406 = scalar_select %p405, %s24, 1
          %s407 = smul.addr %s406, 2
          %s408 = smul.addr %s407, 8
          %s409 = scalar_lea.vmem %s1, %s408
        $region64: #{decoder_forward.1} parent=55 // pred_fallthru
          _
      $region56: #{decoder_forward.1} parent=5 // pred_fallthru
        _
      %p410 = scmp.le.s32.totalorder 1, %s24
      %p411 = scmp.lt.s32.totalorder %s24, 3
      %p412 = pnand %p410, %p411
      %p413 = pneg %p412
      // Predicated region
      $region65: #{decoder_forward.1} parent=5 // pred_check
        _
      $region66: #{decoder_forward.1} parent=5 // pred_check_branch
        %415 = sbr.rel (%p412) target = $region68
      $region67: #{decoder_forward.1} parent=5 // pred_region
        %s416 = ssub.s32 %s24, 1
        // Predicated region
        $region69: #{decoder_forward.1} parent=67 // pred_check
          %p417 = pneg %p139
        $region70: #{decoder_forward.1} parent=67 // pred_check_branch
          %419 = sbr.rel (%p417) target = $region72
        $region71: #{decoder_forward.1} parent=67 // pred_region
          %420 = dma.done [#allocation3], 4096
        $region72: #{decoder_forward.1} parent=67 // pred_fallthru
          _
        // Predicated region
        $region73: #{decoder_forward.1} parent=67 // pred_check
          %p421 = pneg %p244
        $region74: #{decoder_forward.1} parent=67 // pred_check_branch
          %423 = sbr.rel (%p421) target = $region76
        $region75: #{decoder_forward.1} parent=67 // pred_region
          %424 = dma.done [#allocation6], 16
        $region76: #{decoder_forward.1} parent=67 // pred_fallthru
          _
        // Predicated region
        $region77: #{decoder_forward.1} parent=67 // pred_check
          %p425 = pneg %p265
        $region78: #{decoder_forward.1} parent=67 // pred_check_branch
          %427 = sbr.rel (%p425) target = $region80
        $region79: #{decoder_forward.1} parent=67 // pred_region
          %428 = dma.done [#allocation6], 128
        $region80: #{decoder_forward.1} parent=67 // pred_fallthru
          _
        // Predicated region
        $region81: #{decoder_forward.1} parent=67 // pred_check
          %p429 = pneg %p286
        $region82: #{decoder_forward.1} parent=67 // pred_check_branch
          %431 = sbr.rel (%p429) target = $region84
        $region83: #{decoder_forward.1} parent=67 // pred_region
          %432 = dma.done [#allocation9], 32
        $region84: #{decoder_forward.1} parent=67 // pred_fallthru
          _
        %p433 = scmp.lt.s32.totalorder %s29, 1
        %s434 = scalar_select %p433, %s29, 1
        %s435 = smul.addr %s434, 8
        %s436 = scalar_lea.vmem %s0, %s435
        %p437 = pneg %p50
        %p438 = pneg %p47
        %p439 = scmp.lt.s32.totalorder %s29, 1
        %s440 = scalar_select %p439, %s29, 1
        %s441 = smul.addr %s440, 2
        %s442 = smul.addr %s441, 8
        %s443 = scalar_lea.vmem %s1, %s442
        %p444 = pneg %p76
        %p445 = pneg %p73
        %p446 = pneg %p97
        %p447 = pneg %p94
        %p448 = pneg %p118
        %p449 = pneg %p115
        %p450 = pneg %p139
        %p451 = pneg %p136
        %p452 = pneg %p160
        %p453 = pneg %p157
        %p454 = pneg %p181
        %p455 = pneg %p178
        %p456 = pneg %p202
        %p457 = pneg %p199
        %p458 = pneg %p223
        %p459 = pneg %p220
        %p460 = pneg %p244
        %p461 = pneg %p241
        %p462 = pneg %p265
        %p463 = pneg %p262
        %p464 = pneg %p286
        %p465 = pneg %p283
        %p466 = pneg %p312
        %p467 = pneg %p309
        %s468 = sand.u32 %s299, 1
        %s469 = scalar_lea.sflag [#allocation4], %s468
        %s470 = sand.u32 %s299, 1
        %s471 = smul.addr %s470, 8
        %s472 = scalar_lea.vmem [#allocation10], %s471
        %p473 = scmp.lt.s32.totalorder %s29, 1
        %s474 = scalar_select %p473, %s29, 1
        %s475 = smul.addr %s474, 8
        %s476 = scalar_lea.vmem %s0, %s475
        %p477 = scmp.lt.s32.totalorder %s29, 1
        %s478 = scalar_select %p477, %s29, 1
        %s479 = smul.addr %s478, 2
        %s480 = smul.addr %s479, 8
        %s481 = scalar_lea.vmem %s1, %s480
        %v482 = vld [vmem:[%s476] sm:$0xff]
        %v483 = vld [vmem:[%s481] sm:$0xff]
        %v484 = vld [vmem:[%s481 + $0x8] sm:$0xff]
        %v485 = vld [vmem:[%s2] sm:$0xff]
        %v486 = vld [vmem:[%s3] sm:$0xff]
        loop: start=0, step=1, limit=2
        $region85: #{decoder_forward.1} parent=67 // loop_pre_header
          _
        $region86: #{decoder_forward.1} parent=67 // loop_header
          %s488 = sphi 0, %s492
          %p489 = scmp.ge.s32.totalorder %s488, 2
          %v493 = vphi %v482, %v3199
        $region87: #{decoder_forward.1} parent=67 // loop_header_branch
          %491 = sbr.rel (%p489) target = $region91
        $region88: #{decoder_forward.1} parent=67 // loop_body
          %v494 = vld [vmem:[#allocation2] sm:$0xff]
          %v495 = vld [vmem:[#allocation2 + $0x8] sm:$0xff]
          %v496 = vld [vmem:[#allocation2 + $0x10] sm:$0xff]
          %v497 = vld [vmem:[#allocation2 + $0x18] sm:$0xff]
          %s498 = scalar_lea.vmem [#allocation2], 32
          %v499 = vld [vmem:[%s498] sm:$0xff]
          %v500 = vld [vmem:[%s498 + $0x8] sm:$0xff]
          %v501 = vld [vmem:[%s498 + $0x10] sm:$0xff]
          %v502 = vld [vmem:[%s498 + $0x18] sm:$0xff]
          %s503 = scalar_lea.vmem [#allocation2], 64
          %v504 = vld [vmem:[%s503] sm:$0xff]
          %v505 = vld [vmem:[%s503 + $0x8] sm:$0xff]
          %v506 = vld [vmem:[%s503 + $0x10] sm:$0xff]
          %v507 = vld [vmem:[%s503 + $0x18] sm:$0xff]
          %s508 = scalar_lea.vmem [#allocation2], 96
          %v509 = vld [vmem:[%s508] sm:$0xff]
          %v510 = vld [vmem:[%s508 + $0x8] sm:$0xff]
          %v511 = vld [vmem:[%s508 + $0x10] sm:$0xff]
          %v512 = vld [vmem:[%s508 + $0x18] sm:$0xff]
          %v513 = vld [vmem:[%s5] sm:$0x1]
          %v514 = vld [vmem:[%s5 + $0x1] sm:$0x1]
          %v515 = vld [vmem:[%s5 + $0x2] sm:$0x1]
          %v516 = vld [vmem:[%s5 + $0x3] sm:$0x1]
          %v517 = vlaneseq
          %v518 = vshrl.u32 %v517, 7
          %v519 = vsub.s32 0, %v518
          %v520 = vrot.slane %v513, %v519
          %vm521 = vcmask 261120
          %v523 = vsel %vm521, %v493, 0
          %525 = vmatprep.subr.mxu0 0.0
          %526 = vmatpush1.msra.mxu0 %v494
          %527 = vmatprep.subr.mxu0 0.0
          %528 = vmatpush1.msra.mxu0 %v495
          %529 = vmatprep.subr.mxu0 0.0
          %530 = vmatpush1.msra.mxu0 %v496
          %531 = vmatprep.subr.mxu0 0.0
          %532 = vmatpush1.msra.mxu0 %v497
          %533 = vmatprep.subr.mxu0 0.0
          %534 = vmatpush1.msra.mxu0 0.0
          %535 = vmatprep.subr.mxu0 0.0
          %536 = vmatpush1.msra.mxu0 0.0
          %537 = vmatprep.subr.mxu0 0.0
          %538 = vmatpush1.msra.mxu0 0.0
          %539 = vmatprep.subr.mxu0 0.0
          %540 = vmatpush1.msra.mxu0 0.0
          %541 = vmatprep.subr.mxu0 0.0
          %542 = vmatpush1.msra.mxu0 0.0
          %543 = vmatprep.subr.mxu0 0.0
          %544 = vmatpush1.msra.mxu0 0.0
          %545 = vmatprep.subr.mxu0 0.0
          %546 = vmatpush1.msra.mxu0 0.0
          %547 = vmatprep.subr.mxu0 0.0
          %548 = vmatpush1.msra.mxu0 0.0
          %549 = vmatprep.subr.mxu0 0.0
          %550 = vmatpush1.msra.mxu0 0.0
          %551 = vmatprep.subr.mxu0 0.0
          %552 = vmatpush1.msra.mxu0 0.0
          %553 = vmatprep.subr.mxu0 0.0
          %554 = vmatpush1.msra.mxu0 0.0
          %555 = vmatprep.subr.mxu0 0.0
          %556 = vmatpush1.msra.mxu0 0.0
          %557 = vmatprep.subr.mxu0 0.0
          %558 = vmatpush1.msra.mxu0 0.0
          %559 = vmatprep.subr.mxu0 0.0
          %560 = vmatpush1.msra.mxu0 0.0
          %561 = vmatprep.subr.mxu0 0.0
          %562 = vmatpush1.msra.mxu0 0.0
          %563 = vmatprep.subr.mxu0 0.0
          %564 = vmatpush1.msra.mxu0 0.0
          %565 = vmatprep.subr.mxu0 0.0
          %566 = vmatpush1.msra.mxu0 0.0
          %567 = vmatprep.subr.mxu0 0.0
          %568 = vmatpush1.msra.mxu0 0.0
          %569 = vmatprep.subr.mxu0 0.0
          %570 = vmatpush1.msra.mxu0 0.0
          %571 = vmatprep.subr.mxu0 0.0
          %572 = vmatpush1.msra.mxu0 0.0
          %573 = vmatprep.subr.mxu0 0.0
          %574 = vmatpush1.msra.mxu0 0.0
          %575 = vmatprep.subr.mxu0 0.0
          %576 = vmatpush1.msra.mxu0 0.0
          %577 = vmatprep.subr.mxu0 0.0
          %578 = vmatpush1.msra.mxu0 0.0
          %579 = vmatprep.subr.mxu0 0.0
          %580 = vmatpush1.msra.mxu0 0.0
          %581 = vmatprep.subr.mxu0 0.0
          %582 = vmatpush1.msra.mxu0 0.0
          %583 = vmatprep.subr.mxu0 0.0
          %584 = vmatpush1.msra.mxu0 0.0
          %585 = vmatprep.subr.mxu0 0.0
          %586 = vmatpush1.msra.mxu0 0.0
          %587 = vmatprep.subr.mxu0 0.0
          %588 = vmatpush1.msra.mxu0 0.0
          %589 = vmatprep.mubr.f32.mxu0 0.0
          %590 = vmatmul.mubr.f32.gmra.mrb[0].mxu0 %v523
          %v591 = vpop.f32.mrb[0].mxu0
          %v592 = vadd.f32 %v520, %v591
          %v593 = vpop.f32.mrb[0].mxu0
          %594 = vdwg.mxu0
          %v595 = vmul.f32 %v592, 0.35355338
          %v596 = vlaneseq
          %v597 = vshrl.u32 %v596, 7
          %v598 = vsub.s32 0, %v597
          %v599 = vrot.slane %v514, %v598
          %600 = vmatprep.subr.mxu0 0.0
          %601 = vmatpush1.msra.mxu0 %v499
          %602 = vmatprep.subr.mxu0 0.0
          %603 = vmatpush1.msra.mxu0 %v500
          %604 = vmatprep.subr.mxu0 0.0
          %605 = vmatpush1.msra.mxu0 %v501
          %606 = vmatprep.subr.mxu0 0.0
          %607 = vmatpush1.msra.mxu0 %v502
          %608 = vmatprep.subr.mxu0 0.0
          %609 = vmatpush1.msra.mxu0 0.0
          %610 = vmatprep.subr.mxu0 0.0
          %611 = vmatpush1.msra.mxu0 0.0
          %612 = vmatprep.subr.mxu0 0.0
          %613 = vmatpush1.msra.mxu0 0.0
          %614 = vmatprep.subr.mxu0 0.0
          %615 = vmatpush1.msra.mxu0 0.0
          %616 = vmatprep.subr.mxu0 0.0
          %617 = vmatpush1.msra.mxu0 0.0
          %618 = vmatprep.subr.mxu0 0.0
          %619 = vmatpush1.msra.mxu0 0.0
          %620 = vmatprep.subr.mxu0 0.0
          %621 = vmatpush1.msra.mxu0 0.0
          %622 = vmatprep.subr.mxu0 0.0
          %623 = vmatpush1.msra.mxu0 0.0
          %624 = vmatprep.subr.mxu0 0.0
          %625 = vmatpush1.msra.mxu0 0.0
          %626 = vmatprep.subr.mxu0 0.0
          %627 = vmatpush1.msra.mxu0 0.0
          %628 = vmatprep.subr.mxu0 0.0
          %629 = vmatpush1.msra.mxu0 0.0
          %630 = vmatprep.subr.mxu0 0.0
          %631 = vmatpush1.msra.mxu0 0.0
          %632 = vmatprep.subr.mxu0 0.0
          %633 = vmatpush1.msra.mxu0 0.0
          %634 = vmatprep.subr.mxu0 0.0
          %635 = vmatpush1.msra.mxu0 0.0
          %636 = vmatprep.subr.mxu0 0.0
          %637 = vmatpush1.msra.mxu0 0.0
          %638 = vmatprep.subr.mxu0 0.0
          %639 = vmatpush1.msra.mxu0 0.0
          %640 = vmatprep.subr.mxu0 0.0
          %641 = vmatpush1.msra.mxu0 0.0
          %642 = vmatprep.subr.mxu0 0.0
          %643 = vmatpush1.msra.mxu0 0.0
          %644 = vmatprep.subr.mxu0 0.0
          %645 = vmatpush1.msra.mxu0 0.0
          %646 = vmatprep.subr.mxu0 0.0
          %647 = vmatpush1.msra.mxu0 0.0
          %648 = vmatprep.subr.mxu0 0.0
          %649 = vmatpush1.msra.mxu0 0.0
          %650 = vmatprep.subr.mxu0 0.0
          %651 = vmatpush1.msra.mxu0 0.0
          %652 = vmatprep.subr.mxu0 0.0
          %653 = vmatpush1.msra.mxu0 0.0
          %654 = vmatprep.subr.mxu0 0.0
          %655 = vmatpush1.msra.mxu0 0.0
          %656 = vmatprep.subr.mxu0 0.0
          %657 = vmatpush1.msra.mxu0 0.0
          %658 = vmatprep.subr.mxu0 0.0
          %659 = vmatpush1.msra.mxu0 0.0
          %660 = vmatprep.subr.mxu0 0.0
          %661 = vmatpush1.msra.mxu0 0.0
          %662 = vmatprep.subr.mxu0 0.0
          %663 = vmatpush1.msra.mxu0 0.0
          %664 = vmatprep.mubr.f32.mxu0 0.0
          %665 = vmatmul.mubr.f32.gmra.mrb[0].mxu0 %v523
          %v666 = vpop.f32.mrb[0].mxu0
          %v667 = vadd.f32 %v599, %v666
          %v668 = vpop.f32.mrb[0].mxu0
          %669 = vdwg.mxu0
          %v670 = vlaneseq
          %v671 = vshrl.u32 %v670, 7
          %v672 = vsub.s32 0, %v671
          %v673 = vrot.slane %v515, %v672
          %674 = vmatprep.subr.mxu0 0.0
          %675 = vmatpush1.msra.mxu0 %v504
          %676 = vmatprep.subr.mxu0 0.0
          %677 = vmatpush1.msra.mxu0 %v505
          %678 = vmatprep.subr.mxu0 0.0
          %679 = vmatpush1.msra.mxu0 %v506
          %680 = vmatprep.subr.mxu0 0.0
          %681 = vmatpush1.msra.mxu0 %v507
          %682 = vmatprep.subr.mxu0 0.0
          %683 = vmatpush1.msra.mxu0 0.0
          %684 = vmatprep.subr.mxu0 0.0
          %685 = vmatpush1.msra.mxu0 0.0
          %686 = vmatprep.subr.mxu0 0.0
          %687 = vmatpush1.msra.mxu0 0.0
          %688 = vmatprep.subr.mxu0 0.0
          %689 = vmatpush1.msra.mxu0 0.0
          %690 = vmatprep.subr.mxu0 0.0
          %691 = vmatpush1.msra.mxu0 0.0
          %692 = vmatprep.subr.mxu0 0.0
          %693 = vmatpush1.msra.mxu0 0.0
          %694 = vmatprep.subr.mxu0 0.0
          %695 = vmatpush1.msra.mxu0 0.0
          %696 = vmatprep.subr.mxu0 0.0
          %697 = vmatpush1.msra.mxu0 0.0
          %698 = vmatprep.subr.mxu0 0.0
          %699 = vmatpush1.msra.mxu0 0.0
          %700 = vmatprep.subr.mxu0 0.0
          %701 = vmatpush1.msra.mxu0 0.0
          %702 = vmatprep.subr.mxu0 0.0
          %703 = vmatpush1.msra.mxu0 0.0
          %704 = vmatprep.subr.mxu0 0.0
          %705 = vmatpush1.msra.mxu0 0.0
          %706 = vmatprep.subr.mxu0 0.0
          %707 = vmatpush1.msra.mxu0 0.0
          %708 = vmatprep.subr.mxu0 0.0
          %709 = vmatpush1.msra.mxu0 0.0
          %710 = vmatprep.subr.mxu0 0.0
          %711 = vmatpush1.msra.mxu0 0.0
          %712 = vmatprep.subr.mxu0 0.0
          %713 = vmatpush1.msra.mxu0 0.0
          %714 = vmatprep.subr.mxu0 0.0
          %715 = vmatpush1.msra.mxu0 0.0
          %716 = vmatprep.subr.mxu0 0.0
          %717 = vmatpush1.msra.mxu0 0.0
          %718 = vmatprep.subr.mxu0 0.0
          %719 = vmatpush1.msra.mxu0 0.0
          %720 = vmatprep.subr.mxu0 0.0
          %721 = vmatpush1.msra.mxu0 0.0
          %722 = vmatprep.subr.mxu0 0.0
          %723 = vmatpush1.msra.mxu0 0.0
          %724 = vmatprep.subr.mxu0 0.0
          %725 = vmatpush1.msra.mxu0 0.0
          %726 = vmatprep.subr.mxu0 0.0
          %727 = vmatpush1.msra.mxu0 0.0
          %728 = vmatprep.subr.mxu0 0.0
          %729 = vmatpush1.msra.mxu0 0.0
          %730 = vmatprep.subr.mxu0 0.0
          %731 = vmatpush1.msra.mxu0 0.0
          %732 = vmatprep.subr.mxu0 0.0
          %733 = vmatpush1.msra.mxu0 0.0
          %734 = vmatprep.subr.mxu0 0.0
          %735 = vmatpush1.msra.mxu0 0.0
          %736 = vmatprep.subr.mxu0 0.0
          %737 = vmatpush1.msra.mxu0 0.0
          %738 = vmatprep.mubr.f32.mxu0 0.0
          %739 = vmatmul.mubr.f32.gmra.mrb[0].mxu0 %v523
          %v740 = vpop.f32.mrb[0].mxu0
          %v741 = vadd.f32 %v673, %v740
          %v742 = vpop.f32.mrb[0].mxu0
          %743 = vdwg.mxu0
          %vm744 = vcmask 64512
          %v746 = vsel %vm744, %v595, 0
          %v749 = vsel %vm744, %v667, 0
          %751 = vmatprep.subr.mxu0 0.0
          %752 = vmatpush1.xpose.msra.mxu0 %v749
          %753 = vmatprep.subr.mxu0 0.0
          %754 = vmatpush1.xpose.msra.mxu0 0.0
          %755 = vmatprep.subr.mxu0 0.0
          %756 = vmatpush1.xpose.msra.mxu0 0.0
          %757 = vmatprep.subr.mxu0 0.0
          %758 = vmatpush1.xpose.msra.mxu0 0.0
          %759 = vmatprep.subr.mxu0 0.0
          %760 = vmatpush1.xpose.msra.mxu0 0.0
          %761 = vmatprep.subr.mxu0 0.0
          %762 = vmatpush1.xpose.msra.mxu0 0.0
          %763 = vmatprep.subr.mxu0 0.0
          %764 = vmatpush1.xpose.msra.mxu0 0.0
          %765 = vmatprep.subr.mxu0 0.0
          %766 = vmatpush1.xpose.msra.mxu0 0.0
          %767 = vmatprep.subr.mxu0 0.0
          %768 = vmatpush1.xpose.msra.mxu0 0.0
          %769 = vmatprep.subr.mxu0 0.0
          %770 = vmatpush1.xpose.msra.mxu0 0.0
          %771 = vmatprep.subr.mxu0 0.0
          %772 = vmatpush1.xpose.msra.mxu0 0.0
          %773 = vmatprep.subr.mxu0 0.0
          %774 = vmatpush1.xpose.msra.mxu0 0.0
          %775 = vmatprep.subr.mxu0 0.0
          %776 = vmatpush1.xpose.msra.mxu0 0.0
          %777 = vmatprep.subr.mxu0 0.0
          %778 = vmatpush1.xpose.msra.mxu0 0.0
          %779 = vmatprep.subr.mxu0 0.0
          %780 = vmatpush1.xpose.msra.mxu0 0.0
          %781 = vmatprep.subr.mxu0 0.0
          %782 = vmatpush1.xpose.msra.mxu0 0.0
          %783 = vmatprep.subr.mxu0 0.0
          %784 = vmatpush1.xpose.msra.mxu0 0.0
          %785 = vmatprep.subr.mxu0 0.0
          %786 = vmatpush1.xpose.msra.mxu0 0.0
          %787 = vmatprep.subr.mxu0 0.0
          %788 = vmatpush1.xpose.msra.mxu0 0.0
          %789 = vmatprep.subr.mxu0 0.0
          %790 = vmatpush1.xpose.msra.mxu0 0.0
          %791 = vmatprep.subr.mxu0 0.0
          %792 = vmatpush1.xpose.msra.mxu0 0.0
          %793 = vmatprep.subr.mxu0 0.0
          %794 = vmatpush1.xpose.msra.mxu0 0.0
          %795 = vmatprep.subr.mxu0 0.0
          %796 = vmatpush1.xpose.msra.mxu0 0.0
          %797 = vmatprep.subr.mxu0 0.0
          %798 = vmatpush1.xpose.msra.mxu0 0.0
          %799 = vmatprep.subr.mxu0 0.0
          %800 = vmatpush1.xpose.msra.mxu0 0.0
          %801 = vmatprep.subr.mxu0 0.0
          %802 = vmatpush1.xpose.msra.mxu0 0.0
          %803 = vmatprep.subr.mxu0 0.0
          %804 = vmatpush1.xpose.msra.mxu0 0.0
          %805 = vmatprep.subr.mxu0 0.0
          %806 = vmatpush1.xpose.msra.mxu0 0.0
          %807 = vmatprep.subr.mxu0 0.0
          %808 = vmatpush1.xpose.msra.mxu0 0.0
          %809 = vmatprep.subr.mxu0 0.0
          %810 = vmatpush1.xpose.msra.mxu0 0.0
          %811 = vmatprep.subr.mxu0 0.0
          %812 = vmatpush1.xpose.msra.mxu0 0.0
          %813 = vmatprep.subr.mxu0 0.0
          %814 = vmatpush1.xpose.msra.mxu0 0.0
          %815 = vmatprep.mubr.f32.mxu0 0.0
          %816 = vmatmul.mubr.f32.gmra.mrb[0].mxu0 %v746
          %v817 = vpop.f32.mrb[0].mxu0
          %v818 = vadd.f32 %v485, %v817
          %v819 = vpop.f32.mrb[0].mxu0
          %820 = vdwg.mxu0
          %v821 = vsel %vm744, %v818, -inf
          %822 = vmax.xlane.f32.xlu0 %v821
          %v823 = vpop.xlane.xlu0 %822
          %v824 = vsub.f32 %v818, %v823
          %v825 = vmul.f32 %v824, 1.442695
          %v826 = vpow.pop %v825
          %v827 = vsel %vm744, %v826, 0.0
          %828 = vadd.xlane.f32.xlu0 %v827
          %v829 = vpop.xlane.xlu0 %828
          %v830 = vrcp.pop %v829
          %v831 = vmul.f32 %v826, %v830
          %v833 = vsel %vm744, %v831, 0
          %835 = vmatprep.subr.mxu0 0.0
          %836 = vmatpush1.msra.mxu0 %v741
          %837 = vmatprep.subr.mxu0 0.0
          %838 = vmatpush1.msra.mxu0 0.0
          %839 = vmatprep.subr.mxu0 0.0
          %840 = vmatpush1.msra.mxu0 0.0
          %841 = vmatprep.subr.mxu0 0.0
          %842 = vmatpush1.msra.mxu0 0.0
          %843 = vmatprep.subr.mxu0 0.0
          %844 = vmatpush1.msra.mxu0 0.0
          %845 = vmatprep.subr.mxu0 0.0
          %846 = vmatpush1.msra.mxu0 0.0
          %847 = vmatprep.subr.mxu0 0.0
          %848 = vmatpush1.msra.mxu0 0.0
          %849 = vmatprep.subr.mxu0 0.0
          %850 = vmatpush1.msra.mxu0 0.0
          %851 = vmatprep.subr.mxu0 0.0
          %852 = vmatpush1.msra.mxu0 0.0
          %853 = vmatprep.subr.mxu0 0.0
          %854 = vmatpush1.msra.mxu0 0.0
          %855 = vmatprep.subr.mxu0 0.0
          %856 = vmatpush1.msra.mxu0 0.0
          %857 = vmatprep.subr.mxu0 0.0
          %858 = vmatpush1.msra.mxu0 0.0
          %859 = vmatprep.subr.mxu0 0.0
          %860 = vmatpush1.msra.mxu0 0.0
          %861 = vmatprep.subr.mxu0 0.0
          %862 = vmatpush1.msra.mxu0 0.0
          %863 = vmatprep.subr.mxu0 0.0
          %864 = vmatpush1.msra.mxu0 0.0
          %865 = vmatprep.subr.mxu0 0.0
          %866 = vmatpush1.msra.mxu0 0.0
          %867 = vmatprep.subr.mxu0 0.0
          %868 = vmatpush1.msra.mxu0 0.0
          %869 = vmatprep.subr.mxu0 0.0
          %870 = vmatpush1.msra.mxu0 0.0
          %871 = vmatprep.subr.mxu0 0.0
          %872 = vmatpush1.msra.mxu0 0.0
          %873 = vmatprep.subr.mxu0 0.0
          %874 = vmatpush1.msra.mxu0 0.0
          %875 = vmatprep.subr.mxu0 0.0
          %876 = vmatpush1.msra.mxu0 0.0
          %877 = vmatprep.subr.mxu0 0.0
          %878 = vmatpush1.msra.mxu0 0.0
          %879 = vmatprep.subr.mxu0 0.0
          %880 = vmatpush1.msra.mxu0 0.0
          %881 = vmatprep.subr.mxu0 0.0
          %882 = vmatpush1.msra.mxu0 0.0
          %883 = vmatprep.subr.mxu0 0.0
          %884 = vmatpush1.msra.mxu0 0.0
          %885 = vmatprep.subr.mxu0 0.0
          %886 = vmatpush1.msra.mxu0 0.0
          %887 = vmatprep.subr.mxu0 0.0
          %888 = vmatpush1.msra.mxu0 0.0
          %889 = vmatprep.subr.mxu0 0.0
          %890 = vmatpush1.msra.mxu0 0.0
          %891 = vmatprep.subr.mxu0 0.0
          %892 = vmatpush1.msra.mxu0 0.0
          %893 = vmatprep.subr.mxu0 0.0
          %894 = vmatpush1.msra.mxu0 0.0
          %895 = vmatprep.subr.mxu0 0.0
          %896 = vmatpush1.msra.mxu0 0.0
          %897 = vmatprep.subr.mxu0 0.0
          %898 = vmatpush1.msra.mxu0 0.0
          %899 = vmatprep.mubr.f32.mxu0 0.0
          %900 = vmatmul.mubr.f32.gmra.mrb[0].mxu0 %v833
          %v901 = vpop.f32.mrb[0].mxu0
          %v902 = vadd.f32 0.0, %v901
          %v903 = vpop.f32.mrb[0].mxu0
          %904 = vdwg.mxu0
          %905 = vrot.lane.b32.xlu0 %v595, 120
          %v906 = vpop.permute.xlu0 %905
          %907 = vrot.lane.b32.xlu0 %v667, 120
          %v908 = vpop.permute.xlu0 %907
          %v909 = vsel %vm744, %v906, 0
          %v911 = vsel %vm744, %v908, 0
          %913 = vmatprep.subr.mxu0 0.0
          %914 = vmatpush1.xpose.msra.mxu0 %v911
          %915 = vmatprep.subr.mxu0 0.0
          %916 = vmatpush1.xpose.msra.mxu0 0.0
          %917 = vmatprep.subr.mxu0 0.0
          %918 = vmatpush1.xpose.msra.mxu0 0.0
          %919 = vmatprep.subr.mxu0 0.0
          %920 = vmatpush1.xpose.msra.mxu0 0.0
          %921 = vmatprep.subr.mxu0 0.0
          %922 = vmatpush1.xpose.msra.mxu0 0.0
          %923 = vmatprep.subr.mxu0 0.0
          %924 = vmatpush1.xpose.msra.mxu0 0.0
          %925 = vmatprep.subr.mxu0 0.0
          %926 = vmatpush1.xpose.msra.mxu0 0.0
          %927 = vmatprep.subr.mxu0 0.0
          %928 = vmatpush1.xpose.msra.mxu0 0.0
          %929 = vmatprep.subr.mxu0 0.0
          %930 = vmatpush1.xpose.msra.mxu0 0.0
          %931 = vmatprep.subr.mxu0 0.0
          %932 = vmatpush1.xpose.msra.mxu0 0.0
          %933 = vmatprep.subr.mxu0 0.0
          %934 = vmatpush1.xpose.msra.mxu0 0.0
          %935 = vmatprep.subr.mxu0 0.0
          %936 = vmatpush1.xpose.msra.mxu0 0.0
          %937 = vmatprep.subr.mxu0 0.0
          %938 = vmatpush1.xpose.msra.mxu0 0.0
          %939 = vmatprep.subr.mxu0 0.0
          %940 = vmatpush1.xpose.msra.mxu0 0.0
          %941 = vmatprep.subr.mxu0 0.0
          %942 = vmatpush1.xpose.msra.mxu0 0.0
          %943 = vmatprep.subr.mxu0 0.0
          %944 = vmatpush1.xpose.msra.mxu0 0.0
          %945 = vmatprep.subr.mxu0 0.0
          %946 = vmatpush1.xpose.msra.mxu0 0.0
          %947 = vmatprep.subr.mxu0 0.0
          %948 = vmatpush1.xpose.msra.mxu0 0.0
          %949 = vmatprep.subr.mxu0 0.0
          %950 = vmatpush1.xpose.msra.mxu0 0.0
          %951 = vmatprep.subr.mxu0 0.0
          %952 = vmatpush1.xpose.msra.mxu0 0.0
          %953 = vmatprep.subr.mxu0 0.0
          %954 = vmatpush1.xpose.msra.mxu0 0.0
          %955 = vmatprep.subr.mxu0 0.0
          %956 = vmatpush1.xpose.msra.mxu0 0.0
          %957 = vmatprep.subr.mxu0 0.0
          %958 = vmatpush1.xpose.msra.mxu0 0.0
          %959 = vmatprep.subr.mxu0 0.0
          %960 = vmatpush1.xpose.msra.mxu0 0.0
          %961 = vmatprep.subr.mxu0 0.0
          %962 = vmatpush1.xpose.msra.mxu0 0.0
          %963 = vmatprep.subr.mxu0 0.0
          %964 = vmatpush1.xpose.msra.mxu0 0.0
          %965 = vmatprep.subr.mxu0 0.0
          %966 = vmatpush1.xpose.msra.mxu0 0.0
          %967 = vmatprep.subr.mxu0 0.0
          %968 = vmatpush1.xpose.msra.mxu0 0.0
          %969 = vmatprep.subr.mxu0 0.0
          %970 = vmatpush1.xpose.msra.mxu0 0.0
          %971 = vmatprep.subr.mxu0 0.0
          %972 = vmatpush1.xpose.msra.mxu0 0.0
          %973 = vmatprep.subr.mxu0 0.0
          %974 = vmatpush1.xpose.msra.mxu0 0.0
          %975 = vmatprep.subr.mxu0 0.0
          %976 = vmatpush1.xpose.msra.mxu0 0.0
          %977 = vmatprep.mubr.f32.mxu0 0.0
          %978 = vmatmul.mubr.f32.gmra.mrb[0].mxu0 %v909
          %v979 = vpop.f32.mrb[0].mxu0
          %v980 = vadd.f32 %v485, %v979
          %v981 = vpop.f32.mrb[0].mxu0
          %982 = vdwg.mxu0
          %v983 = vsel %vm744, %v980, -inf
          %984 = vmax.xlane.f32.xlu0 %v983
          %v985 = vpop.xlane.xlu0 %984
          %v986 = vsub.f32 %v980, %v985
          %v987 = vmul.f32 %v986, 1.442695
          %v988 = vpow.pop %v987
          %v989 = vsel %vm744, %v988, 0.0
          %990 = vadd.xlane.f32.xlu0 %v989
          %v991 = vpop.xlane.xlu0 %990
          %v992 = vrcp.pop %v991
          %v993 = vmul.f32 %v988, %v992
          %995 = vrot.lane.b32.xlu0 %v741, 120
          %v996 = vpop.permute.xlu0 %995
          %v999 = vsel %vm744, %v993, 0
          %1001 = vmatprep.subr.mxu0 0.0
          %1002 = vmatpush1.msra.mxu0 %v996
          %1003 = vmatprep.subr.mxu0 0.0
          %1004 = vmatpush1.msra.mxu0 0.0
          %1005 = vmatprep.subr.mxu0 0.0
          %1006 = vmatpush1.msra.mxu0 0.0
          %1007 = vmatprep.subr.mxu0 0.0
          %1008 = vmatpush1.msra.mxu0 0.0
          %1009 = vmatprep.subr.mxu0 0.0
          %1010 = vmatpush1.msra.mxu0 0.0
          %1011 = vmatprep.subr.mxu0 0.0
          %1012 = vmatpush1.msra.mxu0 0.0
          %1013 = vmatprep.subr.mxu0 0.0
          %1014 = vmatpush1.msra.mxu0 0.0
          %1015 = vmatprep.subr.mxu0 0.0
          %1016 = vmatpush1.msra.mxu0 0.0
          %1017 = vmatprep.subr.mxu0 0.0
          %1018 = vmatpush1.msra.mxu0 0.0
          %1019 = vmatprep.subr.mxu0 0.0
          %1020 = vmatpush1.msra.mxu0 0.0
          %1021 = vmatprep.subr.mxu0 0.0
          %1022 = vmatpush1.msra.mxu0 0.0
          %1023 = vmatprep.subr.mxu0 0.0
          %1024 = vmatpush1.msra.mxu0 0.0
          %1025 = vmatprep.subr.mxu0 0.0
          %1026 = vmatpush1.msra.mxu0 0.0
          %1027 = vmatprep.subr.mxu0 0.0
          %1028 = vmatpush1.msra.mxu0 0.0
          %1029 = vmatprep.subr.mxu0 0.0
          %1030 = vmatpush1.msra.mxu0 0.0
          %1031 = vmatprep.subr.mxu0 0.0
          %1032 = vmatpush1.msra.mxu0 0.0
          %1033 = vmatprep.subr.mxu0 0.0
          %1034 = vmatpush1.msra.mxu0 0.0
          %1035 = vmatprep.subr.mxu0 0.0
          %1036 = vmatpush1.msra.mxu0 0.0
          %1037 = vmatprep.subr.mxu0 0.0
          %1038 = vmatpush1.msra.mxu0 0.0
          %1039 = vmatprep.subr.mxu0 0.0
          %1040 = vmatpush1.msra.mxu0 0.0
          %1041 = vmatprep.subr.mxu0 0.0
          %1042 = vmatpush1.msra.mxu0 0.0
          %1043 = vmatprep.subr.mxu0 0.0
          %1044 = vmatpush1.msra.mxu0 0.0
          %1045 = vmatprep.subr.mxu0 0.0
          %1046 = vmatpush1.msra.mxu0 0.0
          %1047 = vmatprep.subr.mxu0 0.0
          %1048 = vmatpush1.msra.mxu0 0.0
          %1049 = vmatprep.subr.mxu0 0.0
          %1050 = vmatpush1.msra.mxu0 0.0
          %1051 = vmatprep.subr.mxu0 0.0
          %1052 = vmatpush1.msra.mxu0 0.0
          %1053 = vmatprep.subr.mxu0 0.0
          %1054 = vmatpush1.msra.mxu0 0.0
          %1055 = vmatprep.subr.mxu0 0.0
          %1056 = vmatpush1.msra.mxu0 0.0
          %1057 = vmatprep.subr.mxu0 0.0
          %1058 = vmatpush1.msra.mxu0 0.0
          %1059 = vmatprep.subr.mxu0 0.0
          %1060 = vmatpush1.msra.mxu0 0.0
          %1061 = vmatprep.subr.mxu0 0.0
          %1062 = vmatpush1.msra.mxu0 0.0
          %1063 = vmatprep.subr.mxu0 0.0
          %1064 = vmatpush1.msra.mxu0 0.0
          %1065 = vmatprep.mubr.f32.mxu0 0.0
          %1066 = vmatmul.mubr.f32.gmra.mrb[0].mxu0 %v999
          %v1067 = vpop.f32.mrb[0].mxu0
          %v1068 = vadd.f32 0.0, %v1067
          %v1069 = vpop.f32.mrb[0].mxu0
          %1070 = vdwg.mxu0
          %v1072 = vsel %vm744, %v1068, 0
          %1074 = vmatprep.subr.mxu0 0.0
          %1075 = vmatpush1.msra.mxu0 %v510
          %1076 = vmatprep.subr.mxu0 0.0
          %1077 = vmatpush1.msra.mxu0 0.0
          %1078 = vmatprep.subr.mxu0 0.0
          %1079 = vmatpush1.msra.mxu0 0.0
          %1080 = vmatprep.subr.mxu0 0.0
          %1081 = vmatpush1.msra.mxu0 0.0
          %1082 = vmatprep.subr.mxu0 0.0
          %1083 = vmatpush1.msra.mxu0 0.0
          %1084 = vmatprep.subr.mxu0 0.0
          %1085 = vmatpush1.msra.mxu0 0.0
          %1086 = vmatprep.subr.mxu0 0.0
          %1087 = vmatpush1.msra.mxu0 0.0
          %1088 = vmatprep.subr.mxu0 0.0
          %1089 = vmatpush1.msra.mxu0 0.0
          %1090 = vmatprep.subr.mxu0 0.0
          %1091 = vmatpush1.msra.mxu0 0.0
          %1092 = vmatprep.subr.mxu0 0.0
          %1093 = vmatpush1.msra.mxu0 0.0
          %1094 = vmatprep.subr.mxu0 0.0
          %1095 = vmatpush1.msra.mxu0 0.0
          %1096 = vmatprep.subr.mxu0 0.0
          %1097 = vmatpush1.msra.mxu0 0.0
          %1098 = vmatprep.subr.mxu0 0.0
          %1099 = vmatpush1.msra.mxu0 0.0
          %1100 = vmatprep.subr.mxu0 0.0
          %1101 = vmatpush1.msra.mxu0 0.0
          %1102 = vmatprep.subr.mxu0 0.0
          %1103 = vmatpush1.msra.mxu0 0.0
          %1104 = vmatprep.subr.mxu0 0.0
          %1105 = vmatpush1.msra.mxu0 0.0
          %1106 = vmatprep.subr.mxu0 0.0
          %1107 = vmatpush1.msra.mxu0 0.0
          %1108 = vmatprep.subr.mxu0 0.0
          %1109 = vmatpush1.msra.mxu0 0.0
          %1110 = vmatprep.subr.mxu0 0.0
          %1111 = vmatpush1.msra.mxu0 0.0
          %1112 = vmatprep.subr.mxu0 0.0
          %1113 = vmatpush1.msra.mxu0 0.0
          %1114 = vmatprep.subr.mxu0 0.0
          %1115 = vmatpush1.msra.mxu0 0.0
          %1116 = vmatprep.subr.mxu0 0.0
          %1117 = vmatpush1.msra.mxu0 0.0
          %1118 = vmatprep.subr.mxu0 0.0
          %1119 = vmatpush1.msra.mxu0 0.0
          %1120 = vmatprep.subr.mxu0 0.0
          %1121 = vmatpush1.msra.mxu0 0.0
          %1122 = vmatprep.subr.mxu0 0.0
          %1123 = vmatpush1.msra.mxu0 0.0
          %1124 = vmatprep.subr.mxu0 0.0
          %1125 = vmatpush1.msra.mxu0 0.0
          %1126 = vmatprep.subr.mxu0 0.0
          %1127 = vmatpush1.msra.mxu0 0.0
          %1128 = vmatprep.subr.mxu0 0.0
          %1129 = vmatpush1.msra.mxu0 0.0
          %1130 = vmatprep.subr.mxu0 0.0
          %1131 = vmatpush1.msra.mxu0 0.0
          %1132 = vmatprep.subr.mxu0 0.0
          %1133 = vmatpush1.msra.mxu0 0.0
          %1134 = vmatprep.subr.mxu0 0.0
          %1135 = vmatpush1.msra.mxu0 0.0
          %1136 = vmatprep.subr.mxu0 0.0
          %1137 = vmatpush1.msra.mxu0 0.0
          %1138 = vmatprep.mubr.f32.mxu0 0.0
          %1139 = vmatmul.mubr.f32.gmra.mrb[0].mxu0 %v1072
          %v1140 = vpop.f32.mrb[0].mxu0
          %v1141 = vadd.f32 0.0, %v1140
          %v1142 = vpop.f32.mrb[0].mxu0
          %1143 = vdwg.mxu0
          %v1145 = vsel %vm744, %v902, 0
          %1147 = vmatprep.subr.mxu0 0.0
          %1148 = vmatpush1.msra.mxu0 %v509
          %1149 = vmatprep.subr.mxu0 0.0
          %1150 = vmatpush1.msra.mxu0 0.0
          %1151 = vmatprep.subr.mxu0 0.0
          %1152 = vmatpush1.msra.mxu0 0.0
          %1153 = vmatprep.subr.mxu0 0.0
          %1154 = vmatpush1.msra.mxu0 0.0
          %1155 = vmatprep.subr.mxu0 0.0
          %1156 = vmatpush1.msra.mxu0 0.0
          %1157 = vmatprep.subr.mxu0 0.0
          %1158 = vmatpush1.msra.mxu0 0.0
          %1159 = vmatprep.subr.mxu0 0.0
          %1160 = vmatpush1.msra.mxu0 0.0
          %1161 = vmatprep.subr.mxu0 0.0
          %1162 = vmatpush1.msra.mxu0 0.0
          %1163 = vmatprep.subr.mxu0 0.0
          %1164 = vmatpush1.msra.mxu0 0.0
          %1165 = vmatprep.subr.mxu0 0.0
          %1166 = vmatpush1.msra.mxu0 0.0
          %1167 = vmatprep.subr.mxu0 0.0
          %1168 = vmatpush1.msra.mxu0 0.0
          %1169 = vmatprep.subr.mxu0 0.0
          %1170 = vmatpush1.msra.mxu0 0.0
          %1171 = vmatprep.subr.mxu0 0.0
          %1172 = vmatpush1.msra.mxu0 0.0
          %1173 = vmatprep.subr.mxu0 0.0
          %1174 = vmatpush1.msra.mxu0 0.0
          %1175 = vmatprep.subr.mxu0 0.0
          %1176 = vmatpush1.msra.mxu0 0.0
          %1177 = vmatprep.subr.mxu0 0.0
          %1178 = vmatpush1.msra.mxu0 0.0
          %1179 = vmatprep.subr.mxu0 0.0
          %1180 = vmatpush1.msra.mxu0 0.0
          %1181 = vmatprep.subr.mxu0 0.0
          %1182 = vmatpush1.msra.mxu0 0.0
          %1183 = vmatprep.subr.mxu0 0.0
          %1184 = vmatpush1.msra.mxu0 0.0
          %1185 = vmatprep.subr.mxu0 0.0
          %1186 = vmatpush1.msra.mxu0 0.0
          %1187 = vmatprep.subr.mxu0 0.0
          %1188 = vmatpush1.msra.mxu0 0.0
          %1189 = vmatprep.subr.mxu0 0.0
          %1190 = vmatpush1.msra.mxu0 0.0
          %1191 = vmatprep.subr.mxu0 0.0
          %1192 = vmatpush1.msra.mxu0 0.0
          %1193 = vmatprep.subr.mxu0 0.0
          %1194 = vmatpush1.msra.mxu0 0.0
          %1195 = vmatprep.subr.mxu0 0.0
          %1196 = vmatpush1.msra.mxu0 0.0
          %1197 = vmatprep.subr.mxu0 0.0
          %1198 = vmatpush1.msra.mxu0 0.0
          %1199 = vmatprep.subr.mxu0 0.0
          %1200 = vmatpush1.msra.mxu0 0.0
          %1201 = vmatprep.subr.mxu0 0.0
          %1202 = vmatpush1.msra.mxu0 0.0
          %1203 = vmatprep.subr.mxu0 0.0
          %1204 = vmatpush1.msra.mxu0 0.0
          %1205 = vmatprep.subr.mxu0 0.0
          %1206 = vmatpush1.msra.mxu0 0.0
          %1207 = vmatprep.subr.mxu0 0.0
          %1208 = vmatpush1.msra.mxu0 0.0
          %1209 = vmatprep.subr.mxu0 0.0
          %1210 = vmatpush1.msra.mxu0 0.0
          %1211 = vmatprep.mubr.f32.mxu0 0.0
          %1212 = vmatmul.mubr.f32.gmra.mrb[0].mxu0 %v1145
          %v1213 = vpop.f32.mrb[0].mxu0
          %v1214 = vadd.f32 %v1141, %v1213
          %v1215 = vpop.f32.mrb[0].mxu0
          %1216 = vdwg.mxu0
          %1217 = vrot.lane.b32.xlu0 %v595, 112
          %v1218 = vpop.permute.xlu0 %1217
          %1219 = vrot.lane.b32.xlu0 %v667, 112
          %v1220 = vpop.permute.xlu0 %1219
          %v1221 = vsel %vm744, %v1218, 0
          %v1223 = vsel %vm744, %v1220, 0
          %1225 = vmatprep.subr.mxu0 0.0
          %1226 = vmatpush1.xpose.msra.mxu0 %v1223
          %1227 = vmatprep.subr.mxu0 0.0
          %1228 = vmatpush1.xpose.msra.mxu0 0.0
          %1229 = vmatprep.subr.mxu0 0.0
          %1230 = vmatpush1.xpose.msra.mxu0 0.0
          %1231 = vmatprep.subr.mxu0 0.0
          %1232 = vmatpush1.xpose.msra.mxu0 0.0
          %1233 = vmatprep.subr.mxu0 0.0
          %1234 = vmatpush1.xpose.msra.mxu0 0.0
          %1235 = vmatprep.subr.mxu0 0.0
          %1236 = vmatpush1.xpose.msra.mxu0 0.0
          %1237 = vmatprep.subr.mxu0 0.0
          %1238 = vmatpush1.xpose.msra.mxu0 0.0
          %1239 = vmatprep.subr.mxu0 0.0
          %1240 = vmatpush1.xpose.msra.mxu0 0.0
          %1241 = vmatprep.subr.mxu0 0.0
          %1242 = vmatpush1.xpose.msra.mxu0 0.0
          %1243 = vmatprep.subr.mxu0 0.0
          %1244 = vmatpush1.xpose.msra.mxu0 0.0
          %1245 = vmatprep.subr.mxu0 0.0
          %1246 = vmatpush1.xpose.msra.mxu0 0.0
          %1247 = vmatprep.subr.mxu0 0.0
          %1248 = vmatpush1.xpose.msra.mxu0 0.0
          %1249 = vmatprep.subr.mxu0 0.0
          %1250 = vmatpush1.xpose.msra.mxu0 0.0
          %1251 = vmatprep.subr.mxu0 0.0
          %1252 = vmatpush1.xpose.msra.mxu0 0.0
          %1253 = vmatprep.subr.mxu0 0.0
          %1254 = vmatpush1.xpose.msra.mxu0 0.0
          %1255 = vmatprep.subr.mxu0 0.0
          %1256 = vmatpush1.xpose.msra.mxu0 0.0
          %1257 = vmatprep.subr.mxu0 0.0
          %1258 = vmatpush1.xpose.msra.mxu0 0.0
          %1259 = vmatprep.subr.mxu0 0.0
          %1260 = vmatpush1.xpose.msra.mxu0 0.0
          %1261 = vmatprep.subr.mxu0 0.0
          %1262 = vmatpush1.xpose.msra.mxu0 0.0
          %1263 = vmatprep.subr.mxu0 0.0
          %1264 = vmatpush1.xpose.msra.mxu0 0.0
          %1265 = vmatprep.subr.mxu0 0.0
          %1266 = vmatpush1.xpose.msra.mxu0 0.0
          %1267 = vmatprep.subr.mxu0 0.0
          %1268 = vmatpush1.xpose.msra.mxu0 0.0
          %1269 = vmatprep.subr.mxu0 0.0
          %1270 = vmatpush1.xpose.msra.mxu0 0.0
          %1271 = vmatprep.subr.mxu0 0.0
          %1272 = vmatpush1.xpose.msra.mxu0 0.0
          %1273 = vmatprep.subr.mxu0 0.0
          %1274 = vmatpush1.xpose.msra.mxu0 0.0
          %1275 = vmatprep.subr.mxu0 0.0
          %1276 = vmatpush1.xpose.msra.mxu0 0.0
          %1277 = vmatprep.subr.mxu0 0.0
          %1278 = vmatpush1.xpose.msra.mxu0 0.0
          %1279 = vmatprep.subr.mxu0 0.0
          %1280 = vmatpush1.xpose.msra.mxu0 0.0
          %1281 = vmatprep.subr.mxu0 0.0
          %1282 = vmatpush1.xpose.msra.mxu0 0.0
          %1283 = vmatprep.subr.mxu0 0.0
          %1284 = vmatpush1.xpose.msra.mxu0 0.0
          %1285 = vmatprep.subr.mxu0 0.0
          %1286 = vmatpush1.xpose.msra.mxu0 0.0
          %1287 = vmatprep.subr.mxu0 0.0
          %1288 = vmatpush1.xpose.msra.mxu0 0.0
          %1289 = vmatprep.mubr.f32.mxu0 0.0
          %1290 = vmatmul.mubr.f32.gmra.mrb[0].mxu0 %v1221
          %v1291 = vpop.f32.mrb[0].mxu0
          %v1292 = vadd.f32 %v485, %v1291
          %v1293 = vpop.f32.mrb[0].mxu0
          %1294 = vdwg.mxu0
          %v1295 = vsel %vm744, %v1292, -inf
          %1296 = vmax.xlane.f32.xlu0 %v1295
          %v1297 = vpop.xlane.xlu0 %1296
          %v1298 = vsub.f32 %v1292, %v1297
          %v1299 = vmul.f32 %v1298, 1.442695
          %v1300 = vpow.pop %v1299
          %v1301 = vsel %vm744, %v1300, 0.0
          %1302 = vadd.xlane.f32.xlu0 %v1301
          %v1303 = vpop.xlane.xlu0 %1302
          %v1304 = vrcp.pop %v1303
          %v1305 = vmul.f32 %v1300, %v1304
          %1306 = vrot.lane.b32.xlu0 %v741, 112
          %v1307 = vpop.permute.xlu0 %1306
          %v1310 = vsel %vm744, %v1305, 0
          %1312 = vmatprep.subr.mxu0 0.0
          %1313 = vmatpush1.msra.mxu0 %v1307
          %1314 = vmatprep.subr.mxu0 0.0
          %1315 = vmatpush1.msra.mxu0 0.0
          %1316 = vmatprep.subr.mxu0 0.0
          %1317 = vmatpush1.msra.mxu0 0.0
          %1318 = vmatprep.subr.mxu0 0.0
          %1319 = vmatpush1.msra.mxu0 0.0
          %1320 = vmatprep.subr.mxu0 0.0
          %1321 = vmatpush1.msra.mxu0 0.0
          %1322 = vmatprep.subr.mxu0 0.0
          %1323 = vmatpush1.msra.mxu0 0.0
          %1324 = vmatprep.subr.mxu0 0.0
          %1325 = vmatpush1.msra.mxu0 0.0
          %1326 = vmatprep.subr.mxu0 0.0
          %1327 = vmatpush1.msra.mxu0 0.0
          %1328 = vmatprep.subr.mxu0 0.0
          %1329 = vmatpush1.msra.mxu0 0.0
          %1330 = vmatprep.subr.mxu0 0.0
          %1331 = vmatpush1.msra.mxu0 0.0
          %1332 = vmatprep.subr.mxu0 0.0
          %1333 = vmatpush1.msra.mxu0 0.0
          %1334 = vmatprep.subr.mxu0 0.0
          %1335 = vmatpush1.msra.mxu0 0.0
          %1336 = vmatprep.subr.mxu0 0.0
          %1337 = vmatpush1.msra.mxu0 0.0
          %1338 = vmatprep.subr.mxu0 0.0
          %1339 = vmatpush1.msra.mxu0 0.0
          %1340 = vmatprep.subr.mxu0 0.0
          %1341 = vmatpush1.msra.mxu0 0.0
          %1342 = vmatprep.subr.mxu0 0.0
          %1343 = vmatpush1.msra.mxu0 0.0
          %1344 = vmatprep.subr.mxu0 0.0
          %1345 = vmatpush1.msra.mxu0 0.0
          %1346 = vmatprep.subr.mxu0 0.0
          %1347 = vmatpush1.msra.mxu0 0.0
          %1348 = vmatprep.subr.mxu0 0.0
          %1349 = vmatpush1.msra.mxu0 0.0
          %1350 = vmatprep.subr.mxu0 0.0
          %1351 = vmatpush1.msra.mxu0 0.0
          %1352 = vmatprep.subr.mxu0 0.0
          %1353 = vmatpush1.msra.mxu0 0.0
          %1354 = vmatprep.subr.mxu0 0.0
          %1355 = vmatpush1.msra.mxu0 0.0
          %1356 = vmatprep.subr.mxu0 0.0
          %1357 = vmatpush1.msra.mxu0 0.0
          %1358 = vmatprep.subr.mxu0 0.0
          %1359 = vmatpush1.msra.mxu0 0.0
          %1360 = vmatprep.subr.mxu0 0.0
          %1361 = vmatpush1.msra.mxu0 0.0
          %1362 = vmatprep.subr.mxu0 0.0
          %1363 = vmatpush1.msra.mxu0 0.0
          %1364 = vmatprep.subr.mxu0 0.0
          %1365 = vmatpush1.msra.mxu0 0.0
          %1366 = vmatprep.subr.mxu0 0.0
          %1367 = vmatpush1.msra.mxu0 0.0
          %1368 = vmatprep.subr.mxu0 0.0
          %1369 = vmatpush1.msra.mxu0 0.0
          %1370 = vmatprep.subr.mxu0 0.0
          %1371 = vmatpush1.msra.mxu0 0.0
          %1372 = vmatprep.subr.mxu0 0.0
          %1373 = vmatpush1.msra.mxu0 0.0
          %1374 = vmatprep.subr.mxu0 0.0
          %1375 = vmatpush1.msra.mxu0 0.0
          %1376 = vmatprep.mubr.f32.mxu0 0.0
          %1377 = vmatmul.mubr.f32.gmra.mrb[0].mxu0 %v1310
          %v1378 = vpop.f32.mrb[0].mxu0
          %v1379 = vadd.f32 0.0, %v1378
          %v1380 = vpop.f32.mrb[0].mxu0
          %1381 = vdwg.mxu0
          %v1383 = vsel %vm744, %v1379, 0
          %1385 = vmatprep.subr.mxu0 0.0
          %1386 = vmatpush1.msra.mxu0 %v511
          %1387 = vmatprep.subr.mxu0 0.0
          %1388 = vmatpush1.msra.mxu0 0.0
          %1389 = vmatprep.subr.mxu0 0.0
          %1390 = vmatpush1.msra.mxu0 0.0
          %1391 = vmatprep.subr.mxu0 0.0
          %1392 = vmatpush1.msra.mxu0 0.0
          %1393 = vmatprep.subr.mxu0 0.0
          %1394 = vmatpush1.msra.mxu0 0.0
          %1395 = vmatprep.subr.mxu0 0.0
          %1396 = vmatpush1.msra.mxu0 0.0
          %1397 = vmatprep.subr.mxu0 0.0
          %1398 = vmatpush1.msra.mxu0 0.0
          %1399 = vmatprep.subr.mxu0 0.0
          %1400 = vmatpush1.msra.mxu0 0.0
          %1401 = vmatprep.subr.mxu0 0.0
          %1402 = vmatpush1.msra.mxu0 0.0
          %1403 = vmatprep.subr.mxu0 0.0
          %1404 = vmatpush1.msra.mxu0 0.0
          %1405 = vmatprep.subr.mxu0 0.0
          %1406 = vmatpush1.msra.mxu0 0.0
          %1407 = vmatprep.subr.mxu0 0.0
          %1408 = vmatpush1.msra.mxu0 0.0
          %1409 = vmatprep.subr.mxu0 0.0
          %1410 = vmatpush1.msra.mxu0 0.0
          %1411 = vmatprep.subr.mxu0 0.0
          %1412 = vmatpush1.msra.mxu0 0.0
          %1413 = vmatprep.subr.mxu0 0.0
          %1414 = vmatpush1.msra.mxu0 0.0
          %1415 = vmatprep.subr.mxu0 0.0
          %1416 = vmatpush1.msra.mxu0 0.0
          %1417 = vmatprep.subr.mxu0 0.0
          %1418 = vmatpush1.msra.mxu0 0.0
          %1419 = vmatprep.subr.mxu0 0.0
          %1420 = vmatpush1.msra.mxu0 0.0
          %1421 = vmatprep.subr.mxu0 0.0
          %1422 = vmatpush1.msra.mxu0 0.0
          %1423 = vmatprep.subr.mxu0 0.0
          %1424 = vmatpush1.msra.mxu0 0.0
          %1425 = vmatprep.subr.mxu0 0.0
          %1426 = vmatpush1.msra.mxu0 0.0
          %1427 = vmatprep.subr.mxu0 0.0
          %1428 = vmatpush1.msra.mxu0 0.0
          %1429 = vmatprep.subr.mxu0 0.0
          %1430 = vmatpush1.msra.mxu0 0.0
          %1431 = vmatprep.subr.mxu0 0.0
          %1432 = vmatpush1.msra.mxu0 0.0
          %1433 = vmatprep.subr.mxu0 0.0
          %1434 = vmatpush1.msra.mxu0 0.0
          %1435 = vmatprep.subr.mxu0 0.0
          %1436 = vmatpush1.msra.mxu0 0.0
          %1437 = vmatprep.subr.mxu0 0.0
          %1438 = vmatpush1.msra.mxu0 0.0
          %1439 = vmatprep.subr.mxu0 0.0
          %1440 = vmatpush1.msra.mxu0 0.0
          %1441 = vmatprep.subr.mxu0 0.0
          %1442 = vmatpush1.msra.mxu0 0.0
          %1443 = vmatprep.subr.mxu0 0.0
          %1444 = vmatpush1.msra.mxu0 0.0
          %1445 = vmatprep.subr.mxu0 0.0
          %1446 = vmatpush1.msra.mxu0 0.0
          %1447 = vmatprep.subr.mxu0 0.0
          %1448 = vmatpush1.msra.mxu0 0.0
          %1449 = vmatprep.mubr.f32.mxu0 0.0
          %1450 = vmatmul.mubr.f32.gmra.mrb[0].mxu0 %v1383
          %v1451 = vpop.f32.mrb[0].mxu0
          %v1452 = vadd.f32 0.0, %v1451
          %v1453 = vpop.f32.mrb[0].mxu0
          %1454 = vdwg.mxu0
          %v1455 = vadd.f32 %v1214, %v1452
          %1456 = vrot.lane.b32.xlu0 %v595, 104
          %v1457 = vpop.permute.xlu0 %1456
          %1458 = vrot.lane.b32.xlu0 %v667, 104
          %v1459 = vpop.permute.xlu0 %1458
          %v1460 = vsel %vm744, %v1457, 0
          %v1462 = vsel %vm744, %v1459, 0
          %1464 = vmatprep.subr.mxu0 0.0
          %1465 = vmatpush1.xpose.msra.mxu0 %v1462
          %1466 = vmatprep.subr.mxu0 0.0
          %1467 = vmatpush1.xpose.msra.mxu0 0.0
          %1468 = vmatprep.subr.mxu0 0.0
          %1469 = vmatpush1.xpose.msra.mxu0 0.0
          %1470 = vmatprep.subr.mxu0 0.0
          %1471 = vmatpush1.xpose.msra.mxu0 0.0
          %1472 = vmatprep.subr.mxu0 0.0
          %1473 = vmatpush1.xpose.msra.mxu0 0.0
          %1474 = vmatprep.subr.mxu0 0.0
          %1475 = vmatpush1.xpose.msra.mxu0 0.0
          %1476 = vmatprep.subr.mxu0 0.0
          %1477 = vmatpush1.xpose.msra.mxu0 0.0
          %1478 = vmatprep.subr.mxu0 0.0
          %1479 = vmatpush1.xpose.msra.mxu0 0.0
          %1480 = vmatprep.subr.mxu0 0.0
          %1481 = vmatpush1.xpose.msra.mxu0 0.0
          %1482 = vmatprep.subr.mxu0 0.0
          %1483 = vmatpush1.xpose.msra.mxu0 0.0
          %1484 = vmatprep.subr.mxu0 0.0
          %1485 = vmatpush1.xpose.msra.mxu0 0.0
          %1486 = vmatprep.subr.mxu0 0.0
          %1487 = vmatpush1.xpose.msra.mxu0 0.0
          %1488 = vmatprep.subr.mxu0 0.0
          %1489 = vmatpush1.xpose.msra.mxu0 0.0
          %1490 = vmatprep.subr.mxu0 0.0
          %1491 = vmatpush1.xpose.msra.mxu0 0.0
          %1492 = vmatprep.subr.mxu0 0.0
          %1493 = vmatpush1.xpose.msra.mxu0 0.0
          %1494 = vmatprep.subr.mxu0 0.0
          %1495 = vmatpush1.xpose.msra.mxu0 0.0
          %1496 = vmatprep.subr.mxu0 0.0
          %1497 = vmatpush1.xpose.msra.mxu0 0.0
          %1498 = vmatprep.subr.mxu0 0.0
          %1499 = vmatpush1.xpose.msra.mxu0 0.0
          %1500 = vmatprep.subr.mxu0 0.0
          %1501 = vmatpush1.xpose.msra.mxu0 0.0
          %1502 = vmatprep.subr.mxu0 0.0
          %1503 = vmatpush1.xpose.msra.mxu0 0.0
          %1504 = vmatprep.subr.mxu0 0.0
          %1505 = vmatpush1.xpose.msra.mxu0 0.0
          %1506 = vmatprep.subr.mxu0 0.0
          %1507 = vmatpush1.xpose.msra.mxu0 0.0
          %1508 = vmatprep.subr.mxu0 0.0
          %1509 = vmatpush1.xpose.msra.mxu0 0.0
          %1510 = vmatprep.subr.mxu0 0.0
          %1511 = vmatpush1.xpose.msra.mxu0 0.0
          %1512 = vmatprep.subr.mxu0 0.0
          %1513 = vmatpush1.xpose.msra.mxu0 0.0
          %1514 = vmatprep.subr.mxu0 0.0
          %1515 = vmatpush1.xpose.msra.mxu0 0.0
          %1516 = vmatprep.subr.mxu0 0.0
          %1517 = vmatpush1.xpose.msra.mxu0 0.0
          %1518 = vmatprep.subr.mxu0 0.0
          %1519 = vmatpush1.xpose.msra.mxu0 0.0
          %1520 = vmatprep.subr.mxu0 0.0
          %1521 = vmatpush1.xpose.msra.mxu0 0.0
          %1522 = vmatprep.subr.mxu0 0.0
          %1523 = vmatpush1.xpose.msra.mxu0 0.0
          %1524 = vmatprep.subr.mxu0 0.0
          %1525 = vmatpush1.xpose.msra.mxu0 0.0
          %1526 = vmatprep.subr.mxu0 0.0
          %1527 = vmatpush1.xpose.msra.mxu0 0.0
          %1528 = vmatprep.mubr.f32.mxu0 0.0
          %1529 = vmatmul.mubr.f32.gmra.mrb[0].mxu0 %v1460
          %v1530 = vpop.f32.mrb[0].mxu0
          %v1531 = vadd.f32 %v485, %v1530
          %v1532 = vpop.f32.mrb[0].mxu0
          %1533 = vdwg.mxu0
          %v1534 = vsel %vm744, %v1531, -inf
          %1535 = vmax.xlane.f32.xlu0 %v1534
          %v1536 = vpop.xlane.xlu0 %1535
          %v1537 = vsub.f32 %v1531, %v1536
          %v1538 = vmul.f32 %v1537, 1.442695
          %v1539 = vpow.pop %v1538
          %v1540 = vsel %vm744, %v1539, 0.0
          %1541 = vadd.xlane.f32.xlu0 %v1540
          %v1542 = vpop.xlane.xlu0 %1541
          %v1543 = vrcp.pop %v1542
          %v1544 = vmul.f32 %v1539, %v1543
          %1545 = vrot.lane.b32.xlu0 %v741, 104
          %v1546 = vpop.permute.xlu0 %1545
          %v1549 = vsel %vm744, %v1544, 0
          %1551 = vmatprep.subr.mxu0 0.0
          %1552 = vmatpush1.msra.mxu0 %v1546
          %1553 = vmatprep.subr.mxu0 0.0
          %1554 = vmatpush1.msra.mxu0 0.0
          %1555 = vmatprep.subr.mxu0 0.0
          %1556 = vmatpush1.msra.mxu0 0.0
          %1557 = vmatprep.subr.mxu0 0.0
          %1558 = vmatpush1.msra.mxu0 0.0
          %1559 = vmatprep.subr.mxu0 0.0
          %1560 = vmatpush1.msra.mxu0 0.0
          %1561 = vmatprep.subr.mxu0 0.0
          %1562 = vmatpush1.msra.mxu0 0.0
          %1563 = vmatprep.subr.mxu0 0.0
          %1564 = vmatpush1.msra.mxu0 0.0
          %1565 = vmatprep.subr.mxu0 0.0
          %1566 = vmatpush1.msra.mxu0 0.0
          %1567 = vmatprep.subr.mxu0 0.0
          %1568 = vmatpush1.msra.mxu0 0.0
          %1569 = vmatprep.subr.mxu0 0.0
          %1570 = vmatpush1.msra.mxu0 0.0
          %1571 = vmatprep.subr.mxu0 0.0
          %1572 = vmatpush1.msra.mxu0 0.0
          %1573 = vmatprep.subr.mxu0 0.0
          %1574 = vmatpush1.msra.mxu0 0.0
          %1575 = vmatprep.subr.mxu0 0.0
          %1576 = vmatpush1.msra.mxu0 0.0
          %1577 = vmatprep.subr.mxu0 0.0
          %1578 = vmatpush1.msra.mxu0 0.0
          %1579 = vmatprep.subr.mxu0 0.0
          %1580 = vmatpush1.msra.mxu0 0.0
          %1581 = vmatprep.subr.mxu0 0.0
          %1582 = vmatpush1.msra.mxu0 0.0
          %1583 = vmatprep.subr.mxu0 0.0
          %1584 = vmatpush1.msra.mxu0 0.0
          %1585 = vmatprep.subr.mxu0 0.0
          %1586 = vmatpush1.msra.mxu0 0.0
          %1587 = vmatprep.subr.mxu0 0.0
          %1588 = vmatpush1.msra.mxu0 0.0
          %1589 = vmatprep.subr.mxu0 0.0
          %1590 = vmatpush1.msra.mxu0 0.0
          %1591 = vmatprep.subr.mxu0 0.0
          %1592 = vmatpush1.msra.mxu0 0.0
          %1593 = vmatprep.subr.mxu0 0.0
          %1594 = vmatpush1.msra.mxu0 0.0
          %1595 = vmatprep.subr.mxu0 0.0
          %1596 = vmatpush1.msra.mxu0 0.0
          %1597 = vmatprep.subr.mxu0 0.0
          %1598 = vmatpush1.msra.mxu0 0.0
          %1599 = vmatprep.subr.mxu0 0.0
          %1600 = vmatpush1.msra.mxu0 0.0
          %1601 = vmatprep.subr.mxu0 0.0
          %1602 = vmatpush1.msra.mxu0 0.0
          %1603 = vmatprep.subr.mxu0 0.0
          %1604 = vmatpush1.msra.mxu0 0.0
          %1605 = vmatprep.subr.mxu0 0.0
          %1606 = vmatpush1.msra.mxu0 0.0
          %1607 = vmatprep.subr.mxu0 0.0
          %1608 = vmatpush1.msra.mxu0 0.0
          %1609 = vmatprep.subr.mxu0 0.0
          %1610 = vmatpush1.msra.mxu0 0.0
          %1611 = vmatprep.subr.mxu0 0.0
          %1612 = vmatpush1.msra.mxu0 0.0
          %1613 = vmatprep.subr.mxu0 0.0
          %1614 = vmatpush1.msra.mxu0 0.0
          %1615 = vmatprep.mubr.f32.mxu0 0.0
          %1616 = vmatmul.mubr.f32.gmra.mrb[0].mxu0 %v1549
          %v1617 = vpop.f32.mrb[0].mxu0
          %v1618 = vadd.f32 0.0, %v1617
          %v1619 = vpop.f32.mrb[0].mxu0
          %1620 = vdwg.mxu0
          %v1622 = vsel %vm744, %v1618, 0
          %1624 = vmatprep.subr.mxu0 0.0
          %1625 = vmatpush1.msra.mxu0 %v512
          %1626 = vmatprep.subr.mxu0 0.0
          %1627 = vmatpush1.msra.mxu0 0.0
          %1628 = vmatprep.subr.mxu0 0.0
          %1629 = vmatpush1.msra.mxu0 0.0
          %1630 = vmatprep.subr.mxu0 0.0
          %1631 = vmatpush1.msra.mxu0 0.0
          %1632 = vmatprep.subr.mxu0 0.0
          %1633 = vmatpush1.msra.mxu0 0.0
          %1634 = vmatprep.subr.mxu0 0.0
          %1635 = vmatpush1.msra.mxu0 0.0
          %1636 = vmatprep.subr.mxu0 0.0
          %1637 = vmatpush1.msra.mxu0 0.0
          %1638 = vmatprep.subr.mxu0 0.0
          %1639 = vmatpush1.msra.mxu0 0.0
          %1640 = vmatprep.subr.mxu0 0.0
          %1641 = vmatpush1.msra.mxu0 0.0
          %1642 = vmatprep.subr.mxu0 0.0
          %1643 = vmatpush1.msra.mxu0 0.0
          %1644 = vmatprep.subr.mxu0 0.0
          %1645 = vmatpush1.msra.mxu0 0.0
          %1646 = vmatprep.subr.mxu0 0.0
          %1647 = vmatpush1.msra.mxu0 0.0
          %1648 = vmatprep.subr.mxu0 0.0
          %1649 = vmatpush1.msra.mxu0 0.0
          %1650 = vmatprep.subr.mxu0 0.0
          %1651 = vmatpush1.msra.mxu0 0.0
          %1652 = vmatprep.subr.mxu0 0.0
          %1653 = vmatpush1.msra.mxu0 0.0
          %1654 = vmatprep.subr.mxu0 0.0
          %1655 = vmatpush1.msra.mxu0 0.0
          %1656 = vmatprep.subr.mxu0 0.0
          %1657 = vmatpush1.msra.mxu0 0.0
          %1658 = vmatprep.subr.mxu0 0.0
          %1659 = vmatpush1.msra.mxu0 0.0
          %1660 = vmatprep.subr.mxu0 0.0
          %1661 = vmatpush1.msra.mxu0 0.0
          %1662 = vmatprep.subr.mxu0 0.0
          %1663 = vmatpush1.msra.mxu0 0.0
          %1664 = vmatprep.subr.mxu0 0.0
          %1665 = vmatpush1.msra.mxu0 0.0
          %1666 = vmatprep.subr.mxu0 0.0
          %1667 = vmatpush1.msra.mxu0 0.0
          %1668 = vmatprep.subr.mxu0 0.0
          %1669 = vmatpush1.msra.mxu0 0.0
          %1670 = vmatprep.subr.mxu0 0.0
          %1671 = vmatpush1.msra.mxu0 0.0
          %1672 = vmatprep.subr.mxu0 0.0
          %1673 = vmatpush1.msra.mxu0 0.0
          %1674 = vmatprep.subr.mxu0 0.0
          %1675 = vmatpush1.msra.mxu0 0.0
          %1676 = vmatprep.subr.mxu0 0.0
          %1677 = vmatpush1.msra.mxu0 0.0
          %1678 = vmatprep.subr.mxu0 0.0
          %1679 = vmatpush1.msra.mxu0 0.0
          %1680 = vmatprep.subr.mxu0 0.0
          %1681 = vmatpush1.msra.mxu0 0.0
          %1682 = vmatprep.subr.mxu0 0.0
          %1683 = vmatpush1.msra.mxu0 0.0
          %1684 = vmatprep.subr.mxu0 0.0
          %1685 = vmatpush1.msra.mxu0 0.0
          %1686 = vmatprep.subr.mxu0 0.0
          %1687 = vmatpush1.msra.mxu0 0.0
          %1688 = vmatprep.mubr.f32.mxu0 0.0
          %1689 = vmatmul.mubr.f32.gmra.mrb[0].mxu0 %v1622
          %v1690 = vpop.f32.mrb[0].mxu0
          %v1691 = vadd.f32 0.0, %v1690
          %v1692 = vpop.f32.mrb[0].mxu0
          %1693 = vdwg.mxu0
          %v1694 = vadd.f32 %v1455, %v1691
          %v1695 = vlaneseq
          %v1696 = vshrl.u32 %v1695, 7
          %v1697 = vsub.s32 0, %v1696
          %v1698 = vrot.slane %v516, %v1697
          %v1699 = vadd.f32 %v1694, %v1698
          %v1700 = vadd.f32 %v493, %v1699
          %v1701 = vld [vmem:[#allocation7] sm:$0x1]
          %v1702 = vld [vmem:[#allocation7 + $0x1] sm:$0x1]
          %v1703 = vsel %vm521, %v1700, 0.0
          %1704 = vadd.xlane.f32.xlu0 %v1703
          %v1705 = vpop.xlane.xlu0 %1704
          %v1706 = vrcp.pop 32.0
          %v1707 = vmul.f32 %v1705, %v1706
          %v1708 = vsub.f32 %v1700, %v1707
          %v1709 = vmul.f32 %v1708, %v1708
          %v1710 = vsel %vm521, %v1709, 0.0
          %1711 = vadd.xlane.f32.xlu0 %v1710
          %v1712 = vpop.xlane.xlu0 %1711
          %v1713 = vmul.f32 %v1712, %v1706
          %v1714 = vadd.f32 %v1713, 1e-06
          %v1715 = vrsqrt.pop %v1714
          %v1716 = vmul.f32 %v1708, %v1715
          %v1717 = vlaneseq
          %v1718 = vshrl.u32 %v1717, 7
          %v1719 = vsub.s32 0, %v1718
          %v1720 = vrot.slane %v1701, %v1719
          %v1721 = vmul.f32 %v1716, %v1720
          %v1722 = vlaneseq
          %v1723 = vshrl.u32 %v1722, 7
          %v1724 = vsub.s32 0, %v1723
          %v1725 = vrot.slane %v1702, %v1724
          %v1726 = vadd.f32 %v1721, %v1725
          %s1727 = scalar_lea.vmem [#allocation2], 128
          %v1728 = vld [vmem:[%s1727] sm:$0xff]
          %v1729 = vld [vmem:[%s1727 + $0x8] sm:$0xff]
          %v1730 = vld [vmem:[%s1727 + $0x10] sm:$0xff]
          %v1731 = vld [vmem:[%s1727 + $0x18] sm:$0xff]
          %s1732 = scalar_lea.vmem [#allocation2], 160
          %v1733 = vld [vmem:[%s1732] sm:$0xff]
          %v1734 = vld [vmem:[%s1732 + $0x8] sm:$0xff]
          %v1735 = vld [vmem:[%s1732 + $0x10] sm:$0xff]
          %v1736 = vld [vmem:[%s1732 + $0x18] sm:$0xff]
          %s1737 = scalar_lea.vmem [#allocation2], 192
          %v1738 = vld [vmem:[%s1737] sm:$0xff]
          %v1739 = vld [vmem:[%s1737 + $0x8] sm:$0xff]
          %v1740 = vld [vmem:[%s1737 + $0x10] sm:$0xff]
          %v1741 = vld [vmem:[%s1737 + $0x18] sm:$0xff]
          %s1742 = scalar_lea.vmem [#allocation2], 224
          %v1743 = vld [vmem:[%s1742] sm:$0xff]
          %v1744 = vld [vmem:[%s1742 + $0x8] sm:$0xff]
          %v1745 = vld [vmem:[%s1742 + $0x10] sm:$0xff]
          %v1746 = vld [vmem:[%s1742 + $0x18] sm:$0xff]
          %v1747 = vld [vmem:[%s5 + $0x4] sm:$0x1]
          %v1748 = vld [vmem:[%s5 + $0x5] sm:$0x1]
          %v1749 = vld [vmem:[%s5 + $0x6] sm:$0x1]
          %v1750 = vld [vmem:[%s5 + $0x7] sm:$0x1]
          %v1751 = vlaneseq
          %v1752 = vshrl.u32 %v1751, 7
          %v1753 = vsub.s32 0, %v1752
          %v1754 = vrot.slane %v1747, %v1753
          %v1756 = vsel %vm521, %v1726, 0
          %1758 = vmatprep.subr.mxu0 0.0
          %1759 = vmatpush1.msra.mxu0 %v1728
          %1760 = vmatprep.subr.mxu0 0.0
          %1761 = vmatpush1.msra.mxu0 %v1729
          %1762 = vmatprep.subr.mxu0 0.0
          %1763 = vmatpush1.msra.mxu0 %v1730
          %1764 = vmatprep.subr.mxu0 0.0
          %1765 = vmatpush1.msra.mxu0 %v1731
          %1766 = vmatprep.subr.mxu0 0.0
          %1767 = vmatpush1.msra.mxu0 0.0
          %1768 = vmatprep.subr.mxu0 0.0
          %1769 = vmatpush1.msra.mxu0 0.0
          %1770 = vmatprep.subr.mxu0 0.0
          %1771 = vmatpush1.msra.mxu0 0.0
          %1772 = vmatprep.subr.mxu0 0.0
          %1773 = vmatpush1.msra.mxu0 0.0
          %1774 = vmatprep.subr.mxu0 0.0
          %1775 = vmatpush1.msra.mxu0 0.0
          %1776 = vmatprep.subr.mxu0 0.0
          %1777 = vmatpush1.msra.mxu0 0.0
          %1778 = vmatprep.subr.mxu0 0.0
          %1779 = vmatpush1.msra.mxu0 0.0
          %1780 = vmatprep.subr.mxu0 0.0
          %1781 = vmatpush1.msra.mxu0 0.0
          %1782 = vmatprep.subr.mxu0 0.0
          %1783 = vmatpush1.msra.mxu0 0.0
          %1784 = vmatprep.subr.mxu0 0.0
          %1785 = vmatpush1.msra.mxu0 0.0
          %1786 = vmatprep.subr.mxu0 0.0
          %1787 = vmatpush1.msra.mxu0 0.0
          %1788 = vmatprep.subr.mxu0 0.0
          %1789 = vmatpush1.msra.mxu0 0.0
          %1790 = vmatprep.subr.mxu0 0.0
          %1791 = vmatpush1.msra.mxu0 0.0
          %1792 = vmatprep.subr.mxu0 0.0
          %1793 = vmatpush1.msra.mxu0 0.0
          %1794 = vmatprep.subr.mxu0 0.0
          %1795 = vmatpush1.msra.mxu0 0.0
          %1796 = vmatprep.subr.mxu0 0.0
          %1797 = vmatpush1.msra.mxu0 0.0
          %1798 = vmatprep.subr.mxu0 0.0
          %1799 = vmatpush1.msra.mxu0 0.0
          %1800 = vmatprep.subr.mxu0 0.0
          %1801 = vmatpush1.msra.mxu0 0.0
          %1802 = vmatprep.subr.mxu0 0.0
          %1803 = vmatpush1.msra.mxu0 0.0
          %1804 = vmatprep.subr.mxu0 0.0
          %1805 = vmatpush1.msra.mxu0 0.0
          %1806 = vmatprep.subr.mxu0 0.0
          %1807 = vmatpush1.msra.mxu0 0.0
          %1808 = vmatprep.subr.mxu0 0.0
          %1809 = vmatpush1.msra.mxu0 0.0
          %1810 = vmatprep.subr.mxu0 0.0
          %1811 = vmatpush1.msra.mxu0 0.0
          %1812 = vmatprep.subr.mxu0 0.0
          %1813 = vmatpush1.msra.mxu0 0.0
          %1814 = vmatprep.subr.mxu0 0.0
          %1815 = vmatpush1.msra.mxu0 0.0
          %1816 = vmatprep.subr.mxu0 0.0
          %1817 = vmatpush1.msra.mxu0 0.0
          %1818 = vmatprep.subr.mxu0 0.0
          %1819 = vmatpush1.msra.mxu0 0.0
          %1820 = vmatprep.subr.mxu0 0.0
          %1821 = vmatpush1.msra.mxu0 0.0
          %1822 = vmatprep.mubr.f32.mxu0 0.0
          %1823 = vmatmul.mubr.f32.gmra.mrb[0].mxu0 %v1756
          %v1824 = vpop.f32.mrb[0].mxu0
          %v1825 = vadd.f32 %v1754, %v1824
          %v1826 = vpop.f32.mrb[0].mxu0
          %1827 = vdwg.mxu0
          %v1828 = vmul.f32 %v1825, 0.35355338
          %v1829 = vlaneseq
          %v1830 = vshrl.u32 %v1829, 7
          %v1831 = vsub.s32 0, %v1830
          %v1832 = vrot.slane %v1748, %v1831
          %v1834 = vsel %vm521, %v483, 0
          %v1837 = vsel %vm521, %v484, 0
          %1839 = vmatprep.subr.mxu0 0.0
          %1840 = vmatpush1.msra.mxu0 %v1733
          %1841 = vmatprep.subr.mxu0 0.0
          %1842 = vmatpush1.msra.mxu0 %v1734
          %1843 = vmatprep.subr.mxu0 0.0
          %1844 = vmatpush1.msra.mxu0 %v1735
          %1845 = vmatprep.subr.mxu0 0.0
          %1846 = vmatpush1.msra.mxu0 %v1736
          %1847 = vmatprep.subr.mxu0 0.0
          %1848 = vmatpush1.msra.mxu0 0.0
          %1849 = vmatprep.subr.mxu0 0.0
          %1850 = vmatpush1.msra.mxu0 0.0
          %1851 = vmatprep.subr.mxu0 0.0
          %1852 = vmatpush1.msra.mxu0 0.0
          %1853 = vmatprep.subr.mxu0 0.0
          %1854 = vmatpush1.msra.mxu0 0.0
          %1855 = vmatprep.subr.mxu0 0.0
          %1856 = vmatpush1.msra.mxu0 0.0
          %1857 = vmatprep.subr.mxu0 0.0
          %1858 = vmatpush1.msra.mxu0 0.0
          %1859 = vmatprep.subr.mxu0 0.0
          %1860 = vmatpush1.msra.mxu0 0.0
          %1861 = vmatprep.subr.mxu0 0.0
          %1862 = vmatpush1.msra.mxu0 0.0
          %1863 = vmatprep.subr.mxu0 0.0
          %1864 = vmatpush1.msra.mxu0 0.0
          %1865 = vmatprep.subr.mxu0 0.0
          %1866 = vmatpush1.msra.mxu0 0.0
          %1867 = vmatprep.subr.mxu0 0.0
          %1868 = vmatpush1.msra.mxu0 0.0
          %1869 = vmatprep.subr.mxu0 0.0
          %1870 = vmatpush1.msra.mxu0 0.0
          %1871 = vmatprep.subr.mxu0 0.0
          %1872 = vmatpush1.msra.mxu0 0.0
          %1873 = vmatprep.subr.mxu0 0.0
          %1874 = vmatpush1.msra.mxu0 0.0
          %1875 = vmatprep.subr.mxu0 0.0
          %1876 = vmatpush1.msra.mxu0 0.0
          %1877 = vmatprep.subr.mxu0 0.0
          %1878 = vmatpush1.msra.mxu0 0.0
          %1879 = vmatprep.subr.mxu0 0.0
          %1880 = vmatpush1.msra.mxu0 0.0
          %1881 = vmatprep.subr.mxu0 0.0
          %1882 = vmatpush1.msra.mxu0 0.0
          %1883 = vmatprep.subr.mxu0 0.0
          %1884 = vmatpush1.msra.mxu0 0.0
          %1885 = vmatprep.subr.mxu0 0.0
          %1886 = vmatpush1.msra.mxu0 0.0
          %1887 = vmatprep.subr.mxu0 0.0
          %1888 = vmatpush1.msra.mxu0 0.0
          %1889 = vmatprep.subr.mxu0 0.0
          %1890 = vmatpush1.msra.mxu0 0.0
          %1891 = vmatprep.subr.mxu0 0.0
          %1892 = vmatpush1.msra.mxu0 0.0
          %1893 = vmatprep.subr.mxu0 0.0
          %1894 = vmatpush1.msra.mxu0 0.0
          %1895 = vmatprep.subr.mxu0 0.0
          %1896 = vmatpush1.msra.mxu0 0.0
          %1897 = vmatprep.subr.mxu0 0.0
          %1898 = vmatpush1.msra.mxu0 0.0
          %1899 = vmatprep.subr.mxu0 0.0
          %1900 = vmatpush1.msra.mxu0 0.0
          %1901 = vmatprep.subr.mxu0 0.0
          %1902 = vmatpush1.msra.mxu0 0.0
          %1903 = vmatprep.mubr.f32.mxu0 0.0
          %1904 = vmatmul.mubr.f32.gmra.mrb[0].mxu0 %v1834
          %v1905 = vpop.f32.mrb[0].mxu0
          %v1906 = vadd.f32 %v1832, %v1905
          %v1907 = vpop.f32.mrb[0].mxu0
          %1908 = vmatprep.mubr.f32.mxu0 0.0
          %1909 = vmatmul.mubr.f32.gmra.mrb[0].mxu0 %v1837
          %v1910 = vpop.f32.mrb[0].mxu0
          %v1911 = vadd.f32 %v1832, %v1910
          %v1912 = vpop.f32.mrb[0].mxu0
          %1913 = vdwg.mxu0
          %v1914 = vlaneseq
          %v1915 = vshrl.u32 %v1914, 7
          %v1916 = vsub.s32 0, %v1915
          %v1917 = vrot.slane %v1749, %v1916
          %1918 = vmatprep.subr.mxu0 0.0
          %1919 = vmatpush1.msra.mxu0 %v1738
          %1920 = vmatprep.subr.mxu0 0.0
          %1921 = vmatpush1.msra.mxu0 %v1739
          %1922 = vmatprep.subr.mxu0 0.0
          %1923 = vmatpush1.msra.mxu0 %v1740
          %1924 = vmatprep.subr.mxu0 0.0
          %1925 = vmatpush1.msra.mxu0 %v1741
          %1926 = vmatprep.subr.mxu0 0.0
          %1927 = vmatpush1.msra.mxu0 0.0
          %1928 = vmatprep.subr.mxu0 0.0
          %1929 = vmatpush1.msra.mxu0 0.0
          %1930 = vmatprep.subr.mxu0 0.0
          %1931 = vmatpush1.msra.mxu0 0.0
          %1932 = vmatprep.subr.mxu0 0.0
          %1933 = vmatpush1.msra.mxu0 0.0
          %1934 = vmatprep.subr.mxu0 0.0
          %1935 = vmatpush1.msra.mxu0 0.0
          %1936 = vmatprep.subr.mxu0 0.0
          %1937 = vmatpush1.msra.mxu0 0.0
          %1938 = vmatprep.subr.mxu0 0.0
          %1939 = vmatpush1.msra.mxu0 0.0
          %1940 = vmatprep.subr.mxu0 0.0
          %1941 = vmatpush1.msra.mxu0 0.0
          %1942 = vmatprep.subr.mxu0 0.0
          %1943 = vmatpush1.msra.mxu0 0.0
          %1944 = vmatprep.subr.mxu0 0.0
          %1945 = vmatpush1.msra.mxu0 0.0
          %1946 = vmatprep.subr.mxu0 0.0
          %1947 = vmatpush1.msra.mxu0 0.0
          %1948 = vmatprep.subr.mxu0 0.0
          %1949 = vmatpush1.msra.mxu0 0.0
          %1950 = vmatprep.subr.mxu0 0.0
          %1951 = vmatpush1.msra.mxu0 0.0
          %1952 = vmatprep.subr.mxu0 0.0
          %1953 = vmatpush1.msra.mxu0 0.0
          %1954 = vmatprep.subr.mxu0 0.0
          %1955 = vmatpush1.msra.mxu0 0.0
          %1956 = vmatprep.subr.mxu0 0.0
          %1957 = vmatpush1.msra.mxu0 0.0
          %1958 = vmatprep.subr.mxu0 0.0
          %1959 = vmatpush1.msra.mxu0 0.0
          %1960 = vmatprep.subr.mxu0 0.0
          %1961 = vmatpush1.msra.mxu0 0.0
          %1962 = vmatprep.subr.mxu0 0.0
          %1963 = vmatpush1.msra.mxu0 0.0
          %1964 = vmatprep.subr.mxu0 0.0
          %1965 = vmatpush1.msra.mxu0 0.0
          %1966 = vmatprep.subr.mxu0 0.0
          %1967 = vmatpush1.msra.mxu0 0.0
          %1968 = vmatprep.subr.mxu0 0.0
          %1969 = vmatpush1.msra.mxu0 0.0
          %1970 = vmatprep.subr.mxu0 0.0
          %1971 = vmatpush1.msra.mxu0 0.0
          %1972 = vmatprep.subr.mxu0 0.0
          %1973 = vmatpush1.msra.mxu0 0.0
          %1974 = vmatprep.subr.mxu0 0.0
          %1975 = vmatpush1.msra.mxu0 0.0
          %1976 = vmatprep.subr.mxu0 0.0
          %1977 = vmatpush1.msra.mxu0 0.0
          %1978 = vmatprep.subr.mxu0 0.0
          %1979 = vmatpush1.msra.mxu0 0.0
          %1980 = vmatprep.subr.mxu0 0.0
          %1981 = vmatpush1.msra.mxu0 0.0
          %1982 = vmatprep.mubr.f32.mxu0 0.0
          %1983 = vmatmul.mubr.f32.gmra.mrb[0].mxu0 %v1834
          %v1984 = vpop.f32.mrb[0].mxu0
          %v1985 = vadd.f32 %v1917, %v1984
          %v1986 = vpop.f32.mrb[0].mxu0
          %1987 = vmatprep.mubr.f32.mxu0 0.0
          %1988 = vmatmul.mubr.f32.gmra.mrb[0].mxu0 %v1837
          %v1989 = vpop.f32.mrb[0].mxu0
          %v1990 = vadd.f32 %v1917, %v1989
          %v1991 = vpop.f32.mrb[0].mxu0
          %1992 = vdwg.mxu0
          %v1994 = vsel %vm744, %v1828, 0
          %v1997 = vsel %vm744, %v1906, 0
          %v2000 = vsel %vm744, %v1911, 0
          %2002 = vmatprep.subr.mxu0 0.0
          %2003 = vmatpush1.xpose.msra.mxu0 %v1997
          %2004 = vmatprep.subr.mxu0 0.0
          %2005 = vmatpush1.xpose.msra.mxu0 %v2000
          %2006 = vmatprep.subr.mxu0 0.0
          %2007 = vmatpush1.xpose.msra.mxu0 0.0
          %2008 = vmatprep.subr.mxu0 0.0
          %2009 = vmatpush1.xpose.msra.mxu0 0.0
          %2010 = vmatprep.subr.mxu0 0.0
          %2011 = vmatpush1.xpose.msra.mxu0 0.0
          %2012 = vmatprep.subr.mxu0 0.0
          %2013 = vmatpush1.xpose.msra.mxu0 0.0
          %2014 = vmatprep.subr.mxu0 0.0
          %2015 = vmatpush1.xpose.msra.mxu0 0.0
          %2016 = vmatprep.subr.mxu0 0.0
          %2017 = vmatpush1.xpose.msra.mxu0 0.0
          %2018 = vmatprep.subr.mxu0 0.0
          %2019 = vmatpush1.xpose.msra.mxu0 0.0
          %2020 = vmatprep.subr.mxu0 0.0
          %2021 = vmatpush1.xpose.msra.mxu0 0.0
          %2022 = vmatprep.subr.mxu0 0.0
          %2023 = vmatpush1.xpose.msra.mxu0 0.0
          %2024 = vmatprep.subr.mxu0 0.0
          %2025 = vmatpush1.xpose.msra.mxu0 0.0
          %2026 = vmatprep.subr.mxu0 0.0
          %2027 = vmatpush1.xpose.msra.mxu0 0.0
          %2028 = vmatprep.subr.mxu0 0.0
          %2029 = vmatpush1.xpose.msra.mxu0 0.0
          %2030 = vmatprep.subr.mxu0 0.0
          %2031 = vmatpush1.xpose.msra.mxu0 0.0
          %2032 = vmatprep.subr.mxu0 0.0
          %2033 = vmatpush1.xpose.msra.mxu0 0.0
          %2034 = vmatprep.subr.mxu0 0.0
          %2035 = vmatpush1.xpose.msra.mxu0 0.0
          %2036 = vmatprep.subr.mxu0 0.0
          %2037 = vmatpush1.xpose.msra.mxu0 0.0
          %2038 = vmatprep.subr.mxu0 0.0
          %2039 = vmatpush1.xpose.msra.mxu0 0.0
          %2040 = vmatprep.subr.mxu0 0.0
          %2041 = vmatpush1.xpose.msra.mxu0 0.0
          %2042 = vmatprep.subr.mxu0 0.0
          %2043 = vmatpush1.xpose.msra.mxu0 0.0
          %2044 = vmatprep.subr.mxu0 0.0
          %2045 = vmatpush1.xpose.msra.mxu0 0.0
          %2046 = vmatprep.subr.mxu0 0.0
          %2047 = vmatpush1.xpose.msra.mxu0 0.0
          %2048 = vmatprep.subr.mxu0 0.0
          %2049 = vmatpush1.xpose.msra.mxu0 0.0
          %2050 = vmatprep.subr.mxu0 0.0
          %2051 = vmatpush1.xpose.msra.mxu0 0.0
          %2052 = vmatprep.subr.mxu0 0.0
          %2053 = vmatpush1.xpose.msra.mxu0 0.0
          %2054 = vmatprep.subr.mxu0 0.0
          %2055 = vmatpush1.xpose.msra.mxu0 0.0
          %2056 = vmatprep.subr.mxu0 0.0
          %2057 = vmatpush1.xpose.msra.mxu0 0.0
          %2058 = vmatprep.subr.mxu0 0.0
          %2059 = vmatpush1.xpose.msra.mxu0 0.0
          %2060 = vmatprep.subr.mxu0 0.0
          %2061 = vmatpush1.xpose.msra.mxu0 0.0
          %2062 = vmatprep.subr.mxu0 0.0
          %2063 = vmatpush1.xpose.msra.mxu0 0.0
          %2064 = vmatprep.subr.mxu0 0.0
          %2065 = vmatpush1.xpose.msra.mxu0 0.0
          %2066 = vmatprep.mubr.f32.mxu0 0.0
          %2067 = vmatmul.mubr.f32.gmra.mrb[0].mxu0 %v1994
          %v2068 = vpop.f32.mrb[0].mxu0
          %v2069 = vadd.f32 %v486, %v2068
          %v2070 = vpop.f32.mrb[0].mxu0
          %2071 = vdwg.mxu0
          %vm2072 = vcmask 130048
          %v2073 = vsel %vm2072, %v2069, -inf
          %2074 = vmax.xlane.f32.xlu0 %v2073
          %v2075 = vpop.xlane.xlu0 %2074
          %v2076 = vsub.f32 %v2069, %v2075
          %v2077 = vmul.f32 %v2076, 1.442695
          %v2078 = vpow.pop %v2077
          %v2079 = vsel %vm2072, %v2078, 0.0
          %2080 = vadd.xlane.f32.xlu0 %v2079
          %v2081 = vpop.xlane.xlu0 %2080
          %v2082 = vrcp.pop %v2081
          %v2083 = vmul.f32 %v2078, %v2082
          %v2085 = vsel %vm2072, %v2083, 0
          %2087 = vmatprep.subr.mxu0 0.0
          %2088 = vmatpush1.msra.mxu0 %v1985
          %2089 = vmatprep.subr.mxu0 0.0
          %2090 = vmatpush1.msra.mxu0 %v1990
          %2091 = vmatprep.subr.mxu0 0.0
          %2092 = vmatpush1.msra.mxu0 0.0
          %2093 = vmatprep.subr.mxu0 0.0
          %2094 = vmatpush1.msra.mxu0 0.0
          %2095 = vmatprep.subr.mxu0 0.0
          %2096 = vmatpush1.msra.mxu0 0.0
          %2097 = vmatprep.subr.mxu0 0.0
          %2098 = vmatpush1.msra.mxu0 0.0
          %2099 = vmatprep.subr.mxu0 0.0
          %2100 = vmatpush1.msra.mxu0 0.0
          %2101 = vmatprep.subr.mxu0 0.0
          %2102 = vmatpush1.msra.mxu0 0.0
          %2103 = vmatprep.subr.mxu0 0.0
          %2104 = vmatpush1.msra.mxu0 0.0
          %2105 = vmatprep.subr.mxu0 0.0
          %2106 = vmatpush1.msra.mxu0 0.0
          %2107 = vmatprep.subr.mxu0 0.0
          %2108 = vmatpush1.msra.mxu0 0.0
          %2109 = vmatprep.subr.mxu0 0.0
          %2110 = vmatpush1.msra.mxu0 0.0
          %2111 = vmatprep.subr.mxu0 0.0
          %2112 = vmatpush1.msra.mxu0 0.0
          %2113 = vmatprep.subr.mxu0 0.0
          %2114 = vmatpush1.msra.mxu0 0.0
          %2115 = vmatprep.subr.mxu0 0.0
          %2116 = vmatpush1.msra.mxu0 0.0
          %2117 = vmatprep.subr.mxu0 0.0
          %2118 = vmatpush1.msra.mxu0 0.0
          %2119 = vmatprep.subr.mxu0 0.0
          %2120 = vmatpush1.msra.mxu0 0.0
          %2121 = vmatprep.subr.mxu0 0.0
          %2122 = vmatpush1.msra.mxu0 0.0
          %2123 = vmatprep.subr.mxu0 0.0
          %2124 = vmatpush1.msra.mxu0 0.0
          %2125 = vmatprep.subr.mxu0 0.0
          %2126 = vmatpush1.msra.mxu0 0.0
          %2127 = vmatprep.subr.mxu0 0.0
          %2128 = vmatpush1.msra.mxu0 0.0
          %2129 = vmatprep.subr.mxu0 0.0
          %2130 = vmatpush1.msra.mxu0 0.0
          %2131 = vmatprep.subr.mxu0 0.0
          %2132 = vmatpush1.msra.mxu0 0.0
          %2133 = vmatprep.subr.mxu0 0.0
          %2134 = vmatpush1.msra.mxu0 0.0
          %2135 = vmatprep.subr.mxu0 0.0
          %2136 = vmatpush1.msra.mxu0 0.0
          %2137 = vmatprep.subr.mxu0 0.0
          %2138 = vmatpush1.msra.mxu0 0.0
          %2139 = vmatprep.subr.mxu0 0.0
          %2140 = vmatpush1.msra.mxu0 0.0
          %2141 = vmatprep.subr.mxu0 0.0
          %2142 = vmatpush1.msra.mxu0 0.0
          %2143 = vmatprep.subr.mxu0 0.0
          %2144 = vmatpush1.msra.mxu0 0.0
          %2145 = vmatprep.subr.mxu0 0.0
          %2146 = vmatpush1.msra.mxu0 0.0
          %2147 = vmatprep.subr.mxu0 0.0
          %2148 = vmatpush1.msra.mxu0 0.0
          %2149 = vmatprep.subr.mxu0 0.0
          %2150 = vmatpush1.msra.mxu0 0.0
          %2151 = vmatprep.mubr.f32.mxu0 0.0
          %2152 = vmatmul.mubr.f32.gmra.mrb[0].mxu0 %v2085
          %v2153 = vpop.f32.mrb[0].mxu0
          %v2154 = vadd.f32 0.0, %v2153
          %v2155 = vpop.f32.mrb[0].mxu0
          %2156 = vdwg.mxu0
          %2157 = vrot.lane.b32.xlu0 %v1828, 120
          %v2158 = vpop.permute.xlu0 %2157
          %2159 = vrot.lane.b32.xlu0 %v1906, 120
          %v2160 = vpop.permute.xlu0 %2159
          %2161 = vrot.lane.b32.xlu0 %v1911, 120
          %v2162 = vpop.permute.xlu0 %2161
          %v2163 = vsel %vm744, %v2158, 0
          %v2165 = vsel %vm744, %v2160, 0
          %v2167 = vsel %vm744, %v2162, 0
          %2169 = vmatprep.subr.mxu0 0.0
          %2170 = vmatpush1.xpose.msra.mxu0 %v2165
          %2171 = vmatprep.subr.mxu0 0.0
          %2172 = vmatpush1.xpose.msra.mxu0 %v2167
          %2173 = vmatprep.subr.mxu0 0.0
          %2174 = vmatpush1.xpose.msra.mxu0 0.0
          %2175 = vmatprep.subr.mxu0 0.0
          %2176 = vmatpush1.xpose.msra.mxu0 0.0
          %2177 = vmatprep.subr.mxu0 0.0
          %2178 = vmatpush1.xpose.msra.mxu0 0.0
          %2179 = vmatprep.subr.mxu0 0.0
          %2180 = vmatpush1.xpose.msra.mxu0 0.0
          %2181 = vmatprep.subr.mxu0 0.0
          %2182 = vmatpush1.xpose.msra.mxu0 0.0
          %2183 = vmatprep.subr.mxu0 0.0
          %2184 = vmatpush1.xpose.msra.mxu0 0.0
          %2185 = vmatprep.subr.mxu0 0.0
          %2186 = vmatpush1.xpose.msra.mxu0 0.0
          %2187 = vmatprep.subr.mxu0 0.0
          %2188 = vmatpush1.xpose.msra.mxu0 0.0
          %2189 = vmatprep.subr.mxu0 0.0
          %2190 = vmatpush1.xpose.msra.mxu0 0.0
          %2191 = vmatprep.subr.mxu0 0.0
          %2192 = vmatpush1.xpose.msra.mxu0 0.0
          %2193 = vmatprep.subr.mxu0 0.0
          %2194 = vmatpush1.xpose.msra.mxu0 0.0
          %2195 = vmatprep.subr.mxu0 0.0
          %2196 = vmatpush1.xpose.msra.mxu0 0.0
          %2197 = vmatprep.subr.mxu0 0.0
          %2198 = vmatpush1.xpose.msra.mxu0 0.0
          %2199 = vmatprep.subr.mxu0 0.0
          %2200 = vmatpush1.xpose.msra.mxu0 0.0
          %2201 = vmatprep.subr.mxu0 0.0
          %2202 = vmatpush1.xpose.msra.mxu0 0.0
          %2203 = vmatprep.subr.mxu0 0.0
          %2204 = vmatpush1.xpose.msra.mxu0 0.0
          %2205 = vmatprep.subr.mxu0 0.0
          %2206 = vmatpush1.xpose.msra.mxu0 0.0
          %2207 = vmatprep.subr.mxu0 0.0
          %2208 = vmatpush1.xpose.msra.mxu0 0.0
          %2209 = vmatprep.subr.mxu0 0.0
          %2210 = vmatpush1.xpose.msra.mxu0 0.0
          %2211 = vmatprep.subr.mxu0 0.0
          %2212 = vmatpush1.xpose.msra.mxu0 0.0
          %2213 = vmatprep.subr.mxu0 0.0
          %2214 = vmatpush1.xpose.msra.mxu0 0.0
          %2215 = vmatprep.subr.mxu0 0.0
          %2216 = vmatpush1.xpose.msra.mxu0 0.0
          %2217 = vmatprep.subr.mxu0 0.0
          %2218 = vmatpush1.xpose.msra.mxu0 0.0
          %2219 = vmatprep.subr.mxu0 0.0
          %2220 = vmatpush1.xpose.msra.mxu0 0.0
          %2221 = vmatprep.subr.mxu0 0.0
          %2222 = vmatpush1.xpose.msra.mxu0 0.0
          %2223 = vmatprep.subr.mxu0 0.0
          %2224 = vmatpush1.xpose.msra.mxu0 0.0
          %2225 = vmatprep.subr.mxu0 0.0
          %2226 = vmatpush1.xpose.msra.mxu0 0.0
          %2227 = vmatprep.subr.mxu0 0.0
          %2228 = vmatpush1.xpose.msra.mxu0 0.0
          %2229 = vmatprep.subr.mxu0 0.0
          %2230 = vmatpush1.xpose.msra.mxu0 0.0
          %2231 = vmatprep.subr.mxu0 0.0
          %2232 = vmatpush1.xpose.msra.mxu0 0.0
          %2233 = vmatprep.mubr.f32.mxu0 0.0
          %2234 = vmatmul.mubr.f32.gmra.mrb[0].mxu0 %v2163
          %v2235 = vpop.f32.mrb[0].mxu0
          %v2236 = vadd.f32 %v486, %v2235
          %v2237 = vpop.f32.mrb[0].mxu0
          %2238 = vdwg.mxu0
          %v2239 = vsel %vm2072, %v2236, -inf
          %2240 = vmax.xlane.f32.xlu0 %v2239
          %v2241 = vpop.xlane.xlu0 %2240
          %v2242 = vsub.f32 %v2236, %v2241
          %v2243 = vmul.f32 %v2242, 1.442695
          %v2244 = vpow.pop %v2243
          %v2245 = vsel %vm2072, %v2244, 0.0
          %2246 = vadd.xlane.f32.xlu0 %v2245
          %v2247 = vpop.xlane.xlu0 %2246
          %v2248 = vrcp.pop %v2247
          %v2249 = vmul.f32 %v2244, %v2248
          %2252 = vrot.lane.b32.xlu0 %v1985, 120
          %v2253 = vpop.permute.xlu0 %2252
          %2254 = vrot.lane.b32.xlu0 %v1990, 120
          %v2255 = vpop.permute.xlu0 %2254
          %v2259 = vsel %vm2072, %v2249, 0
          %2261 = vmatprep.subr.mxu0 0.0
          %2262 = vmatpush1.msra.mxu0 %v2253
          %2263 = vmatprep.subr.mxu0 0.0
          %2264 = vmatpush1.msra.mxu0 %v2255
          %2265 = vmatprep.subr.mxu0 0.0
          %2266 = vmatpush1.msra.mxu0 0.0
          %2267 = vmatprep.subr.mxu0 0.0
          %2268 = vmatpush1.msra.mxu0 0.0
          %2269 = vmatprep.subr.mxu0 0.0
          %2270 = vmatpush1.msra.mxu0 0.0
          %2271 = vmatprep.subr.mxu0 0.0
          %2272 = vmatpush1.msra.mxu0 0.0
          %2273 = vmatprep.subr.mxu0 0.0
          %2274 = vmatpush1.msra.mxu0 0.0
          %2275 = vmatprep.subr.mxu0 0.0
          %2276 = vmatpush1.msra.mxu0 0.0
          %2277 = vmatprep.subr.mxu0 0.0
          %2278 = vmatpush1.msra.mxu0 0.0
          %2279 = vmatprep.subr.mxu0 0.0
          %2280 = vmatpush1.msra.mxu0 0.0
          %2281 = vmatprep.subr.mxu0 0.0
          %2282 = vmatpush1.msra.mxu0 0.0
          %2283 = vmatprep.subr.mxu0 0.0
          %2284 = vmatpush1.msra.mxu0 0.0
          %2285 = vmatprep.subr.mxu0 0.0
          %2286 = vmatpush1.msra.mxu0 0.0
          %2287 = vmatprep.subr.mxu0 0.0
          %2288 = vmatpush1.msra.mxu0 0.0
          %2289 = vmatprep.subr.mxu0 0.0
          %2290 = vmatpush1.msra.mxu0 0.0
          %2291 = vmatprep.subr.mxu0 0.0
          %2292 = vmatpush1.msra.mxu0 0.0
          %2293 = vmatprep.subr.mxu0 0.0
          %2294 = vmatpush1.msra.mxu0 0.0
          %2295 = vmatprep.subr.mxu0 0.0
          %2296 = vmatpush1.msra.mxu0 0.0
          %2297 = vmatprep.subr.mxu0 0.0
          %2298 = vmatpush1.msra.mxu0 0.0
          %2299 = vmatprep.subr.mxu0 0.0
          %2300 = vmatpush1.msra.mxu0 0.0
          %2301 = vmatprep.subr.mxu0 0.0
          %2302 = vmatpush1.msra.mxu0 0.0
          %2303 = vmatprep.subr.mxu0 0.0
          %2304 = vmatpush1.msra.mxu0 0.0
          %2305 = vmatprep.subr.mxu0 0.0
          %2306 = vmatpush1.msra.mxu0 0.0
          %2307 = vmatprep.subr.mxu0 0.0
          %2308 = vmatpush1.msra.mxu0 0.0
          %2309 = vmatprep.subr.mxu0 0.0
          %2310 = vmatpush1.msra.mxu0 0.0
          %2311 = vmatprep.subr.mxu0 0.0
          %2312 = vmatpush1.msra.mxu0 0.0
          %2313 = vmatprep.subr.mxu0 0.0
          %2314 = vmatpush1.msra.mxu0 0.0
          %2315 = vmatprep.subr.mxu0 0.0
          %2316 = vmatpush1.msra.mxu0 0.0
          %2317 = vmatprep.subr.mxu0 0.0
          %2318 = vmatpush1.msra.mxu0 0.0
          %2319 = vmatprep.subr.mxu0 0.0
          %2320 = vmatpush1.msra.mxu0 0.0
          %2321 = vmatprep.subr.mxu0 0.0
          %2322 = vmatpush1.msra.mxu0 0.0
          %2323 = vmatprep.subr.mxu0 0.0
          %2324 = vmatpush1.msra.mxu0 0.0
          %2325 = vmatprep.mubr.f32.mxu0 0.0
          %2326 = vmatmul.mubr.f32.gmra.mrb[0].mxu0 %v2259
          %v2327 = vpop.f32.mrb[0].mxu0
          %v2328 = vadd.f32 0.0, %v2327
          %v2329 = vpop.f32.mrb[0].mxu0
          %2330 = vdwg.mxu0
          %v2332 = vsel %vm744, %v2328, 0
          %2334 = vmatprep.subr.mxu0 0.0
          %2335 = vmatpush1.msra.mxu0 %v1744
          %2336 = vmatprep.subr.mxu0 0.0
          %2337 = vmatpush1.msra.mxu0 0.0
          %2338 = vmatprep.subr.mxu0 0.0
          %2339 = vmatpush1.msra.mxu0 0.0
          %2340 = vmatprep.subr.mxu0 0.0
          %2341 = vmatpush1.msra.mxu0 0.0
          %2342 = vmatprep.subr.mxu0 0.0
          %2343 = vmatpush1.msra.mxu0 0.0
          %2344 = vmatprep.subr.mxu0 0.0
          %2345 = vmatpush1.msra.mxu0 0.0
          %2346 = vmatprep.subr.mxu0 0.0
          %2347 = vmatpush1.msra.mxu0 0.0
          %2348 = vmatprep.subr.mxu0 0.0
          %2349 = vmatpush1.msra.mxu0 0.0
          %2350 = vmatprep.subr.mxu0 0.0
          %2351 = vmatpush1.msra.mxu0 0.0
          %2352 = vmatprep.subr.mxu0 0.0
          %2353 = vmatpush1.msra.mxu0 0.0
          %2354 = vmatprep.subr.mxu0 0.0
          %2355 = vmatpush1.msra.mxu0 0.0
          %2356 = vmatprep.subr.mxu0 0.0
          %2357 = vmatpush1.msra.mxu0 0.0
          %2358 = vmatprep.subr.mxu0 0.0
          %2359 = vmatpush1.msra.mxu0 0.0
          %2360 = vmatprep.subr.mxu0 0.0
          %2361 = vmatpush1.msra.mxu0 0.0
          %2362 = vmatprep.subr.mxu0 0.0
          %2363 = vmatpush1.msra.mxu0 0.0
          %2364 = vmatprep.subr.mxu0 0.0
          %2365 = vmatpush1.msra.mxu0 0.0
          %2366 = vmatprep.subr.mxu0 0.0
          %2367 = vmatpush1.msra.mxu0 0.0
          %2368 = vmatprep.subr.mxu0 0.0
          %2369 = vmatpush1.msra.mxu0 0.0
          %2370 = vmatprep.subr.mxu0 0.0
          %2371 = vmatpush1.msra.mxu0 0.0
          %2372 = vmatprep.subr.mxu0 0.0
          %2373 = vmatpush1.msra.mxu0 0.0
          %2374 = vmatprep.subr.mxu0 0.0
          %2375 = vmatpush1.msra.mxu0 0.0
          %2376 = vmatprep.subr.mxu0 0.0
          %2377 = vmatpush1.msra.mxu0 0.0
          %2378 = vmatprep.subr.mxu0 0.0
          %2379 = vmatpush1.msra.mxu0 0.0
          %2380 = vmatprep.subr.mxu0 0.0
          %2381 = vmatpush1.msra.mxu0 0.0
          %2382 = vmatprep.subr.mxu0 0.0
          %2383 = vmatpush1.msra.mxu0 0.0
          %2384 = vmatprep.subr.mxu0 0.0
          %2385 = vmatpush1.msra.mxu0 0.0
          %2386 = vmatprep.subr.mxu0 0.0
          %2387 = vmatpush1.msra.mxu0 0.0
          %2388 = vmatprep.subr.mxu0 0.0
          %2389 = vmatpush1.msra.mxu0 0.0
          %2390 = vmatprep.subr.mxu0 0.0
          %2391 = vmatpush1.msra.mxu0 0.0
          %2392 = vmatprep.subr.mxu0 0.0
          %2393 = vmatpush1.msra.mxu0 0.0
          %2394 = vmatprep.subr.mxu0 0.0
          %2395 = vmatpush1.msra.mxu0 0.0
          %2396 = vmatprep.subr.mxu0 0.0
          %2397 = vmatpush1.msra.mxu0 0.0
          %2398 = vmatprep.mubr.f32.mxu0 0.0
          %2399 = vmatmul.mubr.f32.gmra.mrb[0].mxu0 %v2332
          %v2400 = vpop.f32.mrb[0].mxu0
          %v2401 = vadd.f32 0.0, %v2400
          %v2402 = vpop.f32.mrb[0].mxu0
          %2403 = vdwg.mxu0
          %v2405 = vsel %vm744, %v2154, 0
          %2407 = vmatprep.subr.mxu0 0.0
          %2408 = vmatpush1.msra.mxu0 %v1743
          %2409 = vmatprep.subr.mxu0 0.0
          %2410 = vmatpush1.msra.mxu0 0.0
          %2411 = vmatprep.subr.mxu0 0.0
          %2412 = vmatpush1.msra.mxu0 0.0
          %2413 = vmatprep.subr.mxu0 0.0
          %2414 = vmatpush1.msra.mxu0 0.0
          %2415 = vmatprep.subr.mxu0 0.0
          %2416 = vmatpush1.msra.mxu0 0.0
          %2417 = vmatprep.subr.mxu0 0.0
          %2418 = vmatpush1.msra.mxu0 0.0
          %2419 = vmatprep.subr.mxu0 0.0
          %2420 = vmatpush1.msra.mxu0 0.0
          %2421 = vmatprep.subr.mxu0 0.0
          %2422 = vmatpush1.msra.mxu0 0.0
          %2423 = vmatprep.subr.mxu0 0.0
          %2424 = vmatpush1.msra.mxu0 0.0
          %2425 = vmatprep.subr.mxu0 0.0
          %2426 = vmatpush1.msra.mxu0 0.0
          %2427 = vmatprep.subr.mxu0 0.0
          %2428 = vmatpush1.msra.mxu0 0.0
          %2429 = vmatprep.subr.mxu0 0.0
          %2430 = vmatpush1.msra.mxu0 0.0
          %2431 = vmatprep.subr.mxu0 0.0
          %2432 = vmatpush1.msra.mxu0 0.0
          %2433 = vmatprep.subr.mxu0 0.0
          %2434 = vmatpush1.msra.mxu0 0.0
          %2435 = vmatprep.subr.mxu0 0.0
          %2436 = vmatpush1.msra.mxu0 0.0
          %2437 = vmatprep.subr.mxu0 0.0
          %2438 = vmatpush1.msra.mxu0 0.0
          %2439 = vmatprep.subr.mxu0 0.0
          %2440 = vmatpush1.msra.mxu0 0.0
          %2441 = vmatprep.subr.mxu0 0.0
          %2442 = vmatpush1.msra.mxu0 0.0
          %2443 = vmatprep.subr.mxu0 0.0
          %2444 = vmatpush1.msra.mxu0 0.0
          %2445 = vmatprep.subr.mxu0 0.0
          %2446 = vmatpush1.msra.mxu0 0.0
          %2447 = vmatprep.subr.mxu0 0.0
          %2448 = vmatpush1.msra.mxu0 0.0
          %2449 = vmatprep.subr.mxu0 0.0
          %2450 = vmatpush1.msra.mxu0 0.0
          %2451 = vmatprep.subr.mxu0 0.0
          %2452 = vmatpush1.msra.mxu0 0.0
          %2453 = vmatprep.subr.mxu0 0.0
          %2454 = vmatpush1.msra.mxu0 0.0
          %2455 = vmatprep.subr.mxu0 0.0
          %2456 = vmatpush1.msra.mxu0 0.0
          %2457 = vmatprep.subr.mxu0 0.0
          %2458 = vmatpush1.msra.mxu0 0.0
          %2459 = vmatprep.subr.mxu0 0.0
          %2460 = vmatpush1.msra.mxu0 0.0
          %2461 = vmatprep.subr.mxu0 0.0
          %2462 = vmatpush1.msra.mxu0 0.0
          %2463 = vmatprep.subr.mxu0 0.0
          %2464 = vmatpush1.msra.mxu0 0.0
          %2465 = vmatprep.subr.mxu0 0.0
          %2466 = vmatpush1.msra.mxu0 0.0
          %2467 = vmatprep.subr.mxu0 0.0
          %2468 = vmatpush1.msra.mxu0 0.0
          %2469 = vmatprep.subr.mxu0 0.0
          %2470 = vmatpush1.msra.mxu0 0.0
          %2471 = vmatprep.mubr.f32.mxu0 0.0
          %2472 = vmatmul.mubr.f32.gmra.mrb[0].mxu0 %v2405
          %v2473 = vpop.f32.mrb[0].mxu0
          %v2474 = vadd.f32 %v2401, %v2473
          %v2475 = vpop.f32.mrb[0].mxu0
          %2476 = vdwg.mxu0
          %2477 = vrot.lane.b32.xlu0 %v1828, 112
          %v2478 = vpop.permute.xlu0 %2477
          %2479 = vrot.lane.b32.xlu0 %v1906, 112
          %v2480 = vpop.permute.xlu0 %2479
          %2481 = vrot.lane.b32.xlu0 %v1911, 112
          %v2482 = vpop.permute.xlu0 %2481
          %v2483 = vsel %vm744, %v2478, 0
          %v2485 = vsel %vm744, %v2480, 0
          %v2487 = vsel %vm744, %v2482, 0
          %2489 = vmatprep.subr.mxu0 0.0
          %2490 = vmatpush1.xpose.msra.mxu0 %v2485
          %2491 = vmatprep.subr.mxu0 0.0
          %2492 = vmatpush1.xpose.msra.mxu0 %v2487
          %2493 = vmatprep.subr.mxu0 0.0
          %2494 = vmatpush1.xpose.msra.mxu0 0.0
          %2495 = vmatprep.subr.mxu0 0.0
          %2496 = vmatpush1.xpose.msra.mxu0 0.0
          %2497 = vmatprep.subr.mxu0 0.0
          %2498 = vmatpush1.xpose.msra.mxu0 0.0
          %2499 = vmatprep.subr.mxu0 0.0
          %2500 = vmatpush1.xpose.msra.mxu0 0.0
          %2501 = vmatprep.subr.mxu0 0.0
          %2502 = vmatpush1.xpose.msra.mxu0 0.0
          %2503 = vmatprep.subr.mxu0 0.0
          %2504 = vmatpush1.xpose.msra.mxu0 0.0
          %2505 = vmatprep.subr.mxu0 0.0
          %2506 = vmatpush1.xpose.msra.mxu0 0.0
          %2507 = vmatprep.subr.mxu0 0.0
          %2508 = vmatpush1.xpose.msra.mxu0 0.0
          %2509 = vmatprep.subr.mxu0 0.0
          %2510 = vmatpush1.xpose.msra.mxu0 0.0
          %2511 = vmatprep.subr.mxu0 0.0
          %2512 = vmatpush1.xpose.msra.mxu0 0.0
          %2513 = vmatprep.subr.mxu0 0.0
          %2514 = vmatpush1.xpose.msra.mxu0 0.0
          %2515 = vmatprep.subr.mxu0 0.0
          %2516 = vmatpush1.xpose.msra.mxu0 0.0
          %2517 = vmatprep.subr.mxu0 0.0
          %2518 = vmatpush1.xpose.msra.mxu0 0.0
          %2519 = vmatprep.subr.mxu0 0.0
          %2520 = vmatpush1.xpose.msra.mxu0 0.0
          %2521 = vmatprep.subr.mxu0 0.0
          %2522 = vmatpush1.xpose.msra.mxu0 0.0
          %2523 = vmatprep.subr.mxu0 0.0
          %2524 = vmatpush1.xpose.msra.mxu0 0.0
          %2525 = vmatprep.subr.mxu0 0.0
          %2526 = vmatpush1.xpose.msra.mxu0 0.0
          %2527 = vmatprep.subr.mxu0 0.0
          %2528 = vmatpush1.xpose.msra.mxu0 0.0
          %2529 = vmatprep.subr.mxu0 0.0
          %2530 = vmatpush1.xpose.msra.mxu0 0.0
          %2531 = vmatprep.subr.mxu0 0.0
          %2532 = vmatpush1.xpose.msra.mxu0 0.0
          %2533 = vmatprep.subr.mxu0 0.0
          %2534 = vmatpush1.xpose.msra.mxu0 0.0
          %2535 = vmatprep.subr.mxu0 0.0
          %2536 = vmatpush1.xpose.msra.mxu0 0.0
          %2537 = vmatprep.subr.mxu0 0.0
          %2538 = vmatpush1.xpose.msra.mxu0 0.0
          %2539 = vmatprep.subr.mxu0 0.0
          %2540 = vmatpush1.xpose.msra.mxu0 0.0
          %2541 = vmatprep.subr.mxu0 0.0
          %2542 = vmatpush1.xpose.msra.mxu0 0.0
          %2543 = vmatprep.subr.mxu0 0.0
          %2544 = vmatpush1.xpose.msra.mxu0 0.0
          %2545 = vmatprep.subr.mxu0 0.0
          %2546 = vmatpush1.xpose.msra.mxu0 0.0
          %2547 = vmatprep.subr.mxu0 0.0
          %2548 = vmatpush1.xpose.msra.mxu0 0.0
          %2549 = vmatprep.subr.mxu0 0.0
          %2550 = vmatpush1.xpose.msra.mxu0 0.0
          %2551 = vmatprep.subr.mxu0 0.0
          %2552 = vmatpush1.xpose.msra.mxu0 0.0
          %2553 = vmatprep.mubr.f32.mxu0 0.0
          %2554 = vmatmul.mubr.f32.gmra.mrb[0].mxu0 %v2483
          %v2555 = vpop.f32.mrb[0].mxu0
          %v2556 = vadd.f32 %v486, %v2555
          %v2557 = vpop.f32.mrb[0].mxu0
          %2558 = vdwg.mxu0
          %v2559 = vsel %vm2072, %v2556, -inf
          %2560 = vmax.xlane.f32.xlu0 %v2559
          %v2561 = vpop.xlane.xlu0 %2560
          %v2562 = vsub.f32 %v2556, %v2561
          %v2563 = vmul.f32 %v2562, 1.442695
          %v2564 = vpow.pop %v2563
          %v2565 = vsel %vm2072, %v2564, 0.0
          %2566 = vadd.xlane.f32.xlu0 %v2565
          %v2567 = vpop.xlane.xlu0 %2566
          %v2568 = vrcp.pop %v2567
          %v2569 = vmul.f32 %v2564, %v2568
          %2570 = vrot.lane.b32.xlu0 %v1985, 112
          %v2571 = vpop.permute.xlu0 %2570
          %2572 = vrot.lane.b32.xlu0 %v1990, 112
          %v2573 = vpop.permute.xlu0 %2572
          %v2577 = vsel %vm2072, %v2569, 0
          %2579 = vmatprep.subr.mxu0 0.0
          %2580 = vmatpush1.msra.mxu0 %v2571
          %2581 = vmatprep.subr.mxu0 0.0
          %2582 = vmatpush1.msra.mxu0 %v2573
          %2583 = vmatprep.subr.mxu0 0.0
          %2584 = vmatpush1.msra.mxu0 0.0
          %2585 = vmatprep.subr.mxu0 0.0
          %2586 = vmatpush1.msra.mxu0 0.0
          %2587 = vmatprep.subr.mxu0 0.0
          %2588 = vmatpush1.msra.mxu0 0.0
          %2589 = vmatprep.subr.mxu0 0.0
          %2590 = vmatpush1.msra.mxu0 0.0
          %2591 = vmatprep.subr.mxu0 0.0
          %2592 = vmatpush1.msra.mxu0 0.0
          %2593 = vmatprep.subr.mxu0 0.0
          %2594 = vmatpush1.msra.mxu0 0.0
          %2595 = vmatprep.subr.mxu0 0.0
          %2596 = vmatpush1.msra.mxu0 0.0
          %2597 = vmatprep.subr.mxu0 0.0
          %2598 = vmatpush1.msra.mxu0 0.0
          %2599 = vmatprep.subr.mxu0 0.0
          %2600 = vmatpush1.msra.mxu0 0.0
          %2601 = vmatprep.subr.mxu0 0.0
          %2602 = vmatpush1.msra.mxu0 0.0
          %2603 = vmatprep.subr.mxu0 0.0
          %2604 = vmatpush1.msra.mxu0 0.0
          %2605 = vmatprep.subr.mxu0 0.0
          %2606 = vmatpush1.msra.mxu0 0.0
          %2607 = vmatprep.subr.mxu0 0.0
          %2608 = vmatpush1.msra.mxu0 0.0
          %2609 = vmatprep.subr.mxu0 0.0
          %2610 = vmatpush1.msra.mxu0 0.0
          %2611 = vmatprep.subr.mxu0 0.0
          %2612 = vmatpush1.msra.mxu0 0.0
          %2613 = vmatprep.subr.mxu0 0.0
          %2614 = vmatpush1.msra.mxu0 0.0
          %2615 = vmatprep.subr.mxu0 0.0
          %2616 = vmatpush1.msra.mxu0 0.0
          %2617 = vmatprep.subr.mxu0 0.0
          %2618 = vmatpush1.msra.mxu0 0.0
          %2619 = vmatprep.subr.mxu0 0.0
          %2620 = vmatpush1.msra.mxu0 0.0
          %2621 = vmatprep.subr.mxu0 0.0
          %2622 = vmatpush1.msra.mxu0 0.0
          %2623 = vmatprep.subr.mxu0 0.0
          %2624 = vmatpush1.msra.mxu0 0.0
          %2625 = vmatprep.subr.mxu0 0.0
          %2626 = vmatpush1.msra.mxu0 0.0
          %2627 = vmatprep.subr.mxu0 0.0
          %2628 = vmatpush1.msra.mxu0 0.0
          %2629 = vmatprep.subr.mxu0 0.0
          %2630 = vmatpush1.msra.mxu0 0.0
          %2631 = vmatprep.subr.mxu0 0.0
          %2632 = vmatpush1.msra.mxu0 0.0
          %2633 = vmatprep.subr.mxu0 0.0
          %2634 = vmatpush1.msra.mxu0 0.0
          %2635 = vmatprep.subr.mxu0 0.0
          %2636 = vmatpush1.msra.mxu0 0.0
          %2637 = vmatprep.subr.mxu0 0.0
          %2638 = vmatpush1.msra.mxu0 0.0
          %2639 = vmatprep.subr.mxu0 0.0
          %2640 = vmatpush1.msra.mxu0 0.0
          %2641 = vmatprep.subr.mxu0 0.0
          %2642 = vmatpush1.msra.mxu0 0.0
          %2643 = vmatprep.mubr.f32.mxu0 0.0
          %2644 = vmatmul.mubr.f32.gmra.mrb[0].mxu0 %v2577
          %v2645 = vpop.f32.mrb[0].mxu0
          %v2646 = vadd.f32 0.0, %v2645
          %v2647 = vpop.f32.mrb[0].mxu0
          %2648 = vdwg.mxu0
          %v2650 = vsel %vm744, %v2646, 0
          %2652 = vmatprep.subr.mxu0 0.0
          %2653 = vmatpush1.msra.mxu0 %v1745
          %2654 = vmatprep.subr.mxu0 0.0
          %2655 = vmatpush1.msra.mxu0 0.0
          %2656 = vmatprep.subr.mxu0 0.0
          %2657 = vmatpush1.msra.mxu0 0.0
          %2658 = vmatprep.subr.mxu0 0.0
          %2659 = vmatpush1.msra.mxu0 0.0
          %2660 = vmatprep.subr.mxu0 0.0
          %2661 = vmatpush1.msra.mxu0 0.0
          %2662 = vmatprep.subr.mxu0 0.0
          %2663 = vmatpush1.msra.mxu0 0.0
          %2664 = vmatprep.subr.mxu0 0.0
          %2665 = vmatpush1.msra.mxu0 0.0
          %2666 = vmatprep.subr.mxu0 0.0
          %2667 = vmatpush1.msra.mxu0 0.0
          %2668 = vmatprep.subr.mxu0 0.0
          %2669 = vmatpush1.msra.mxu0 0.0
          %2670 = vmatprep.subr.mxu0 0.0
          %2671 = vmatpush1.msra.mxu0 0.0
          %2672 = vmatprep.subr.mxu0 0.0
          %2673 = vmatpush1.msra.mxu0 0.0
          %2674 = vmatprep.subr.mxu0 0.0
          %2675 = vmatpush1.msra.mxu0 0.0
          %2676 = vmatprep.subr.mxu0 0.0
          %2677 = vmatpush1.msra.mxu0 0.0
          %2678 = vmatprep.subr.mxu0 0.0
          %2679 = vmatpush1.msra.mxu0 0.0
          %2680 = vmatprep.subr.mxu0 0.0
          %2681 = vmatpush1.msra.mxu0 0.0
          %2682 = vmatprep.subr.mxu0 0.0
          %2683 = vmatpush1.msra.mxu0 0.0
          %2684 = vmatprep.subr.mxu0 0.0
          %2685 = vmatpush1.msra.mxu0 0.0
          %2686 = vmatprep.subr.mxu0 0.0
          %2687 = vmatpush1.msra.mxu0 0.0
          %2688 = vmatprep.subr.mxu0 0.0
          %2689 = vmatpush1.msra.mxu0 0.0
          %2690 = vmatprep.subr.mxu0 0.0
          %2691 = vmatpush1.msra.mxu0 0.0
          %2692 = vmatprep.subr.mxu0 0.0
          %2693 = vmatpush1.msra.mxu0 0.0
          %2694 = vmatprep.subr.mxu0 0.0
          %2695 = vmatpush1.msra.mxu0 0.0
          %2696 = vmatprep.subr.mxu0 0.0
          %2697 = vmatpush1.msra.mxu0 0.0
          %2698 = vmatprep.subr.mxu0 0.0
          %2699 = vmatpush1.msra.mxu0 0.0
          %2700 = vmatprep.subr.mxu0 0.0
          %2701 = vmatpush1.msra.mxu0 0.0
          %2702 = vmatprep.subr.mxu0 0.0
          %2703 = vmatpush1.msra.mxu0 0.0
          %2704 = vmatprep.subr.mxu0 0.0
          %2705 = vmatpush1.msra.mxu0 0.0
          %2706 = vmatprep.subr.mxu0 0.0
          %2707 = vmatpush1.msra.mxu0 0.0
          %2708 = vmatprep.subr.mxu0 0.0
          %2709 = vmatpush1.msra.mxu0 0.0
          %2710 = vmatprep.subr.mxu0 0.0
          %2711 = vmatpush1.msra.mxu0 0.0
          %2712 = vmatprep.subr.mxu0 0.0
          %2713 = vmatpush1.msra.mxu0 0.0
          %2714 = vmatprep.subr.mxu0 0.0
          %2715 = vmatpush1.msra.mxu0 0.0
          %2716 = vmatprep.mubr.f32.mxu0 0.0
          %2717 = vmatmul.mubr.f32.gmra.mrb[0].mxu0 %v2650
          %v2718 = vpop.f32.mrb[0].mxu0
          %v2719 = vadd.f32 0.0, %v2718
          %v2720 = vpop.f32.mrb[0].mxu0
          %2721 = vdwg.mxu0
          %v2722 = vadd.f32 %v2474, %v2719
          %2723 = vrot.lane.b32.xlu0 %v1828, 104
          %v2724 = vpop.permute.xlu0 %2723
          %2725 = vrot.lane.b32.xlu0 %v1906, 104
          %v2726 = vpop.permute.xlu0 %2725
          %2727 = vrot.lane.b32.xlu0 %v1911, 104
          %v2728 = vpop.permute.xlu0 %2727
          %v2729 = vsel %vm744, %v2724, 0
          %v2731 = vsel %vm744, %v2726, 0
          %v2733 = vsel %vm744, %v2728, 0
          %2735 = vmatprep.subr.mxu0 0.0
          %2736 = vmatpush1.xpose.msra.mxu0 %v2731
          %2737 = vmatprep.subr.mxu0 0.0
          %2738 = vmatpush1.xpose.msra.mxu0 %v2733
          %2739 = vmatprep.subr.mxu0 0.0
          %2740 = vmatpush1.xpose.msra.mxu0 0.0
          %2741 = vmatprep.subr.mxu0 0.0
          %2742 = vmatpush1.xpose.msra.mxu0 0.0
          %2743 = vmatprep.subr.mxu0 0.0
          %2744 = vmatpush1.xpose.msra.mxu0 0.0
          %2745 = vmatprep.subr.mxu0 0.0
          %2746 = vmatpush1.xpose.msra.mxu0 0.0
          %2747 = vmatprep.subr.mxu0 0.0
          %2748 = vmatpush1.xpose.msra.mxu0 0.0
          %2749 = vmatprep.subr.mxu0 0.0
          %2750 = vmatpush1.xpose.msra.mxu0 0.0
          %2751 = vmatprep.subr.mxu0 0.0
          %2752 = vmatpush1.xpose.msra.mxu0 0.0
          %2753 = vmatprep.subr.mxu0 0.0
          %2754 = vmatpush1.xpose.msra.mxu0 0.0
          %2755 = vmatprep.subr.mxu0 0.0
          %2756 = vmatpush1.xpose.msra.mxu0 0.0
          %2757 = vmatprep.subr.mxu0 0.0
          %2758 = vmatpush1.xpose.msra.mxu0 0.0
          %2759 = vmatprep.subr.mxu0 0.0
          %2760 = vmatpush1.xpose.msra.mxu0 0.0
          %2761 = vmatprep.subr.mxu0 0.0
          %2762 = vmatpush1.xpose.msra.mxu0 0.0
          %2763 = vmatprep.subr.mxu0 0.0
          %2764 = vmatpush1.xpose.msra.mxu0 0.0
          %2765 = vmatprep.subr.mxu0 0.0
          %2766 = vmatpush1.xpose.msra.mxu0 0.0
          %2767 = vmatprep.subr.mxu0 0.0
          %2768 = vmatpush1.xpose.msra.mxu0 0.0
          %2769 = vmatprep.subr.mxu0 0.0
          %2770 = vmatpush1.xpose.msra.mxu0 0.0
          %2771 = vmatprep.subr.mxu0 0.0
          %2772 = vmatpush1.xpose.msra.mxu0 0.0
          %2773 = vmatprep.subr.mxu0 0.0
          %2774 = vmatpush1.xpose.msra.mxu0 0.0
          %2775 = vmatprep.subr.mxu0 0.0
          %2776 = vmatpush1.xpose.msra.mxu0 0.0
          %2777 = vmatprep.subr.mxu0 0.0
          %2778 = vmatpush1.xpose.msra.mxu0 0.0
          %2779 = vmatprep.subr.mxu0 0.0
          %2780 = vmatpush1.xpose.msra.mxu0 0.0
          %2781 = vmatprep.subr.mxu0 0.0
          %2782 = vmatpush1.xpose.msra.mxu0 0.0
          %2783 = vmatprep.subr.mxu0 0.0
          %2784 = vmatpush1.xpose.msra.mxu0 0.0
          %2785 = vmatprep.subr.mxu0 0.0
          %2786 = vmatpush1.xpose.msra.mxu0 0.0
          %2787 = vmatprep.subr.mxu0 0.0
          %2788 = vmatpush1.xpose.msra.mxu0 0.0
          %2789 = vmatprep.subr.mxu0 0.0
          %2790 = vmatpush1.xpose.msra.mxu0 0.0
          %2791 = vmatprep.subr.mxu0 0.0
          %2792 = vmatpush1.xpose.msra.mxu0 0.0
          %2793 = vmatprep.subr.mxu0 0.0
          %2794 = vmatpush1.xpose.msra.mxu0 0.0
          %2795 = vmatprep.subr.mxu0 0.0
          %2796 = vmatpush1.xpose.msra.mxu0 0.0
          %2797 = vmatprep.subr.mxu0 0.0
          %2798 = vmatpush1.xpose.msra.mxu0 0.0
          %2799 = vmatprep.mubr.f32.mxu0 0.0
          %2800 = vmatmul.mubr.f32.gmra.mrb[0].mxu0 %v2729
          %v2801 = vpop.f32.mrb[0].mxu0
          %v2802 = vadd.f32 %v486, %v2801
          %v2803 = vpop.f32.mrb[0].mxu0
          %2804 = vdwg.mxu0
          %v2805 = vsel %vm2072, %v2802, -inf
          %2806 = vmax.xlane.f32.xlu0 %v2805
          %v2807 = vpop.xlane.xlu0 %2806
          %v2808 = vsub.f32 %v2802, %v2807
          %v2809 = vmul.f32 %v2808, 1.442695
          %v2810 = vpow.pop %v2809
          %v2811 = vsel %vm2072, %v2810, 0.0
          %2812 = vadd.xlane.f32.xlu0 %v2811
          %v2813 = vpop.xlane.xlu0 %2812
          %v2814 = vrcp.pop %v2813
          %v2815 = vmul.f32 %v2810, %v2814
          %2816 = vrot.lane.b32.xlu0 %v1985, 104
          %v2817 = vpop.permute.xlu0 %2816
          %2818 = vrot.lane.b32.xlu0 %v1990, 104
          %v2819 = vpop.permute.xlu0 %2818
          %v2823 = vsel %vm2072, %v2815, 0
          %2825 = vmatprep.subr.mxu0 0.0
          %2826 = vmatpush1.msra.mxu0 %v2817
          %2827 = vmatprep.subr.mxu0 0.0
          %2828 = vmatpush1.msra.mxu0 %v2819
          %2829 = vmatprep.subr.mxu0 0.0
          %2830 = vmatpush1.msra.mxu0 0.0
          %2831 = vmatprep.subr.mxu0 0.0
          %2832 = vmatpush1.msra.mxu0 0.0
          %2833 = vmatprep.subr.mxu0 0.0
          %2834 = vmatpush1.msra.mxu0 0.0
          %2835 = vmatprep.subr.mxu0 0.0
          %2836 = vmatpush1.msra.mxu0 0.0
          %2837 = vmatprep.subr.mxu0 0.0
          %2838 = vmatpush1.msra.mxu0 0.0
          %2839 = vmatprep.subr.mxu0 0.0
          %2840 = vmatpush1.msra.mxu0 0.0
          %2841 = vmatprep.subr.mxu0 0.0
          %2842 = vmatpush1.msra.mxu0 0.0
          %2843 = vmatprep.subr.mxu0 0.0
          %2844 = vmatpush1.msra.mxu0 0.0
          %2845 = vmatprep.subr.mxu0 0.0
          %2846 = vmatpush1.msra.mxu0 0.0
          %2847 = vmatprep.subr.mxu0 0.0
          %2848 = vmatpush1.msra.mxu0 0.0
          %2849 = vmatprep.subr.mxu0 0.0
          %2850 = vmatpush1.msra.mxu0 0.0
          %2851 = vmatprep.subr.mxu0 0.0
          %2852 = vmatpush1.msra.mxu0 0.0
          %2853 = vmatprep.subr.mxu0 0.0
          %2854 = vmatpush1.msra.mxu0 0.0
          %2855 = vmatprep.subr.mxu0 0.0
          %2856 = vmatpush1.msra.mxu0 0.0
          %2857 = vmatprep.subr.mxu0 0.0
          %2858 = vmatpush1.msra.mxu0 0.0
          %2859 = vmatprep.subr.mxu0 0.0
          %2860 = vmatpush1.msra.mxu0 0.0
          %2861 = vmatprep.subr.mxu0 0.0
          %2862 = vmatpush1.msra.mxu0 0.0
          %2863 = vmatprep.subr.mxu0 0.0
          %2864 = vmatpush1.msra.mxu0 0.0
          %2865 = vmatprep.subr.mxu0 0.0
          %2866 = vmatpush1.msra.mxu0 0.0
          %2867 = vmatprep.subr.mxu0 0.0
          %2868 = vmatpush1.msra.mxu0 0.0
          %2869 = vmatprep.subr.mxu0 0.0
          %2870 = vmatpush1.msra.mxu0 0.0
          %2871 = vmatprep.subr.mxu0 0.0
          %2872 = vmatpush1.msra.mxu0 0.0
          %2873 = vmatprep.subr.mxu0 0.0
          %2874 = vmatpush1.msra.mxu0 0.0
          %2875 = vmatprep.subr.mxu0 0.0
          %2876 = vmatpush1.msra.mxu0 0.0
          %2877 = vmatprep.subr.mxu0 0.0
          %2878 = vmatpush1.msra.mxu0 0.0
          %2879 = vmatprep.subr.mxu0 0.0
          %2880 = vmatpush1.msra.mxu0 0.0
          %2881 = vmatprep.subr.mxu0 0.0
          %2882 = vmatpush1.msra.mxu0 0.0
          %2883 = vmatprep.subr.mxu0 0.0
          %2884 = vmatpush1.msra.mxu0 0.0
          %2885 = vmatprep.subr.mxu0 0.0
          %2886 = vmatpush1.msra.mxu0 0.0
          %2887 = vmatprep.subr.mxu0 0.0
          %2888 = vmatpush1.msra.mxu0 0.0
          %2889 = vmatprep.mubr.f32.mxu0 0.0
          %2890 = vmatmul.mubr.f32.gmra.mrb[0].mxu0 %v2823
          %v2891 = vpop.f32.mrb[0].mxu0
          %v2892 = vadd.f32 0.0, %v2891
          %v2893 = vpop.f32.mrb[0].mxu0
          %2894 = vdwg.mxu0
          %v2896 = vsel %vm744, %v2892, 0
          %2898 = vmatprep.subr.mxu0 0.0
          %2899 = vmatpush1.msra.mxu0 %v1746
          %2900 = vmatprep.subr.mxu0 0.0
          %2901 = vmatpush1.msra.mxu0 0.0
          %2902 = vmatprep.subr.mxu0 0.0
          %2903 = vmatpush1.msra.mxu0 0.0
          %2904 = vmatprep.subr.mxu0 0.0
          %2905 = vmatpush1.msra.mxu0 0.0
          %2906 = vmatprep.subr.mxu0 0.0
          %2907 = vmatpush1.msra.mxu0 0.0
          %2908 = vmatprep.subr.mxu0 0.0
          %2909 = vmatpush1.msra.mxu0 0.0
          %2910 = vmatprep.subr.mxu0 0.0
          %2911 = vmatpush1.msra.mxu0 0.0
          %2912 = vmatprep.subr.mxu0 0.0
          %2913 = vmatpush1.msra.mxu0 0.0
          %2914 = vmatprep.subr.mxu0 0.0
          %2915 = vmatpush1.msra.mxu0 0.0
          %2916 = vmatprep.subr.mxu0 0.0
          %2917 = vmatpush1.msra.mxu0 0.0
          %2918 = vmatprep.subr.mxu0 0.0
          %2919 = vmatpush1.msra.mxu0 0.0
          %2920 = vmatprep.subr.mxu0 0.0
          %2921 = vmatpush1.msra.mxu0 0.0
          %2922 = vmatprep.subr.mxu0 0.0
          %2923 = vmatpush1.msra.mxu0 0.0
          %2924 = vmatprep.subr.mxu0 0.0
          %2925 = vmatpush1.msra.mxu0 0.0
          %2926 = vmatprep.subr.mxu0 0.0
          %2927 = vmatpush1.msra.mxu0 0.0
          %2928 = vmatprep.subr.mxu0 0.0
          %2929 = vmatpush1.msra.mxu0 0.0
          %2930 = vmatprep.subr.mxu0 0.0
          %2931 = vmatpush1.msra.mxu0 0.0
          %2932 = vmatprep.subr.mxu0 0.0
          %2933 = vmatpush1.msra.mxu0 0.0
          %2934 = vmatprep.subr.mxu0 0.0
          %2935 = vmatpush1.msra.mxu0 0.0
          %2936 = vmatprep.subr.mxu0 0.0
          %2937 = vmatpush1.msra.mxu0 0.0
          %2938 = vmatprep.subr.mxu0 0.0
          %2939 = vmatpush1.msra.mxu0 0.0
          %2940 = vmatprep.subr.mxu0 0.0
          %2941 = vmatpush1.msra.mxu0 0.0
          %2942 = vmatprep.subr.mxu0 0.0
          %2943 = vmatpush1.msra.mxu0 0.0
          %2944 = vmatprep.subr.mxu0 0.0
          %2945 = vmatpush1.msra.mxu0 0.0
          %2946 = vmatprep.subr.mxu0 0.0
          %2947 = vmatpush1.msra.mxu0 0.0
          %2948 = vmatprep.subr.mxu0 0.0
          %2949 = vmatpush1.msra.mxu0 0.0
          %2950 = vmatprep.subr.mxu0 0.0
          %2951 = vmatpush1.msra.mxu0 0.0
          %2952 = vmatprep.subr.mxu0 0.0
          %2953 = vmatpush1.msra.mxu0 0.0
          %2954 = vmatprep.subr.mxu0 0.0
          %2955 = vmatpush1.msra.mxu0 0.0
          %2956 = vmatprep.subr.mxu0 0.0
          %2957 = vmatpush1.msra.mxu0 0.0
          %2958 = vmatprep.subr.mxu0 0.0
          %2959 = vmatpush1.msra.mxu0 0.0
          %2960 = vmatprep.subr.mxu0 0.0
          %2961 = vmatpush1.msra.mxu0 0.0
          %2962 = vmatprep.mubr.f32.mxu0 0.0
          %2963 = vmatmul.mubr.f32.gmra.mrb[0].mxu0 %v2896
          %v2964 = vpop.f32.mrb[0].mxu0
          %v2965 = vadd.f32 0.0, %v2964
          %v2966 = vpop.f32.mrb[0].mxu0
          %2967 = vdwg.mxu0
          %v2968 = vadd.f32 %v2722, %v2965
          %v2969 = vlaneseq
          %v2970 = vshrl.u32 %v2969, 7
          %v2971 = vsub.s32 0, %v2970
          %v2972 = vrot.slane %v1750, %v2971
          %v2973 = vadd.f32 %v2968, %v2972
          %v2974 = vadd.f32 %v1726, %v2973
          %v2975 = vld [vmem:[#allocation7 + $0x2] sm:$0x1]
          %v2976 = vld [vmem:[#allocation7 + $0x3] sm:$0x1]
          %v2977 = vsel %vm521, %v2974, 0.0
          %2978 = vadd.xlane.f32.xlu0 %v2977
          %v2979 = vpop.xlane.xlu0 %2978
          %v2980 = vmul.f32 %v2979, %v1706
          %v2981 = vsub.f32 %v2974, %v2980
          %v2982 = vmul.f32 %v2981, %v2981
          %v2983 = vsel %vm521, %v2982, 0.0
          %2984 = vadd.xlane.f32.xlu0 %v2983
          %v2985 = vpop.xlane.xlu0 %2984
          %v2986 = vmul.f32 %v2985, %v1706
          %v2987 = vadd.f32 %v2986, 1e-06
          %v2988 = vrsqrt.pop %v2987
          %v2989 = vmul.f32 %v2981, %v2988
          %v2990 = vlaneseq
          %v2991 = vshrl.u32 %v2990, 7
          %v2992 = vsub.s32 0, %v2991
          %v2993 = vrot.slane %v2975, %v2992
          %v2994 = vmul.f32 %v2989, %v2993
          %v2995 = vlaneseq
          %v2996 = vshrl.u32 %v2995, 7
          %v2997 = vsub.s32 0, %v2996
          %v2998 = vrot.slane %v2976, %v2997
          %v2999 = vadd.f32 %v2994, %v2998
          %v3000 = vld [vmem:[%s6] sm:$0xff]
          %v3001 = vld [vmem:[%s6 + $0x8] sm:$0xff]
          %v3002 = vld [vmem:[%s6 + $0x10] sm:$0xff]
          %v3003 = vld [vmem:[%s6 + $0x18] sm:$0xff]
          %v3004 = vld [vmem:[%s7] sm:$0x1]
          %v3006 = vlaneseq
          %v3007 = vshrl.u32 %v3006, 7
          %v3008 = vsub.s32 0, %v3007
          %v3009 = vrot.slane %v3004, %v3008
          %v3012 = vsel %vm521, %v2999, 0
          %3014 = vmatprep.subr.mxu0 0.0
          %3015 = vmatpush1.msra.mxu0 %v3000
          %3016 = vmatprep.subr.mxu0 0.0
          %3017 = vmatpush1.msra.mxu0 %v3001
          %3018 = vmatprep.subr.mxu0 0.0
          %3019 = vmatpush1.msra.mxu0 %v3002
          %3020 = vmatprep.subr.mxu0 0.0
          %3021 = vmatpush1.msra.mxu0 %v3003
          %3022 = vmatprep.subr.mxu0 0.0
          %3023 = vmatpush1.msra.mxu0 0.0
          %3024 = vmatprep.subr.mxu0 0.0
          %3025 = vmatpush1.msra.mxu0 0.0
          %3026 = vmatprep.subr.mxu0 0.0
          %3027 = vmatpush1.msra.mxu0 0.0
          %3028 = vmatprep.subr.mxu0 0.0
          %3029 = vmatpush1.msra.mxu0 0.0
          %3030 = vmatprep.subr.mxu0 0.0
          %3031 = vmatpush1.msra.mxu0 0.0
          %3032 = vmatprep.subr.mxu0 0.0
          %3033 = vmatpush1.msra.mxu0 0.0
          %3034 = vmatprep.subr.mxu0 0.0
          %3035 = vmatpush1.msra.mxu0 0.0
          %3036 = vmatprep.subr.mxu0 0.0
          %3037 = vmatpush1.msra.mxu0 0.0
          %3038 = vmatprep.subr.mxu0 0.0
          %3039 = vmatpush1.msra.mxu0 0.0
          %3040 = vmatprep.subr.mxu0 0.0
          %3041 = vmatpush1.msra.mxu0 0.0
          %3042 = vmatprep.subr.mxu0 0.0
          %3043 = vmatpush1.msra.mxu0 0.0
          %3044 = vmatprep.subr.mxu0 0.0
          %3045 = vmatpush1.msra.mxu0 0.0
          %3046 = vmatprep.subr.mxu0 0.0
          %3047 = vmatpush1.msra.mxu0 0.0
          %3048 = vmatprep.subr.mxu0 0.0
          %3049 = vmatpush1.msra.mxu0 0.0
          %3050 = vmatprep.subr.mxu0 0.0
          %3051 = vmatpush1.msra.mxu0 0.0
          %3052 = vmatprep.subr.mxu0 0.0
          %3053 = vmatpush1.msra.mxu0 0.0
          %3054 = vmatprep.subr.mxu0 0.0
          %3055 = vmatpush1.msra.mxu0 0.0
          %3056 = vmatprep.subr.mxu0 0.0
          %3057 = vmatpush1.msra.mxu0 0.0
          %3058 = vmatprep.subr.mxu0 0.0
          %3059 = vmatpush1.msra.mxu0 0.0
          %3060 = vmatprep.subr.mxu0 0.0
          %3061 = vmatpush1.msra.mxu0 0.0
          %3062 = vmatprep.subr.mxu0 0.0
          %3063 = vmatpush1.msra.mxu0 0.0
          %3064 = vmatprep.subr.mxu0 0.0
          %3065 = vmatpush1.msra.mxu0 0.0
          %3066 = vmatprep.subr.mxu0 0.0
          %3067 = vmatpush1.msra.mxu0 0.0
          %3068 = vmatprep.subr.mxu0 0.0
          %3069 = vmatpush1.msra.mxu0 0.0
          %3070 = vmatprep.subr.mxu0 0.0
          %3071 = vmatpush1.msra.mxu0 0.0
          %3072 = vmatprep.subr.mxu0 0.0
          %3073 = vmatpush1.msra.mxu0 0.0
          %3074 = vmatprep.subr.mxu0 0.0
          %3075 = vmatpush1.msra.mxu0 0.0
          %3076 = vmatprep.subr.mxu0 0.0
          %3077 = vmatpush1.msra.mxu0 0.0
          %3078 = vmatprep.mubr.f32.mxu0 0.0
          %3079 = vmatmul.mubr.f32.gmra.mrb[0].mxu0 %v3012
          %v3080 = vpop.f32.mrb[0].mxu0
          %v3081 = vadd.f32 %v3009, %v3080
          %v3082 = vpop.f32.mrb[0].mxu0
          %3083 = vdwg.mxu0
          %v3084 = vmax.f32 %v3081, 0.0
          %v3085 = vld [vmem:[%s8] sm:$0xff]
          %v3086 = vld [vmem:[%s8 + $0x8] sm:$0xff]
          %v3087 = vld [vmem:[%s8 + $0x10] sm:$0xff]
          %v3088 = vld [vmem:[%s8 + $0x18] sm:$0xff]
          %v3089 = vld [vmem:[%s8 + $0x20] sm:$0xff]
          %v3090 = vld [vmem:[%s8 + $0x28] sm:$0xff]
          %v3091 = vld [vmem:[%s8 + $0x30] sm:$0xff]
          %v3092 = vld [vmem:[%s8 + $0x38] sm:$0xff]
          %v3093 = vld [vmem:[#allocation5] sm:$0x1]
          %v3095 = vlaneseq
          %v3096 = vshrl.u32 %v3095, 7
          %v3097 = vsub.s32 0, %v3096
          %v3098 = vrot.slane %v3093, %v3097
          %vm3100 = vcmask 523264
          %v3102 = vsel %vm3100, %v3084, 0
          %3104 = vmatprep.subr.mxu0 0.0
          %3105 = vmatpush1.msra.mxu0 %v3085
          %3106 = vmatprep.subr.mxu0 0.0
          %3107 = vmatpush1.msra.mxu0 %v3086
          %3108 = vmatprep.subr.mxu0 0.0
          %3109 = vmatpush1.msra.mxu0 %v3087
          %3110 = vmatprep.subr.mxu0 0.0
          %3111 = vmatpush1.msra.mxu0 %v3088
          %3112 = vmatprep.subr.mxu0 0.0
          %3113 = vmatpush1.msra.mxu0 %v3089
          %3114 = vmatprep.subr.mxu0 0.0
          %3115 = vmatpush1.msra.mxu0 %v3090
          %3116 = vmatprep.subr.mxu0 0.0
          %3117 = vmatpush1.msra.mxu0 %v3091
          %3118 = vmatprep.subr.mxu0 0.0
          %3119 = vmatpush1.msra.mxu0 %v3092
          %3120 = vmatprep.subr.mxu0 0.0
          %3121 = vmatpush1.msra.mxu0 0.0
          %3122 = vmatprep.subr.mxu0 0.0
          %3123 = vmatpush1.msra.mxu0 0.0
          %3124 = vmatprep.subr.mxu0 0.0
          %3125 = vmatpush1.msra.mxu0 0.0
          %3126 = vmatprep.subr.mxu0 0.0
          %3127 = vmatpush1.msra.mxu0 0.0
          %3128 = vmatprep.subr.mxu0 0.0
          %3129 = vmatpush1.msra.mxu0 0.0
          %3130 = vmatprep.subr.mxu0 0.0
          %3131 = vmatpush1.msra.mxu0 0.0
          %3132 = vmatprep.subr.mxu0 0.0
          %3133 = vmatpush1.msra.mxu0 0.0
          %3134 = vmatprep.subr.mxu0 0.0
          %3135 = vmatpush1.msra.mxu0 0.0
          %3136 = vmatprep.subr.mxu0 0.0
          %3137 = vmatpush1.msra.mxu0 0.0
          %3138 = vmatprep.subr.mxu0 0.0
          %3139 = vmatpush1.msra.mxu0 0.0
          %3140 = vmatprep.subr.mxu0 0.0
          %3141 = vmatpush1.msra.mxu0 0.0
          %3142 = vmatprep.subr.mxu0 0.0
          %3143 = vmatpush1.msra.mxu0 0.0
          %3144 = vmatprep.subr.mxu0 0.0
          %3145 = vmatpush1.msra.mxu0 0.0
          %3146 = vmatprep.subr.mxu0 0.0
          %3147 = vmatpush1.msra.mxu0 0.0
          %3148 = vmatprep.subr.mxu0 0.0
          %3149 = vmatpush1.msra.mxu0 0.0
          %3150 = vmatprep.subr.mxu0 0.0
          %3151 = vmatpush1.msra.mxu0 0.0
          %3152 = vmatprep.subr.mxu0 0.0
          %3153 = vmatpush1.msra.mxu0 0.0
          %3154 = vmatprep.subr.mxu0 0.0
          %3155 = vmatpush1.msra.mxu0 0.0
          %3156 = vmatprep.subr.mxu0 0.0
          %3157 = vmatpush1.msra.mxu0 0.0
          %3158 = vmatprep.subr.mxu0 0.0
          %3159 = vmatpush1.msra.mxu0 0.0
          %3160 = vmatprep.subr.mxu0 0.0
          %3161 = vmatpush1.msra.mxu0 0.0
          %3162 = vmatprep.subr.mxu0 0.0
          %3163 = vmatpush1.msra.mxu0 0.0
          %3164 = vmatprep.subr.mxu0 0.0
          %3165 = vmatpush1.msra.mxu0 0.0
          %3166 = vmatprep.subr.mxu0 0.0
          %3167 = vmatpush1.msra.mxu0 0.0
          %3168 = vmatprep.mubr.f32.mxu0 0.0
          %3169 = vmatmul.mubr.f32.gmra.mrb[0].mxu0 %v3102
          %v3170 = vpop.f32.mrb[0].mxu0
          %v3171 = vadd.f32 %v3098, %v3170
          %v3172 = vpop.f32.mrb[0].mxu0
          %3173 = vdwg.mxu0
          %v3174 = vadd.f32 %v2999, %v3171
          %v3175 = vld [vmem:[#allocation7 + $0x4] sm:$0x1]
          %v3176 = vld [vmem:[#allocation7 + $0x5] sm:$0x1]
          %v3177 = vsel %vm521, %v3174, 0.0
          %3178 = vadd.xlane.f32.xlu0 %v3177
          %v3179 = vpop.xlane.xlu0 %3178
          %v3180 = vmul.f32 %v3179, %v1706
          %v3181 = vsub.f32 %v3174, %v3180
          %v3182 = vmul.f32 %v3181, %v3181
          %v3183 = vsel %vm521, %v3182, 0.0
          %3184 = vadd.xlane.f32.xlu0 %v3183
          %v3185 = vpop.xlane.xlu0 %3184
          %v3186 = vmul.f32 %v3185, %v1706
          %v3187 = vadd.f32 %v3186, 1e-06
          %v3188 = vrsqrt.pop %v3187
          %v3189 = vmul.f32 %v3181, %v3188
          %v3190 = vlaneseq
          %v3191 = vshrl.u32 %v3190, 7
          %v3192 = vsub.s32 0, %v3191
          %v3193 = vrot.slane %v3175, %v3192
          %v3194 = vmul.f32 %v3189, %v3193
          %v3195 = vlaneseq
          %v3196 = vshrl.u32 %v3195, 7
          %v3197 = vsub.s32 0, %v3196
          %v3198 = vrot.slane %v3176, %v3197
          %v3199 = vadd.f32 %v3194, %v3198
        $region89: #{decoder_forward.1} parent=67 // loop_footer
          %s492 = sadd.s32 1, %s488
        $region90: #{decoder_forward.1} parent=67 // loop_footer_branch
          %487 = sbr.rel target = $region86
        $region91: #{decoder_forward.1} parent=67 // loop_exit
          _
        %v3200 = vld [vmem:[#allocation8] sm:$0x1]
        %v3201 = vld [vmem:[#allocation8 + $0x1] sm:$0x1]
        %vm3202 = vcmask 261120
        %v3203 = vsel %vm3202, %v493, 0.0
        %3204 = vadd.xlane.f32.xlu0 %v3203
        %v3205 = vpop.xlane.xlu0 %3204
        %v3206 = vrcp.pop 32.0
        %v3207 = vmul.f32 %v3205, %v3206
        %v3208 = vsub.f32 %v493, %v3207
        %v3209 = vmul.f32 %v3208, %v3208
        %v3210 = vsel %vm3202, %v3209, 0.0
        %3211 = vadd.xlane.f32.xlu0 %v3210
        %v3212 = vpop.xlane.xlu0 %3211
        %v3213 = vmul.f32 %v3212, %v3206
        %v3214 = vadd.f32 %v3213, 1e-06
        %v3215 = vrsqrt.pop %v3214
        %v3216 = vmul.f32 %v3208, %v3215
        %v3217 = vlaneseq
        %v3218 = vshrl.u32 %v3217, 7
        %v3219 = vsub.s32 0, %v3218
        %v3220 = vrot.slane %v3200, %v3219
        %v3221 = vmul.f32 %v3216, %v3220
        %v3222 = vlaneseq
        %v3223 = vshrl.u32 %v3222, 7
        %v3224 = vsub.s32 0, %v3223
        %v3225 = vrot.slane %v3201, %v3224
        %v3226 = vadd.f32 %v3221, %v3225
        %3227 = vst.msk [vmem:[%s472] sm:$0xff] %vm3202, %v3226
        %s3228 = sand.u32 %s299, 1
        %s3229 = scalar_lea.sflag [#allocation4], %s3228
        %s3230 = sand.u32 %s299, 1
        %s3231 = smul.addr %s3230, 8
        %s3232 = scalar_lea.vmem [#allocation10], %s3231
        // Predicated region
        $region92: #{decoder_forward.1} parent=67 // pred_check
          %p3233 = pneg %p309
        $region93: #{decoder_forward.1} parent=67 // pred_check_branch
          %3235 = sbr.rel (%p3233) target = $region95
        $region94: #{decoder_forward.1} parent=67 // pred_region
          %s3237 = ssub.s32 128, 128
          %3238 = vsyncadd %s3229, %s3237
          %s3239 = smul.addr %s29, 128
          %s3240 = scalar_lea.hbm %s12, %s3239
          %s3242 = sshll.u32 %s3232, 4
          %s3243 = int_to_ptr.vmem [resolvable:$true] %s3242
          %3245 = dma.vmem_to_hbm [thread:$0]  %s3243, 128, %s3240, %s3229
        $region95: #{decoder_forward.1} parent=67 // pred_fallthru
          _
      $region68: #{decoder_forward.1} parent=5 // pred_fallthru
        _
      %p3246 = scmp.le.s32.totalorder 2, %s24
      // Predicated region
      $region96: #{decoder_forward.1} parent=5 // pred_check
        %p3247 = pneg %p3246
      $region97: #{decoder_forward.1} parent=5 // pred_check_branch
        %3249 = sbr.rel (%p3247) target = $region99
      $region98: #{decoder_forward.1} parent=5 // pred_region
        %s3250 = ssub.s32 %s24, 2
        // Predicated region
        $region100: #{decoder_forward.1} parent=98 // pred_check
          %p3251 = pneg %p315
        $region101: #{decoder_forward.1} parent=98 // pred_check_branch
          %3253 = sbr.rel (%p3251) target = $region103
        $region102: #{decoder_forward.1} parent=98 // pred_region
          %s3254 = sand.u32 %s300, 1
          %s3255 = scalar_lea.sflag [#allocation4], %s3254
          %s3256 = sand.u32 %s300, 1
          %s3257 = smul.addr %s3256, 8
          %s3258 = scalar_lea.vmem [#allocation10], %s3257
          %3259 = dma.done %s3255, 128
        $region103: #{decoder_forward.1} parent=98 // pred_fallthru
          _
      $region99: #{decoder_forward.1} parent=5 // pred_fallthru
        _
    $region6: #{decoder_forward.1} parent=1 // loop_footer
      %s28 = sadd.s32 1, %s24
    $region7: #{decoder_forward.1} parent=1 // loop_footer_branch
      %23 = sbr.rel target = $region3
    $region8: #{decoder_forward.1} parent=1 // loop_exit
      _
    %3260 = vsyncpa [#allocation3], 1
    %s3261 = scalar_lea.sflag [#allocation3], 1
    %3262 = vsyncpa %s3261, 1
    %3263 = vsyncpa [#allocation6], 1
    %3264 = vsyncpa [#allocation9], 1
    %3265 = vsyncpa [#allocation4], 1
    %s3266 = scalar_lea.sflag [#allocation4], 1
    %3267 = vsyncpa %s3266, 1

</llo_original>
